<compile_context>
chip_gen: v5e
topology: v5e:2x2
jax: 0.10.0
libtpu: 0.0.40
codegen_flags: <defaults>
</compile_context>

<pallas_src>
import functools

import jax
import jax.numpy as jnp
from jax import lax
from jax.experimental import pallas as pl
from jax.experimental.pallas import tpu as pltpu


def _round_up(x, m):
    return (x + m - 1) // m * m


def _largest_divisor_leq(n, cap):
    cap = min(n, cap)
    return max(d for d in range(1, cap + 1) if n % d == 0)


def _lipswish(x):
    return 0.909 * x * jax.nn.sigmoid(x)


# -----------------------------------------------------------------------------
# kernel
# -----------------------------------------------------------------------------
def _generator_kernel(
    num_layers, H, Hpad, unroll,
    # scalar prefetch (SMEM): dts[i] = times[i] - times[i-1], dts[0] = 0
    dts_ref,
    # inputs (VMEM)
    x0_ref, dW_ref, tb_ref,
    Wi_ref, bi_ref,
    Wfgy_ref, Wfgh_ref, bfgh_ref, Wfgo_ref, bfgo_ref,
    # output: latent trajectory chunk (tc, bb, H)
    z_ref,
    # scratch: carried SDE state (bb, H) f32
    y_ref,
):
    t_blk = pl.program_id(1)
    tc = z_ref.shape[0]
    base = t_blk * tc
    cdt = Wfgy_ref.dtype

    # y0 = initial(coeffs[:, 0, :]); re-initialised whenever a new batch block
    # starts (the time axis restarts at 0).
    @pl.when(t_blk == 0)
    def _():
        y_ref[...] = (
            jnp.dot(x0_ref[...], Wi_ref[...], preferred_element_type=jnp.float32)
            + bi_ref[...]
        )

    def step(j, y):
        # Fused drift (f) / diffusion (g) MLP. The 0.909 LipSwish scale is
        # pre-folded into Wfgh / Wfgo; the t-dependent first-layer bias is the
        # precomputed table row (chunk-local index j == global base + j).
        h = (
            jnp.dot(y.astype(cdt), Wfgy_ref[...],
                    preferred_element_type=jnp.float32)
            + tb_ref[pl.ds(j, 1), :]
        )                                                       # (bb, 2H)
        h = h * jax.nn.sigmoid(h)
        for l in range(num_layers):
            h = (
                jnp.dot(h.astype(cdt), Wfgh_ref[l],
                        preferred_element_type=jnp.float32)
                + bfgh_ref[l]
            )
            h = h * jax.nn.sigmoid(h)
        fg = jnp.tanh(
            jnp.dot(h.astype(cdt), Wfgo_ref[...],
                    preferred_element_type=jnp.float32)
            + bfgo_ref[...]
        )                                                       # (bb, 2*Hpad)
        # f/g halves start on 128-lane tile boundaries -> no XLU realign.
        f = fg[:, :H]
        g = fg[:, Hpad:Hpad + H]

        # dts[0] == 0 and dW[0] == 0, so the very first global step (i == 0)
        # degenerates to y_new == y0 and simply records the initial state.
        y_new = y + f * dts_ref[base + j] + g * dW_ref[j].astype(jnp.float32)
        z_ref[j] = y_new.astype(z_ref.dtype)
        return y_new

    y_ref[...] = lax.fori_loop(0, tc, step, y_ref[...], unroll=unroll)


# -----------------------------------------------------------------------------
# one-time parameter preparation (hoisted out of the per-call forward)
# -----------------------------------------------------------------------------
def prepare_fused_params(p):
    """Fuse drift/diffusion vector fields, fold the 0.909 LipSwish scale into
    the next layer's weights, and pad the fused output layer so the f/g split
    lands on 128-lane tile boundaries."""
    H = p["Wi"].shape[1]
    L = p["Wfh"].shape[0]
    Hpad = _round_up(H, 128)
    s = jnp.float32(0.909)

    Wfgy = jnp.concatenate([p["Wfy"], p["Wgy"]], axis=1)                # (H, 2H)
    Wfgt = jnp.concatenate([p["Wft"], p["Wgt"]], axis=1)                # (1, 2H)
    bfgin = jnp.concatenate([p["bfin"], p["bgin"]], axis=1)             # (1, 2H)

    # TODO(synk): on v5e (128-wide MXU) un-fuse these block-diagonal layers
    # into separate (H, H) f / g matmuls once 2*H > 128.
    Wfgh = jnp.zeros((L, 2 * H, 2 * H), jnp.float32)
    Wfgh = Wfgh.at[:, :H, :H].set(p["Wfh"]).at[:, H:, H:].set(p["Wgh"]) * s
    bfgh = jnp.concatenate([p["bfh"], p["bgh"]], axis=-1)               # (L, 1, 2H)

    Wfgo = jnp.zeros((2 * H, 2 * Hpad), jnp.float32)
    Wfgo = Wfgo.at[:H, :H].set(p["Wfo"]).at[H:, Hpad:Hpad + H].set(p["Wgo"]) * s
    bfgo = jnp.zeros((1, 2 * Hpad), jnp.float32)
    bfgo = bfgo.at[:, :H].set(p["bfo"]).at[:, Hpad:Hpad + H].set(p["bgo"])

    return dict(
        Wi=p["Wi"], bi=p["bi"],
        Wfgy=Wfgy, Wfgt=Wfgt, bfgin=bfgin,
        Wfgh=Wfgh, bfgh=bfgh, Wfgo=Wfgo, bfgo=bfgo,
        Wd=p["Wd"], bd=p["bd"],
        H=H, Hpad=Hpad, num_layers=L,
    )


# -----------------------------------------------------------------------------
# forward
# -----------------------------------------------------------------------------
def generator_forward(fp, coeffs, dW, times, *, param_dtype=jnp.float32,
                      batch_block=128, time_block=64):
    """Forward pass of Generator. `fp` comes from prepare_fused_params.
    param_dtype=jnp.bfloat16 is recommended on v6e/v7x (f32 accumulation)."""
    B, T, D = coeffs.shape
    H, Hpad, L = fp["H"], fp["Hpad"], fp["num_layers"]

    # TODO(synk): X.evaluate(times) (cubic-spline readout) is not translated;
    # only its value at times[0] is consumed, taken here as coeffs[:, 0, :].
    x0 = coeffs[:, 0, :]

    # Fill the MXU M dimension: pad batch to a sublane multiple (callers
    # should batch many SDE paths for real throughput).
    Bp = max(8, _round_up(B, 8))
    if Bp != B:
        x0 = jnp.concatenate([x0, jnp.zeros((Bp - B, D), x0.dtype)], axis=0)
        dW = jnp.concatenate([dW, jnp.zeros((T, Bp - B, H), dW.dtype)], axis=1)

    bb = _largest_divisor_leq(Bp, batch_block)   # batch block (parallel axis)
    tc = _largest_divisor_leq(T, time_block)     # time chunk (arbitrary axis)
    unroll = True if tc <= 16 else 8

    # Per-call step tables (everything weight-shaped is prepared once).
    dts = jnp.concatenate([jnp.zeros((1,), jnp.float32),
                           jnp.diff(times).astype(jnp.float32)])        # (T,)
    t_prev = jnp.concatenate([times[:1], times[:-1]]).astype(jnp.float32)
    tb = t_prev[:, None] * fp["Wfgt"] + fp["bfgin"]                     # (T, 2H)

    cdt = param_dtype
    inputs = [
        x0.astype(cdt), dW.astype(cdt), tb,
        fp["Wi"].astype(cdt), fp["bi"],
        fp["Wfgy"].astype(cdt), fp["Wfgh"].astype(cdt), fp["bfgh"],
        fp["Wfgo"].astype(cdt), fp["bfgo"],
    ]

    def rep(arr):  # fully-resident weight: constant block index -> fetched once
        nd = arr.ndim
        return pl.BlockSpec(arr.shape, lambda b, t, dts_r, nd=nd: (0,) * nd)

    in_specs = [
        pl.BlockSpec((bb, D), lambda b, t, dts_r: (b, 0)),          # x0
        pl.BlockSpec((tc, bb, H), lambda b, t, dts_r: (t, b, 0)),   # dW chunk
        pl.BlockSpec((tc, 2 * H), lambda b, t, dts_r: (t, 0)),      # tb chunk
    ] + [rep(a) for a in inputs[3:]]

    # TODO(synk): at production sizes, pad H to a multiple of 128 (or pack
    # several steps per row) so trajectory stores / writeback are lane-dense.
    grid_spec = pltpu.PrefetchScalarGridSpec(
        num_scalar_prefetch=1,                     # dts -> SMEM
        grid=(Bp // bb, T // tc),
        in_specs=in_specs,
        out_specs=pl.BlockSpec((tc, bb, H), lambda b, t, dts_r: (t, b, 0)),
        scratch_shapes=[pltpu.VMEM((bb, H), jnp.float32)],          # carried y
    )

    z_tbh = pl.pallas_call(
        functools.partial(_generator_kernel, L, H, Hpad, unroll),
        out_shape=jax.ShapeDtypeStruct((T, Bp, H), jnp.float32),
        grid_spec=grid_spec,
        compiler_params=pltpu.CompilerParams(
            dimension_semantics=("parallel", "arbitrary")),
    )(dts, *inputs)

    # Decoder applied once, outside the kernel; einsum avoids materialising a
    # transposed copy of the trajectory.
    z_tbh = z_tbh[:, :B, :]
    return jnp.einsum("tbh,ho->bto", z_tbh, fp["Wd"]) + fp["bd"]    # (B, T, O)


# -----------------------------------------------------------------------------
# parameters & pure-JAX reference
# -----------------------------------------------------------------------------
def init_params(key, D, H, O, L):
    ks = iter(jax.random.split(key, 16))

    def lin(fan_in, shape):
        return (jax.random.normal(next(ks), shape, dtype=jnp.float32)
                / jnp.sqrt(float(fan_in)))

    p = {}
    p["Wi"] = lin(D, (D, H))
    p["bi"] = jnp.zeros((1, H), jnp.float32)
    for name in ("f", "g"):
        p[f"W{name}y"] = lin(H + 1, (H, H))
        p[f"W{name}t"] = lin(H + 1, (1, H))
        p[f"b{name}in"] = jnp.zeros((1, H), jnp.float32)
        p[f"W{name}h"] = lin(H, (L, H, H))
        p[f"b{name}h"] = jnp.zeros((L, 1, H), jnp.float32)
        p[f"W{name}o"] = lin(H, (H, H))
        p[f"b{name}o"] = jnp.zeros((1, H), jnp.float32)
    p["Wd"] = lin(H, (H, O))
    p["bd"] = jnp.zeros((1, O), jnp.float32)
    return p


def reference_forward(params, coeffs, dW, times, L):
    """Pure-JAX reference of the same Euler-Maruyama scheme (unfused)."""
    def mlp(y, t, Wy, Wt, b_in, Wh, bh, Wo, bo):
        h = _lipswish(y @ Wy + t * Wt + b_in)
        for l in range(L):
            h = _lipswish(h @ Wh[l] + bh[l])
        return jnp.tanh(h @ Wo + bo)

    y = coeffs[:, 0, :] @ params["Wi"] + params["bi"]
    zs = [y]
    for i in range(1, times.shape[0]):
        t_prev = times[i - 1]
        dt = times[i] - t_prev
        f = mlp(y, t_prev, params["Wfy"], params["Wft"], params["bfin"],
                params["Wfh"], params["bfh"], params["Wfo"], params["bfo"])
        g = mlp(y, t_prev, params["Wgy"], params["Wgt"], params["bgin"],
                params["Wgh"], params["bgh"], params["Wgo"], params["bgo"])
        y = y + f * dt + g * dW[i]
        zs.append(y)
    z = jnp.stack(zs, axis=1)                    # (B, T, H)
    return z @ params["Wd"] + params["bd"]       # (B, T, O)


if __name__ == "__main__":
    B, T = 2, 8           # batch, number of time points
    D = 4                 # input_dim
    H = 32                # hidden_dim (== hidden_hidden_dim per __init__)
    O = 3                 # output_dim
    L = 2                 # num_layers

    key = jax.random.PRNGKey(0)
    k_coeffs, k_noise, k_params = jax.random.split(key, 3)

    coeffs = jax.random.normal(k_coeffs, (B, T, D), dtype=jnp.float32)
    times = jnp.linspace(0.0, 1.0, T, dtype=jnp.float32)

    # Brownian increments: dW[i] ~ N(0, times[i]-times[i-1]); dW[0] unused (=0).
    dts = jnp.diff(times)
    noise = jax.random.normal(k_noise, (T - 1, B, H), dtype=jnp.float32)
    dW = jnp.concatenate(
        [jnp.zeros((1, B, H), jnp.float32),
         noise * jnp.sqrt(dts)[:, None, None]], axis=0)

    params = init_params(k_params, D, H, O, L)
    fused = prepare_fused_params(params)         # one-time prep, not per call

    # f32 run: must match the pure-JAX reference tightly.
    out = generator_forward(fused, coeffs, dW, times)
    out = jax.block_until_ready(out)
    assert out.shape == (B, T, O), out.shape

    ref = reference_forward(params, coeffs, dW, times, L)
    assert jnp.allclose(out, ref, rtol=1e-2, atol=1e-2), (
        float(jnp.max(jnp.abs(out - ref))))

    # bf16 weights/activations path (recommended on v6e/v7x), f32 accumulation.
    out_bf16 = generator_forward(fused, coeffs, dW, times,
                                 param_dtype=jnp.bfloat16)
    out_bf16 = jax.block_until_ready(out_bf16)
    assert bool(jnp.isfinite(out_bf16).all())
    assert float(jnp.max(jnp.abs(out_bf16 - ref))) < 0.5

    print("KERNEL_OK")
</pallas_src>

<mosaic_0001>
module attributes {stable_mosaic.version = 11 : i64} {
  func.func @_generator_kernel(%arg0: i32, %arg1: i32, %arg2: memref<8xf32, #tpu.memory_space<smem>>, %arg3: memref<8x4xf32, #tpu.memory_space<vmem>>, %arg4: memref<8x8x32xf32, #tpu.memory_space<vmem>>, %arg5: memref<8x64xf32, #tpu.memory_space<vmem>>, %arg6: memref<4x32xf32, #tpu.memory_space<vmem>>, %arg7: memref<1x32xf32, #tpu.memory_space<vmem>>, %arg8: memref<32x64xf32, #tpu.memory_space<vmem>>, %arg9: memref<2x64x64xf32, #tpu.memory_space<vmem>>, %arg10: memref<2x1x64xf32, #tpu.memory_space<vmem>>, %arg11: memref<64x256xf32, #tpu.memory_space<vmem>>, %arg12: memref<1x256xf32, #tpu.memory_space<vmem>>, %arg13: memref<8x8x32xf32, #tpu.memory_space<vmem>>, %arg14: memref<8x32xf32, #tpu.memory_space<vmem>>) attributes {dimension_semantics = [#tpu.dimension_semantics<parallel>, #tpu.dimension_semantics<arbitrary>], iteration_bounds = array<i64: 1, 1>, scalar_prefetch = 1 : i64, scratch_operands = 1 : i64, tpu.core_type = #tpu.core_type<tc>, window_params = [{transform_indices = @transform_0, window_bounds = array<i64: 8, 4>}, {transform_indices = @transform_1, window_bounds = array<i64: 8, 8, 32>}, {transform_indices = @transform_2, window_bounds = array<i64: 8, 64>}, {pipeline_mode = #tpu.pipeline_mode<synchronous>, transform_indices = @transform_3, window_bounds = array<i64: 4, 32>}, {pipeline_mode = #tpu.pipeline_mode<synchronous>, transform_indices = @transform_4, window_bounds = array<i64: 1, 32>}, {pipeline_mode = #tpu.pipeline_mode<synchronous>, transform_indices = @transform_5, window_bounds = array<i64: 32, 64>}, {pipeline_mode = #tpu.pipeline_mode<synchronous>, transform_indices = @transform_6, window_bounds = array<i64: 2, 64, 64>}, {pipeline_mode = #tpu.pipeline_mode<synchronous>, transform_indices = @transform_7, window_bounds = array<i64: 2, 1, 64>}, {pipeline_mode = #tpu.pipeline_mode<synchronous>, transform_indices = @transform_8, window_bounds = array<i64: 64, 256>}, {pipeline_mode = #tpu.pipeline_mode<synchronous>, transform_indices = @transform_9, window_bounds = array<i64: 1, 256>}, {transform_indices = @transform_10, window_bounds = array<i64: 8, 8, 32>}]} {
    %c8_i32 = arith.constant 8 : i32
    %0 = arith.muli %arg1, %c8_i32 : i32
    %c0_i32 = arith.constant 0 : i32
    %1 = arith.cmpi eq, %arg1, %c0_i32 : i32
    %2 = arith.extui %1 : i1 to i32
    %c0_i32_0 = arith.constant 0 : i32
    %3 = arith.cmpi ne, %2, %c0_i32_0 : i32
    scf.if %3 {
      %c0_244 = arith.constant 0 : index
      %c0_245 = arith.constant 0 : index
      %494 = vector.load %arg3[%c0_244, %c0_245] : memref<8x4xf32, #tpu.memory_space<vmem>>, vector<8x4xf32>
      %c0_246 = arith.constant 0 : index
      %c0_247 = arith.constant 0 : index
      %495 = vector.load %arg6[%c0_246, %c0_247] : memref<4x32xf32, #tpu.memory_space<vmem>>, vector<4x32xf32>
      %cst_248 = arith.constant dense<0.000000e+00> : vector<8x32xf32>
      %496 = tpu.matmul %494, %495, %cst_248 {dimension_numbers = #tpu.dot_dimension_numbers<[1], [0], [0], [1], [0, 0, 1, 1], [], []>} : vector<8x4xf32>, vector<4x32xf32>, vector<8x32xf32> -> vector<8x32xf32>
      %c0_249 = arith.constant 0 : index
      %c0_250 = arith.constant 0 : index
      %497 = vector.load %arg7[%c0_249, %c0_250] : memref<1x32xf32, #tpu.memory_space<vmem>>, vector<1x32xf32>
      %498 = vector.broadcast %497 : vector<1x32xf32> to vector<8x32xf32>
      %499 = arith.addf %496, %498 : vector<8x32xf32>
      %c0_251 = arith.constant 0 : index
      %c0_252 = arith.constant 0 : index
      %500 = vector.load %arg14[%c0_251, %c0_252] : memref<8x32xf32, #tpu.memory_space<vmem>>, vector<8x32xf32>
      tpu.vector_store %arg14[%c0_251, %c0_252], %499 {strides = array<i32>} : memref<8x32xf32, #tpu.memory_space<vmem>>, vector<8x32xf32>,
    } else {
    }
    %c0 = arith.constant 0 : index
    %c0_1 = arith.constant 0 : index
    %4 = vector.load %arg14[%c0, %c0_1] : memref<8x32xf32, #tpu.memory_space<vmem>>, vector<8x32xf32>
    %c0_i32_2 = arith.constant 0 : i32
    %c0_3 = arith.constant 0 : index
    %c0_4 = arith.constant 0 : index
    %5 = vector.load %arg8[%c0_3, %c0_4] : memref<32x64xf32, #tpu.memory_space<vmem>>, vector<32x64xf32>
    %cst = arith.constant dense<0.000000e+00> : vector<8x64xf32>
    %6 = tpu.matmul %4, %5, %cst {dimension_numbers = #tpu.dot_dimension_numbers<[1], [0], [0], [1], [0, 0, 1, 1], [], []>} : vector<8x32xf32>, vector<32x64xf32>, vector<8x64xf32> -> vector<8x64xf32>
    %7 = arith.index_cast %c0_i32_2 : i32 to index
    %c0_5 = arith.constant 0 : index
    %8 = vector.load %arg5[%7, %c0_5] : memref<8x64xf32, #tpu.memory_space<vmem>>, vector<1x64xf32>
    %9 = vector.broadcast %8 : vector<1x64xf32> to vector<8x64xf32>
    %10 = arith.addf %6, %9 : vector<8x64xf32>
    %11 = arith.negf %10 : vector<8x64xf32>
    %12 = math.exp %11 : vector<8x64xf32>
    %cst_6 = arith.constant 1.000000e+00 : f32
    %13 = vector.broadcast %cst_6 : f32 to vector<8x64xf32>
    %14 = arith.addf %13, %12 : vector<8x64xf32>
    %15 = arith.divf %13, %14 : vector<8x64xf32>
    %16 = arith.mulf %10, %15 : vector<8x64xf32>
    %c0_7 = arith.constant 0 : index
    %c0_8 = arith.constant 0 : index
    %c0_9 = arith.constant 0 : index
    %17 = vector.load %arg9[%c0_7, %c0_8, %c0_9] : memref<2x64x64xf32, #tpu.memory_space<vmem>>, vector<1x64x64xf32>
    %18 = vector.shape_cast %17 : vector<1x64x64xf32> to vector<64x64xf32>
    %cst_10 = arith.constant dense<0.000000e+00> : vector<8x64xf32>
    %19 = tpu.matmul %16, %18, %cst_10 {dimension_numbers = #tpu.dot_dimension_numbers<[1], [0], [0], [1], [0, 0, 1, 1], [], []>} : vector<8x64xf32>, vector<64x64xf32>, vector<8x64xf32> -> vector<8x64xf32>
    %c0_11 = arith.constant 0 : index
    %c0_12 = arith.constant 0 : index
    %c0_13 = arith.constant 0 : index
    %20 = vector.load %arg10[%c0_11, %c0_12, %c0_13] : memref<2x1x64xf32, #tpu.memory_space<vmem>>, vector<1x1x64xf32>
    %21 = vector.shape_cast %20 : vector<1x1x64xf32> to vector<1x64xf32>
    %22 = vector.broadcast %21 : vector<1x64xf32> to vector<8x64xf32>
    %23 = arith.addf %19, %22 : vector<8x64xf32>
    %24 = arith.negf %23 : vector<8x64xf32>
    %25 = math.exp %24 : vector<8x64xf32>
    %cst_14 = arith.constant 1.000000e+00 : f32
    %26 = vector.broadcast %cst_14 : f32 to vector<8x64xf32>
    %27 = arith.addf %26, %25 : vector<8x64xf32>
    %28 = arith.divf %26, %27 : vector<8x64xf32>
    %29 = arith.mulf %23, %28 : vector<8x64xf32>
    %c1 = arith.constant 1 : index
    %c0_15 = arith.constant 0 : index
    %c0_16 = arith.constant 0 : index
    %30 = vector.load %arg9[%c1, %c0_15, %c0_16] : memref<2x64x64xf32, #tpu.memory_space<vmem>>, vector<1x64x64xf32>
    %31 = vector.shape_cast %30 : vector<1x64x64xf32> to vector<64x64xf32>
    %cst_17 = arith.constant dense<0.000000e+00> : vector<8x64xf32>
    %32 = tpu.matmul %29, %31, %cst_17 {dimension_numbers = #tpu.dot_dimension_numbers<[1], [0], [0], [1], [0, 0, 1, 1], [], []>} : vector<8x64xf32>, vector<64x64xf32>, vector<8x64xf32> -> vector<8x64xf32>
    %c1_18 = arith.constant 1 : index
    %c0_19 = arith.constant 0 : index
    %c0_20 = arith.constant 0 : index
    %33 = vector.load %arg10[%c1_18, %c0_19, %c0_20] : memref<2x1x64xf32, #tpu.memory_space<vmem>>, vector<1x1x64xf32>
    %34 = vector.shape_cast %33 : vector<1x1x64xf32> to vector<1x64xf32>
    %35 = vector.broadcast %34 : vector<1x64xf32> to vector<8x64xf32>
    %36 = arith.addf %32, %35 : vector<8x64xf32>
    %37 = arith.negf %36 : vector<8x64xf32>
    %38 = math.exp %37 : vector<8x64xf32>
    %cst_21 = arith.constant 1.000000e+00 : f32
    %39 = vector.broadcast %cst_21 : f32 to vector<8x64xf32>
    %40 = arith.addf %39, %38 : vector<8x64xf32>
    %41 = arith.divf %39, %40 : vector<8x64xf32>
    %42 = arith.mulf %36, %41 : vector<8x64xf32>
    %c0_22 = arith.constant 0 : index
    %c0_23 = arith.constant 0 : index
    %43 = vector.load %arg11[%c0_22, %c0_23] : memref<64x256xf32, #tpu.memory_space<vmem>>, vector<64x256xf32>
    %cst_24 = arith.constant dense<0.000000e+00> : vector<8x256xf32>
    %44 = tpu.matmul %42, %43, %cst_24 {dimension_numbers = #tpu.dot_dimension_numbers<[1], [0], [0], [1], [0, 0, 1, 1], [], []>} : vector<8x64xf32>, vector<64x256xf32>, vector<8x256xf32> -> vector<8x256xf32>
    %c0_25 = arith.constant 0 : index
    %c0_26 = arith.constant 0 : index
    %45 = vector.load %arg12[%c0_25, %c0_26] : memref<1x256xf32, #tpu.memory_space<vmem>>, vector<1x256xf32>
    %46 = vector.broadcast %45 : vector<1x256xf32> to vector<8x256xf32>
    %47 = arith.addf %44, %46 : vector<8x256xf32>
    %48 = math.tanh %47 : vector<8x256xf32>
    %49 = vector.extract_strided_slice %48 {offsets = [0, 0], sizes = [8, 32], strides = [1, 1]} : vector<8x256xf32> to vector<8x32xf32>
    %50 = vector.extract_strided_slice %48 {offsets = [0, 128], sizes = [8, 32], strides = [1, 1]} : vector<8x256xf32> to vector<8x32xf32>
    %51 = arith.addi %0, %c0_i32_2 : i32
    %52 = arith.index_cast %51 : i32 to index
    %53 = memref.load %arg2[%52] : memref<8xf32, #tpu.memory_space<smem>>
    %54 = vector.broadcast %53 : f32 to vector<8x32xf32>
    %55 = arith.mulf %49, %54 : vector<8x32xf32>
    %56 = arith.addf %4, %55 : vector<8x32xf32>
    %57 = arith.index_cast %c0_i32_2 : i32 to index
    %c0_27 = arith.constant 0 : index
    %c0_28 = arith.constant 0 : index
    %58 = vector.load %arg4[%57, %c0_27, %c0_28] : memref<8x8x32xf32, #tpu.memory_space<vmem>>, vector<1x8x32xf32>
    %59 = vector.shape_cast %58 : vector<1x8x32xf32> to vector<8x32xf32>
    %60 = arith.mulf %50, %59 : vector<8x32xf32>
    %61 = arith.addf %56, %60 : vector<8x32xf32>
    %62 = arith.index_cast %c0_i32_2 : i32 to index
    %c0_29 = arith.constant 0 : index
    %c0_30 = arith.constant 0 : index
    %63 = vector.load %arg13[%62, %c0_29, %c0_30] : memref<8x8x32xf32, #tpu.memory_space<vmem>>, vector<1x8x32xf32>
    %64 = vector.shape_cast %63 : vector<1x8x32xf32> to vector<8x32xf32>
    %65 = vector.shape_cast %61 : vector<8x32xf32> to vector<1x8x32xf32>
    tpu.vector_store %arg13[%62, %c0_29, %c0_30], %65 {strides = array<i32>} : memref<8x8x32xf32, #tpu.memory_space<vmem>>, vector<1x8x32xf32>,
    %c1_i32 = arith.constant 1 : i32
    %c0_31 = arith.constant 0 : index
    %c0_32 = arith.constant 0 : index
    %66 = vector.load %arg8[%c0_31, %c0_32] : memref<32x64xf32, #tpu.memory_space<vmem>>, vector<32x64xf32>
    %cst_33 = arith.constant dense<0.000000e+00> : vector<8x64xf32>
    %67 = tpu.matmul %61, %66, %cst_33 {dimension_numbers = #tpu.dot_dimension_numbers<[1], [0], [0], [1], [0, 0, 1, 1], [], []>} : vector<8x32xf32>, vector<32x64xf32>, vector<8x64xf32> -> vector<8x64xf32>
    %68 = arith.index_cast %c1_i32 : i32 to index
    %c0_34 = arith.constant 0 : index
    %69 = vector.load %arg5[%68, %c0_34] : memref<8x64xf32, #tpu.memory_space<vmem>>, vector<1x64xf32>
    %70 = vector.broadcast %69 : vector<1x64xf32> to vector<8x64xf32>
    %71 = arith.addf %67, %70 : vector<8x64xf32>
    %72 = arith.negf %71 : vector<8x64xf32>
    %73 = math.exp %72 : vector<8x64xf32>
    %cst_35 = arith.constant 1.000000e+00 : f32
    %74 = vector.broadcast %cst_35 : f32 to vector<8x64xf32>
    %75 = arith.addf %74, %73 : vector<8x64xf32>
    %76 = arith.divf %74, %75 : vector<8x64xf32>
    %77 = arith.mulf %71, %76 : vector<8x64xf32>
    %c0_36 = arith.constant 0 : index
    %c0_37 = arith.constant 0 : index
    %c0_38 = arith.constant 0 : index
    %78 = vector.load %arg9[%c0_36, %c0_37, %c0_38] : memref<2x64x64xf32, #tpu.memory_space<vmem>>, vector<1x64x64xf32>
    %79 = vector.shape_cast %78 : vector<1x64x64xf32> to vector<64x64xf32>
    %cst_39 = arith.constant dense<0.000000e+00> : vector<8x64xf32>
    %80 = tpu.matmul %77, %79, %cst_39 {dimension_numbers = #tpu.dot_dimension_numbers<[1], [0], [0], [1], [0, 0, 1, 1], [], []>} : vector<8x64xf32>, vector<64x64xf32>, vector<8x64xf32> -> vector<8x64xf32>
    %c0_40 = arith.constant 0 : index
    %c0_41 = arith.constant 0 : index
    %c0_42 = arith.constant 0 : index
    %81 = vector.load %arg10[%c0_40, %c0_41, %c0_42] : memref<2x1x64xf32, #tpu.memory_space<vmem>>, vector<1x1x64xf32>
    %82 = vector.shape_cast %81 : vector<1x1x64xf32> to vector<1x64xf32>
    %83 = vector.broadcast %82 : vector<1x64xf32> to vector<8x64xf32>
    %84 = arith.addf %80, %83 : vector<8x64xf32>
    %85 = arith.negf %84 : vector<8x64xf32>
    %86 = math.exp %85 : vector<8x64xf32>
    %cst_43 = arith.constant 1.000000e+00 : f32
    %87 = vector.broadcast %cst_43 : f32 to vector<8x64xf32>
    %88 = arith.addf %87, %86 : vector<8x64xf32>
    %89 = arith.divf %87, %88 : vector<8x64xf32>
    %90 = arith.mulf %84, %89 : vector<8x64xf32>
    %c1_44 = arith.constant 1 : index
    %c0_45 = arith.constant 0 : index
    %c0_46 = arith.constant 0 : index
    %91 = vector.load %arg9[%c1_44, %c0_45, %c0_46] : memref<2x64x64xf32, #tpu.memory_space<vmem>>, vector<1x64x64xf32>
    %92 = vector.shape_cast %91 : vector<1x64x64xf32> to vector<64x64xf32>
    %cst_47 = arith.constant dense<0.000000e+00> : vector<8x64xf32>
    %93 = tpu.matmul %90, %92, %cst_47 {dimension_numbers = #tpu.dot_dimension_numbers<[1], [0], [0], [1], [0, 0, 1, 1], [], []>} : vector<8x64xf32>, vector<64x64xf32>, vector<8x64xf32> -> vector<8x64xf32>
    %c1_48 = arith.constant 1 : index
    %c0_49 = arith.constant 0 : index
    %c0_50 = arith.constant 0 : index
    %94 = vector.load %arg10[%c1_48, %c0_49, %c0_50] : memref<2x1x64xf32, #tpu.memory_space<vmem>>, vector<1x1x64xf32>
    %95 = vector.shape_cast %94 : vector<1x1x64xf32> to vector<1x64xf32>
    %96 = vector.broadcast %95 : vector<1x64xf32> to vector<8x64xf32>
    %97 = arith.addf %93, %96 : vector<8x64xf32>
    %98 = arith.negf %97 : vector<8x64xf32>
    %99 = math.exp %98 : vector<8x64xf32>
    %cst_51 = arith.constant 1.000000e+00 : f32
    %100 = vector.broadcast %cst_51 : f32 to vector<8x64xf32>
    %101 = arith.addf %100, %99 : vector<8x64xf32>
    %102 = arith.divf %100, %101 : vector<8x64xf32>
    %103 = arith.mulf %97, %102 : vector<8x64xf32>
    %c0_52 = arith.constant 0 : index
    %c0_53 = arith.constant 0 : index
    %104 = vector.load %arg11[%c0_52, %c0_53] : memref<64x256xf32, #tpu.memory_space<vmem>>, vector<64x256xf32>
    %cst_54 = arith.constant dense<0.000000e+00> : vector<8x256xf32>
    %105 = tpu.matmul %103, %104, %cst_54 {dimension_numbers = #tpu.dot_dimension_numbers<[1], [0], [0], [1], [0, 0, 1, 1], [], []>} : vector<8x64xf32>, vector<64x256xf32>, vector<8x256xf32> -> vector<8x256xf32>
    %c0_55 = arith.constant 0 : index
    %c0_56 = arith.constant 0 : index
    %106 = vector.load %arg12[%c0_55, %c0_56] : memref<1x256xf32, #tpu.memory_space<vmem>>, vector<1x256xf32>
    %107 = vector.broadcast %106 : vector<1x256xf32> to vector<8x256xf32>
    %108 = arith.addf %105, %107 : vector<8x256xf32>
    %109 = math.tanh %108 : vector<8x256xf32>
    %110 = vector.extract_strided_slice %109 {offsets = [0, 0], sizes = [8, 32], strides = [1, 1]} : vector<8x256xf32> to vector<8x32xf32>
    %111 = vector.extract_strided_slice %109 {offsets = [0, 128], sizes = [8, 32], strides = [1, 1]} : vector<8x256xf32> to vector<8x32xf32>
    %112 = arith.addi %0, %c1_i32 : i32
    %113 = arith.index_cast %112 : i32 to index
    %114 = memref.load %arg2[%113] : memref<8xf32, #tpu.memory_space<smem>>
    %115 = vector.broadcast %114 : f32 to vector<8x32xf32>
    %116 = arith.mulf %110, %115 : vector<8x32xf32>
    %117 = arith.addf %61, %116 : vector<8x32xf32>
    %118 = arith.index_cast %c1_i32 : i32 to index
    %c0_57 = arith.constant 0 : index
    %c0_58 = arith.constant 0 : index
    %119 = vector.load %arg4[%118, %c0_57, %c0_58] : memref<8x8x32xf32, #tpu.memory_space<vmem>>, vector<1x8x32xf32>
    %120 = vector.shape_cast %119 : vector<1x8x32xf32> to vector<8x32xf32>
    %121 = arith.mulf %111, %120 : vector<8x32xf32>
    %122 = arith.addf %117, %121 : vector<8x32xf32>
    %123 = arith.index_cast %c1_i32 : i32 to index
    %c0_59 = arith.constant 0 : index
    %c0_60 = arith.constant 0 : index
    %124 = vector.load %arg13[%123, %c0_59, %c0_60] : memref<8x8x32xf32, #tpu.memory_space<vmem>>, vector<1x8x32xf32>
    %125 = vector.shape_cast %124 : vector<1x8x32xf32> to vector<8x32xf32>
    %126 = vector.shape_cast %122 : vector<8x32xf32> to vector<1x8x32xf32>
    tpu.vector_store %arg13[%123, %c0_59, %c0_60], %126 {strides = array<i32>} : memref<8x8x32xf32, #tpu.memory_space<vmem>>, vector<1x8x32xf32>,
    %c2_i32 = arith.constant 2 : i32
    %c0_61 = arith.constant 0 : index
    %c0_62 = arith.constant 0 : index
    %127 = vector.load %arg8[%c0_61, %c0_62] : memref<32x64xf32, #tpu.memory_space<vmem>>, vector<32x64xf32>
    %cst_63 = arith.constant dense<0.000000e+00> : vector<8x64xf32>
    %128 = tpu.matmul %122, %127, %cst_63 {dimension_numbers = #tpu.dot_dimension_numbers<[1], [0], [0], [1], [0, 0, 1, 1], [], []>} : vector<8x32xf32>, vector<32x64xf32>, vector<8x64xf32> -> vector<8x64xf32>
    %129 = arith.index_cast %c2_i32 : i32 to index
    %c0_64 = arith.constant 0 : index
    %130 = vector.load %arg5[%129, %c0_64] : memref<8x64xf32, #tpu.memory_space<vmem>>, vector<1x64xf32>
    %131 = vector.broadcast %130 : vector<1x64xf32> to vector<8x64xf32>
    %132 = arith.addf %128, %131 : vector<8x64xf32>
    %133 = arith.negf %132 : vector<8x64xf32>
    %134 = math.exp %133 : vector<8x64xf32>
    %cst_65 = arith.constant 1.000000e+00 : f32
    %135 = vector.broadcast %cst_65 : f32 to vector<8x64xf32>
    %136 = arith.addf %135, %134 : vector<8x64xf32>
    %137 = arith.divf %135, %136 : vector<8x64xf32>
    %138 = arith.mulf %132, %137 : vector<8x64xf32>
    %c0_66 = arith.constant 0 : index
    %c0_67 = arith.constant 0 : index
    %c0_68 = arith.constant 0 : index
    %139 = vector.load %arg9[%c0_66, %c0_67, %c0_68] : memref<2x64x64xf32, #tpu.memory_space<vmem>>, vector<1x64x64xf32>
    %140 = vector.shape_cast %139 : vector<1x64x64xf32> to vector<64x64xf32>
    %cst_69 = arith.constant dense<0.000000e+00> : vector<8x64xf32>
    %141 = tpu.matmul %138, %140, %cst_69 {dimension_numbers = #tpu.dot_dimension_numbers<[1], [0], [0], [1], [0, 0, 1, 1], [], []>} : vector<8x64xf32>, vector<64x64xf32>, vector<8x64xf32> -> vector<8x64xf32>
    %c0_70 = arith.constant 0 : index
    %c0_71 = arith.constant 0 : index
    %c0_72 = arith.constant 0 : index
    %142 = vector.load %arg10[%c0_70, %c0_71, %c0_72] : memref<2x1x64xf32, #tpu.memory_space<vmem>>, vector<1x1x64xf32>
    %143 = vector.shape_cast %142 : vector<1x1x64xf32> to vector<1x64xf32>
    %144 = vector.broadcast %143 : vector<1x64xf32> to vector<8x64xf32>
    %145 = arith.addf %141, %144 : vector<8x64xf32>
    %146 = arith.negf %145 : vector<8x64xf32>
    %147 = math.exp %146 : vector<8x64xf32>
    %cst_73 = arith.constant 1.000000e+00 : f32
    %148 = vector.broadcast %cst_73 : f32 to vector<8x64xf32>
    %149 = arith.addf %148, %147 : vector<8x64xf32>
    %150 = arith.divf %148, %149 : vector<8x64xf32>
    %151 = arith.mulf %145, %150 : vector<8x64xf32>
    %c1_74 = arith.constant 1 : index
    %c0_75 = arith.constant 0 : index
    %c0_76 = arith.constant 0 : index
    %152 = vector.load %arg9[%c1_74, %c0_75, %c0_76] : memref<2x64x64xf32, #tpu.memory_space<vmem>>, vector<1x64x64xf32>
    %153 = vector.shape_cast %152 : vector<1x64x64xf32> to vector<64x64xf32>
    %cst_77 = arith.constant dense<0.000000e+00> : vector<8x64xf32>
    %154 = tpu.matmul %151, %153, %cst_77 {dimension_numbers = #tpu.dot_dimension_numbers<[1], [0], [0], [1], [0, 0, 1, 1], [], []>} : vector<8x64xf32>, vector<64x64xf32>, vector<8x64xf32> -> vector<8x64xf32>
    %c1_78 = arith.constant 1 : index
    %c0_79 = arith.constant 0 : index
    %c0_80 = arith.constant 0 : index
    %155 = vector.load %arg10[%c1_78, %c0_79, %c0_80] : memref<2x1x64xf32, #tpu.memory_space<vmem>>, vector<1x1x64xf32>
    %156 = vector.shape_cast %155 : vector<1x1x64xf32> to vector<1x64xf32>
    %157 = vector.broadcast %156 : vector<1x64xf32> to vector<8x64xf32>
    %158 = arith.addf %154, %157 : vector<8x64xf32>
    %159 = arith.negf %158 : vector<8x64xf32>
    %160 = math.exp %159 : vector<8x64xf32>
    %cst_81 = arith.constant 1.000000e+00 : f32
    %161 = vector.broadcast %cst_81 : f32 to vector<8x64xf32>
    %162 = arith.addf %161, %160 : vector<8x64xf32>
    %163 = arith.divf %161, %162 : vector<8x64xf32>
    %164 = arith.mulf %158, %163 : vector<8x64xf32>
    %c0_82 = arith.constant 0 : index
    %c0_83 = arith.constant 0 : index
    %165 = vector.load %arg11[%c0_82, %c0_83] : memref<64x256xf32, #tpu.memory_space<vmem>>, vector<64x256xf32>
    %cst_84 = arith.constant dense<0.000000e+00> : vector<8x256xf32>
    %166 = tpu.matmul %164, %165, %cst_84 {dimension_numbers = #tpu.dot_dimension_numbers<[1], [0], [0], [1], [0, 0, 1, 1], [], []>} : vector<8x64xf32>, vector<64x256xf32>, vector<8x256xf32> -> vector<8x256xf32>
    %c0_85 = arith.constant 0 : index
    %c0_86 = arith.constant 0 : index
    %167 = vector.load %arg12[%c0_85, %c0_86] : memref<1x256xf32, #tpu.memory_space<vmem>>, vector<1x256xf32>
    %168 = vector.broadcast %167 : vector<1x256xf32> to vector<8x256xf32>
    %169 = arith.addf %166, %168 : vector<8x256xf32>
    %170 = math.tanh %169 : vector<8x256xf32>
    %171 = vector.extract_strided_slice %170 {offsets = [0, 0], sizes = [8, 32], strides = [1, 1]} : vector<8x256xf32> to vector<8x32xf32>
    %172 = vector.extract_strided_slice %170 {offsets = [0, 128], sizes = [8, 32], strides = [1, 1]} : vector<8x256xf32> to vector<8x32xf32>
    %173 = arith.addi %0, %c2_i32 : i32
    %174 = arith.index_cast %173 : i32 to index
    %175 = memref.load %arg2[%174] : memref<8xf32, #tpu.memory_space<smem>>
    %176 = vector.broadcast %175 : f32 to vector<8x32xf32>
    %177 = arith.mulf %171, %176 : vector<8x32xf32>
    %178 = arith.addf %122, %177 : vector<8x32xf32>
    %179 = arith.index_cast %c2_i32 : i32 to index
    %c0_87 = arith.constant 0 : index
    %c0_88 = arith.constant 0 : index
    %180 = vector.load %arg4[%179, %c0_87, %c0_88] : memref<8x8x32xf32, #tpu.memory_space<vmem>>, vector<1x8x32xf32>
    %181 = vector.shape_cast %180 : vector<1x8x32xf32> to vector<8x32xf32>
    %182 = arith.mulf %172, %181 : vector<8x32xf32>
    %183 = arith.addf %178, %182 : vector<8x32xf32>
    %184 = arith.index_cast %c2_i32 : i32 to index
    %c0_89 = arith.constant 0 : index
    %c0_90 = arith.constant 0 : index
    %185 = vector.load %arg13[%184, %c0_89, %c0_90] : memref<8x8x32xf32, #tpu.memory_space<vmem>>, vector<1x8x32xf32>
    %186 = vector.shape_cast %185 : vector<1x8x32xf32> to vector<8x32xf32>
    %187 = vector.shape_cast %183 : vector<8x32xf32> to vector<1x8x32xf32>
    tpu.vector_store %arg13[%184, %c0_89, %c0_90], %187 {strides = array<i32>} : memref<8x8x32xf32, #tpu.memory_space<vmem>>, vector<1x8x32xf32>,
    %c3_i32 = arith.constant 3 : i32
    %c0_91 = arith.constant 0 : index
    %c0_92 = arith.constant 0 : index
    %188 = vector.load %arg8[%c0_91, %c0_92] : memref<32x64xf32, #tpu.memory_space<vmem>>, vector<32x64xf32>
    %cst_93 = arith.constant dense<0.000000e+00> : vector<8x64xf32>
    %189 = tpu.matmul %183, %188, %cst_93 {dimension_numbers = #tpu.dot_dimension_numbers<[1], [0], [0], [1], [0, 0, 1, 1], [], []>} : vector<8x32xf32>, vector<32x64xf32>, vector<8x64xf32> -> vector<8x64xf32>
    %190 = arith.index_cast %c3_i32 : i32 to index
    %c0_94 = arith.constant 0 : index
    %191 = vector.load %arg5[%190, %c0_94] : memref<8x64xf32, #tpu.memory_space<vmem>>, vector<1x64xf32>
    %192 = vector.broadcast %191 : vector<1x64xf32> to vector<8x64xf32>
    %193 = arith.addf %189, %192 : vector<8x64xf32>
    %194 = arith.negf %193 : vector<8x64xf32>
    %195 = math.exp %194 : vector<8x64xf32>
    %cst_95 = arith.constant 1.000000e+00 : f32
    %196 = vector.broadcast %cst_95 : f32 to vector<8x64xf32>
    %197 = arith.addf %196, %195 : vector<8x64xf32>
    %198 = arith.divf %196, %197 : vector<8x64xf32>
    %199 = arith.mulf %193, %198 : vector<8x64xf32>
    %c0_96 = arith.constant 0 : index
    %c0_97 = arith.constant 0 : index
    %c0_98 = arith.constant 0 : index
    %200 = vector.load %arg9[%c0_96, %c0_97, %c0_98] : memref<2x64x64xf32, #tpu.memory_space<vmem>>, vector<1x64x64xf32>
    %201 = vector.shape_cast %200 : vector<1x64x64xf32> to vector<64x64xf32>
    %cst_99 = arith.constant dense<0.000000e+00> : vector<8x64xf32>
    %202 = tpu.matmul %199, %201, %cst_99 {dimension_numbers = #tpu.dot_dimension_numbers<[1], [0], [0], [1], [0, 0, 1, 1], [], []>} : vector<8x64xf32>, vector<64x64xf32>, vector<8x64xf32> -> vector<8x64xf32>
    %c0_100 = arith.constant 0 : index
    %c0_101 = arith.constant 0 : index
    %c0_102 = arith.constant 0 : index
    %203 = vector.load %arg10[%c0_100, %c0_101, %c0_102] : memref<2x1x64xf32, #tpu.memory_space<vmem>>, vector<1x1x64xf32>
    %204 = vector.shape_cast %203 : vector<1x1x64xf32> to vector<1x64xf32>
    %205 = vector.broadcast %204 : vector<1x64xf32> to vector<8x64xf32>
    %206 = arith.addf %202, %205 : vector<8x64xf32>
    %207 = arith.negf %206 : vector<8x64xf32>
    %208 = math.exp %207 : vector<8x64xf32>
    %cst_103 = arith.constant 1.000000e+00 : f32
    %209 = vector.broadcast %cst_103 : f32 to vector<8x64xf32>
    %210 = arith.addf %209, %208 : vector<8x64xf32>
    %211 = arith.divf %209, %210 : vector<8x64xf32>
    %212 = arith.mulf %206, %211 : vector<8x64xf32>
    %c1_104 = arith.constant 1 : index
    %c0_105 = arith.constant 0 : index
    %c0_106 = arith.constant 0 : index
    %213 = vector.load %arg9[%c1_104, %c0_105, %c0_106] : memref<2x64x64xf32, #tpu.memory_space<vmem>>, vector<1x64x64xf32>
    %214 = vector.shape_cast %213 : vector<1x64x64xf32> to vector<64x64xf32>
    %cst_107 = arith.constant dense<0.000000e+00> : vector<8x64xf32>
    %215 = tpu.matmul %212, %214, %cst_107 {dimension_numbers = #tpu.dot_dimension_numbers<[1], [0], [0], [1], [0, 0, 1, 1], [], []>} : vector<8x64xf32>, vector<64x64xf32>, vector<8x64xf32> -> vector<8x64xf32>
    %c1_108 = arith.constant 1 : index
    %c0_109 = arith.constant 0 : index
    %c0_110 = arith.constant 0 : index
    %216 = vector.load %arg10[%c1_108, %c0_109, %c0_110] : memref<2x1x64xf32, #tpu.memory_space<vmem>>, vector<1x1x64xf32>
    %217 = vector.shape_cast %216 : vector<1x1x64xf32> to vector<1x64xf32>
    %218 = vector.broadcast %217 : vector<1x64xf32> to vector<8x64xf32>
    %219 = arith.addf %215, %218 : vector<8x64xf32>
    %220 = arith.negf %219 : vector<8x64xf32>
    %221 = math.exp %220 : vector<8x64xf32>
    %cst_111 = arith.constant 1.000000e+00 : f32
    %222 = vector.broadcast %cst_111 : f32 to vector<8x64xf32>
    %223 = arith.addf %222, %221 : vector<8x64xf32>
    %224 = arith.divf %222, %223 : vector<8x64xf32>
    %225 = arith.mulf %219, %224 : vector<8x64xf32>
    %c0_112 = arith.constant 0 : index
    %c0_113 = arith.constant 0 : index
    %226 = vector.load %arg11[%c0_112, %c0_113] : memref<64x256xf32, #tpu.memory_space<vmem>>, vector<64x256xf32>
    %cst_114 = arith.constant dense<0.000000e+00> : vector<8x256xf32>
    %227 = tpu.matmul %225, %226, %cst_114 {dimension_numbers = #tpu.dot_dimension_numbers<[1], [0], [0], [1], [0, 0, 1, 1], [], []>} : vector<8x64xf32>, vector<64x256xf32>, vector<8x256xf32> -> vector<8x256xf32>
    %c0_115 = arith.constant 0 : index
    %c0_116 = arith.constant 0 : index
    %228 = vector.load %arg12[%c0_115, %c0_116] : memref<1x256xf32, #tpu.memory_space<vmem>>, vector<1x256xf32>
    %229 = vector.broadcast %228 : vector<1x256xf32> to vector<8x256xf32>
    %230 = arith.addf %227, %229 : vector<8x256xf32>
    %231 = math.tanh %230 : vector<8x256xf32>
    %232 = vector.extract_strided_slice %231 {offsets = [0, 0], sizes = [8, 32], strides = [1, 1]} : vector<8x256xf32> to vector<8x32xf32>
    %233 = vector.extract_strided_slice %231 {offsets = [0, 128], sizes = [8, 32], strides = [1, 1]} : vector<8x256xf32> to vector<8x32xf32>
    %234 = arith.addi %0, %c3_i32 : i32
    %235 = arith.index_cast %234 : i32 to index
    %236 = memref.load %arg2[%235] : memref<8xf32, #tpu.memory_space<smem>>
    %237 = vector.broadcast %236 : f32 to vector<8x32xf32>
    %238 = arith.mulf %232, %237 : vector<8x32xf32>
    %239 = arith.addf %183, %238 : vector<8x32xf32>
    %240 = arith.index_cast %c3_i32 : i32 to index
    %c0_117 = arith.constant 0 : index
    %c0_118 = arith.constant 0 : index
    %241 = vector.load %arg4[%240, %c0_117, %c0_118] : memref<8x8x32xf32, #tpu.memory_space<vmem>>, vector<1x8x32xf32>
    %242 = vector.shape_cast %241 : vector<1x8x32xf32> to vector<8x32xf32>
    %243 = arith.mulf %233, %242 : vector<8x32xf32>
    %244 = arith.addf %239, %243 : vector<8x32xf32>
    %245 = arith.index_cast %c3_i32 : i32 to index
    %c0_119 = arith.constant 0 : index
    %c0_120 = arith.constant 0 : index
    %246 = vector.load %arg13[%245, %c0_119, %c0_120] : memref<8x8x32xf32, #tpu.memory_space<vmem>>, vector<1x8x32xf32>
    %247 = vector.shape_cast %246 : vector<1x8x32xf32> to vector<8x32xf32>
    %248 = vector.shape_cast %244 : vector<8x32xf32> to vector<1x8x32xf32>
    tpu.vector_store %arg13[%245, %c0_119, %c0_120], %248 {strides = array<i32>} : memref<8x8x32xf32, #tpu.memory_space<vmem>>, vector<1x8x32xf32>,
    %c4_i32 = arith.constant 4 : i32
    %c0_121 = arith.constant 0 : index
    %c0_122 = arith.constant 0 : index
    %249 = vector.load %arg8[%c0_121, %c0_122] : memref<32x64xf32, #tpu.memory_space<vmem>>, vector<32x64xf32>
    %cst_123 = arith.constant dense<0.000000e+00> : vector<8x64xf32>
    %250 = tpu.matmul %244, %249, %cst_123 {dimension_numbers = #tpu.dot_dimension_numbers<[1], [0], [0], [1], [0, 0, 1, 1], [], []>} : vector<8x32xf32>, vector<32x64xf32>, vector<8x64xf32> -> vector<8x64xf32>
    %251 = arith.index_cast %c4_i32 : i32 to index
    %c0_124 = arith.constant 0 : index
    %252 = vector.load %arg5[%251, %c0_124] : memref<8x64xf32, #tpu.memory_space<vmem>>, vector<1x64xf32>
    %253 = vector.broadcast %252 : vector<1x64xf32> to vector<8x64xf32>
    %254 = arith.addf %250, %253 : vector<8x64xf32>
    %255 = arith.negf %254 : vector<8x64xf32>
    %256 = math.exp %255 : vector<8x64xf32>
    %cst_125 = arith.constant 1.000000e+00 : f32
    %257 = vector.broadcast %cst_125 : f32 to vector<8x64xf32>
    %258 = arith.addf %257, %256 : vector<8x64xf32>
    %259 = arith.divf %257, %258 : vector<8x64xf32>
    %260 = arith.mulf %254, %259 : vector<8x64xf32>
    %c0_126 = arith.constant 0 : index
    %c0_127 = arith.constant 0 : index
    %c0_128 = arith.constant 0 : index
    %261 = vector.load %arg9[%c0_126, %c0_127, %c0_128] : memref<2x64x64xf32, #tpu.memory_space<vmem>>, vector<1x64x64xf32>
    %262 = vector.shape_cast %261 : vector<1x64x64xf32> to vector<64x64xf32>
    %cst_129 = arith.constant dense<0.000000e+00> : vector<8x64xf32>
    %263 = tpu.matmul %260, %262, %cst_129 {dimension_numbers = #tpu.dot_dimension_numbers<[1], [0], [0], [1], [0, 0, 1, 1], [], []>} : vector<8x64xf32>, vector<64x64xf32>, vector<8x64xf32> -> vector<8x64xf32>
    %c0_130 = arith.constant 0 : index
    %c0_131 = arith.constant 0 : index
    %c0_132 = arith.constant 0 : index
    %264 = vector.load %arg10[%c0_130, %c0_131, %c0_132] : memref<2x1x64xf32, #tpu.memory_space<vmem>>, vector<1x1x64xf32>
    %265 = vector.shape_cast %264 : vector<1x1x64xf32> to vector<1x64xf32>
    %266 = vector.broadcast %265 : vector<1x64xf32> to vector<8x64xf32>
    %267 = arith.addf %263, %266 : vector<8x64xf32>
    %268 = arith.negf %267 : vector<8x64xf32>
    %269 = math.exp %268 : vector<8x64xf32>
    %cst_133 = arith.constant 1.000000e+00 : f32
    %270 = vector.broadcast %cst_133 : f32 to vector<8x64xf32>
    %271 = arith.addf %270, %269 : vector<8x64xf32>
    %272 = arith.divf %270, %271 : vector<8x64xf32>
    %273 = arith.mulf %267, %272 : vector<8x64xf32>
    %c1_134 = arith.constant 1 : index
    %c0_135 = arith.constant 0 : index
    %c0_136 = arith.constant 0 : index
    %274 = vector.load %arg9[%c1_134, %c0_135, %c0_136] : memref<2x64x64xf32, #tpu.memory_space<vmem>>, vector<1x64x64xf32>
    %275 = vector.shape_cast %274 : vector<1x64x64xf32> to vector<64x64xf32>
    %cst_137 = arith.constant dense<0.000000e+00> : vector<8x64xf32>
    %276 = tpu.matmul %273, %275, %cst_137 {dimension_numbers = #tpu.dot_dimension_numbers<[1], [0], [0], [1], [0, 0, 1, 1], [], []>} : vector<8x64xf32>, vector<64x64xf32>, vector<8x64xf32> -> vector<8x64xf32>
    %c1_138 = arith.constant 1 : index
    %c0_139 = arith.constant 0 : index
    %c0_140 = arith.constant 0 : index
    %277 = vector.load %arg10[%c1_138, %c0_139, %c0_140] : memref<2x1x64xf32, #tpu.memory_space<vmem>>, vector<1x1x64xf32>
    %278 = vector.shape_cast %277 : vector<1x1x64xf32> to vector<1x64xf32>
    %279 = vector.broadcast %278 : vector<1x64xf32> to vector<8x64xf32>
    %280 = arith.addf %276, %279 : vector<8x64xf32>
    %281 = arith.negf %280 : vector<8x64xf32>
    %282 = math.exp %281 : vector<8x64xf32>
    %cst_141 = arith.constant 1.000000e+00 : f32
    %283 = vector.broadcast %cst_141 : f32 to vector<8x64xf32>
    %284 = arith.addf %283, %282 : vector<8x64xf32>
    %285 = arith.divf %283, %284 : vector<8x64xf32>
    %286 = arith.mulf %280, %285 : vector<8x64xf32>
    %c0_142 = arith.constant 0 : index
    %c0_143 = arith.constant 0 : index
    %287 = vector.load %arg11[%c0_142, %c0_143] : memref<64x256xf32, #tpu.memory_space<vmem>>, vector<64x256xf32>
    %cst_144 = arith.constant dense<0.000000e+00> : vector<8x256xf32>
    %288 = tpu.matmul %286, %287, %cst_144 {dimension_numbers = #tpu.dot_dimension_numbers<[1], [0], [0], [1], [0, 0, 1, 1], [], []>} : vector<8x64xf32>, vector<64x256xf32>, vector<8x256xf32> -> vector<8x256xf32>
    %c0_145 = arith.constant 0 : index
    %c0_146 = arith.constant 0 : index
    %289 = vector.load %arg12[%c0_145, %c0_146] : memref<1x256xf32, #tpu.memory_space<vmem>>, vector<1x256xf32>
    %290 = vector.broadcast %289 : vector<1x256xf32> to vector<8x256xf32>
    %291 = arith.addf %288, %290 : vector<8x256xf32>
    %292 = math.tanh %291 : vector<8x256xf32>
    %293 = vector.extract_strided_slice %292 {offsets = [0, 0], sizes = [8, 32], strides = [1, 1]} : vector<8x256xf32> to vector<8x32xf32>
    %294 = vector.extract_strided_slice %292 {offsets = [0, 128], sizes = [8, 32], strides = [1, 1]} : vector<8x256xf32> to vector<8x32xf32>
    %295 = arith.addi %0, %c4_i32 : i32
    %296 = arith.index_cast %295 : i32 to index
    %297 = memref.load %arg2[%296] : memref<8xf32, #tpu.memory_space<smem>>
    %298 = vector.broadcast %297 : f32 to vector<8x32xf32>
    %299 = arith.mulf %293, %298 : vector<8x32xf32>
    %300 = arith.addf %244, %299 : vector<8x32xf32>
    %301 = arith.index_cast %c4_i32 : i32 to index
    %c0_147 = arith.constant 0 : index
    %c0_148 = arith.constant 0 : index
    %302 = vector.load %arg4[%301, %c0_147, %c0_148] : memref<8x8x32xf32, #tpu.memory_space<vmem>>, vector<1x8x32xf32>
    %303 = vector.shape_cast %302 : vector<1x8x32xf32> to vector<8x32xf32>
    %304 = arith.mulf %294, %303 : vector<8x32xf32>
    %305 = arith.addf %300, %304 : vector<8x32xf32>
    %306 = arith.index_cast %c4_i32 : i32 to index
    %c0_149 = arith.constant 0 : index
    %c0_150 = arith.constant 0 : index
    %307 = vector.load %arg13[%306, %c0_149, %c0_150] : memref<8x8x32xf32, #tpu.memory_space<vmem>>, vector<1x8x32xf32>
    %308 = vector.shape_cast %307 : vector<1x8x32xf32> to vector<8x32xf32>
    %309 = vector.shape_cast %305 : vector<8x32xf32> to vector<1x8x32xf32>
    tpu.vector_store %arg13[%306, %c0_149, %c0_150], %309 {strides = array<i32>} : memref<8x8x32xf32, #tpu.memory_space<vmem>>, vector<1x8x32xf32>,
    %c5_i32 = arith.constant 5 : i32
    %c0_151 = arith.constant 0 : index
    %c0_152 = arith.constant 0 : index
    %310 = vector.load %arg8[%c0_151, %c0_152] : memref<32x64xf32, #tpu.memory_space<vmem>>, vector<32x64xf32>
    %cst_153 = arith.constant dense<0.000000e+00> : vector<8x64xf32>
    %311 = tpu.matmul %305, %310, %cst_153 {dimension_numbers = #tpu.dot_dimension_numbers<[1], [0], [0], [1], [0, 0, 1, 1], [], []>} : vector<8x32xf32>, vector<32x64xf32>, vector<8x64xf32> -> vector<8x64xf32>
    %312 = arith.index_cast %c5_i32 : i32 to index
    %c0_154 = arith.constant 0 : index
    %313 = vector.load %arg5[%312, %c0_154] : memref<8x64xf32, #tpu.memory_space<vmem>>, vector<1x64xf32>
    %314 = vector.broadcast %313 : vector<1x64xf32> to vector<8x64xf32>
    %315 = arith.addf %311, %314 : vector<8x64xf32>
    %316 = arith.negf %315 : vector<8x64xf32>
    %317 = math.exp %316 : vector<8x64xf32>
    %cst_155 = arith.constant 1.000000e+00 : f32
    %318 = vector.broadcast %cst_155 : f32 to vector<8x64xf32>
    %319 = arith.addf %318, %317 : vector<8x64xf32>
    %320 = arith.divf %318, %319 : vector<8x64xf32>
    %321 = arith.mulf %315, %320 : vector<8x64xf32>
    %c0_156 = arith.constant 0 : index
    %c0_157 = arith.constant 0 : index
    %c0_158 = arith.constant 0 : index
    %322 = vector.load %arg9[%c0_156, %c0_157, %c0_158] : memref<2x64x64xf32, #tpu.memory_space<vmem>>, vector<1x64x64xf32>
    %323 = vector.shape_cast %322 : vector<1x64x64xf32> to vector<64x64xf32>
    %cst_159 = arith.constant dense<0.000000e+00> : vector<8x64xf32>
    %324 = tpu.matmul %321, %323, %cst_159 {dimension_numbers = #tpu.dot_dimension_numbers<[1], [0], [0], [1], [0, 0, 1, 1], [], []>} : vector<8x64xf32>, vector<64x64xf32>, vector<8x64xf32> -> vector<8x64xf32>
    %c0_160 = arith.constant 0 : index
    %c0_161 = arith.constant 0 : index
    %c0_162 = arith.constant 0 : index
    %325 = vector.load %arg10[%c0_160, %c0_161, %c0_162] : memref<2x1x64xf32, #tpu.memory_space<vmem>>, vector<1x1x64xf32>
    %326 = vector.shape_cast %325 : vector<1x1x64xf32> to vector<1x64xf32>
    %327 = vector.broadcast %326 : vector<1x64xf32> to vector<8x64xf32>
    %328 = arith.addf %324, %327 : vector<8x64xf32>
    %329 = arith.negf %328 : vector<8x64xf32>
    %330 = math.exp %329 : vector<8x64xf32>
    %cst_163 = arith.constant 1.000000e+00 : f32
    %331 = vector.broadcast %cst_163 : f32 to vector<8x64xf32>
    %332 = arith.addf %331, %330 : vector<8x64xf32>
    %333 = arith.divf %331, %332 : vector<8x64xf32>
    %334 = arith.mulf %328, %333 : vector<8x64xf32>
    %c1_164 = arith.constant 1 : index
    %c0_165 = arith.constant 0 : index
    %c0_166 = arith.constant 0 : index
    %335 = vector.load %arg9[%c1_164, %c0_165, %c0_166] : memref<2x64x64xf32, #tpu.memory_space<vmem>>, vector<1x64x64xf32>
    %336 = vector.shape_cast %335 : vector<1x64x64xf32> to vector<64x64xf32>
    %cst_167 = arith.constant dense<0.000000e+00> : vector<8x64xf32>
    %337 = tpu.matmul %334, %336, %cst_167 {dimension_numbers = #tpu.dot_dimension_numbers<[1], [0], [0], [1], [0, 0, 1, 1], [], []>} : vector<8x64xf32>, vector<64x64xf32>, vector<8x64xf32> -> vector<8x64xf32>
    %c1_168 = arith.constant 1 : index
    %c0_169 = arith.constant 0 : index
    %c0_170 = arith.constant 0 : index
    %338 = vector.load %arg10[%c1_168, %c0_169, %c0_170] : memref<2x1x64xf32, #tpu.memory_space<vmem>>, vector<1x1x64xf32>
    %339 = vector.shape_cast %338 : vector<1x1x64xf32> to vector<1x64xf32>
    %340 = vector.broadcast %339 : vector<1x64xf32> to vector<8x64xf32>
    %341 = arith.addf %337, %340 : vector<8x64xf32>
    %342 = arith.negf %341 : vector<8x64xf32>
    %343 = math.exp %342 : vector<8x64xf32>
    %cst_171 = arith.constant 1.000000e+00 : f32
    %344 = vector.broadcast %cst_171 : f32 to vector<8x64xf32>
    %345 = arith.addf %344, %343 : vector<8x64xf32>
    %346 = arith.divf %344, %345 : vector<8x64xf32>
    %347 = arith.mulf %341, %346 : vector<8x64xf32>
    %c0_172 = arith.constant 0 : index
    %c0_173 = arith.constant 0 : index
    %348 = vector.load %arg11[%c0_172, %c0_173] : memref<64x256xf32, #tpu.memory_space<vmem>>, vector<64x256xf32>
    %cst_174 = arith.constant dense<0.000000e+00> : vector<8x256xf32>
    %349 = tpu.matmul %347, %348, %cst_174 {dimension_numbers = #tpu.dot_dimension_numbers<[1], [0], [0], [1], [0, 0, 1, 1], [], []>} : vector<8x64xf32>, vector<64x256xf32>, vector<8x256xf32> -> vector<8x256xf32>
    %c0_175 = arith.constant 0 : index
    %c0_176 = arith.constant 0 : index
    %350 = vector.load %arg12[%c0_175, %c0_176] : memref<1x256xf32, #tpu.memory_space<vmem>>, vector<1x256xf32>
    %351 = vector.broadcast %350 : vector<1x256xf32> to vector<8x256xf32>
    %352 = arith.addf %349, %351 : vector<8x256xf32>
    %353 = math.tanh %352 : vector<8x256xf32>
    %354 = vector.extract_strided_slice %353 {offsets = [0, 0], sizes = [8, 32], strides = [1, 1]} : vector<8x256xf32> to vector<8x32xf32>
    %355 = vector.extract_strided_slice %353 {offsets = [0, 128], sizes = [8, 32], strides = [1, 1]} : vector<8x256xf32> to vector<8x32xf32>
    %356 = arith.addi %0, %c5_i32 : i32
    %357 = arith.index_cast %356 : i32 to index
    %358 = memref.load %arg2[%357] : memref<8xf32, #tpu.memory_space<smem>>
    %359 = vector.broadcast %358 : f32 to vector<8x32xf32>
    %360 = arith.mulf %354, %359 : vector<8x32xf32>
    %361 = arith.addf %305, %360 : vector<8x32xf32>
    %362 = arith.index_cast %c5_i32 : i32 to index
    %c0_177 = arith.constant 0 : index
    %c0_178 = arith.constant 0 : index
    %363 = vector.load %arg4[%362, %c0_177, %c0_178] : memref<8x8x32xf32, #tpu.memory_space<vmem>>, vector<1x8x32xf32>
    %364 = vector.shape_cast %363 : vector<1x8x32xf32> to vector<8x32xf32>
    %365 = arith.mulf %355, %364 : vector<8x32xf32>
    %366 = arith.addf %361, %365 : vector<8x32xf32>
    %367 = arith.index_cast %c5_i32 : i32 to index
    %c0_179 = arith.constant 0 : index
    %c0_180 = arith.constant 0 : index
    %368 = vector.load %arg13[%367, %c0_179, %c0_180] : memref<8x8x32xf32, #tpu.memory_space<vmem>>, vector<1x8x32xf32>
    %369 = vector.shape_cast %368 : vector<1x8x32xf32> to vector<8x32xf32>
    %370 = vector.shape_cast %366 : vector<8x32xf32> to vector<1x8x32xf32>
    tpu.vector_store %arg13[%367, %c0_179, %c0_180], %370 {strides = array<i32>} : memref<8x8x32xf32, #tpu.memory_space<vmem>>, vector<1x8x32xf32>,
    %c6_i32 = arith.constant 6 : i32
    %c0_181 = arith.constant 0 : index
    %c0_182 = arith.constant 0 : index
    %371 = vector.load %arg8[%c0_181, %c0_182] : memref<32x64xf32, #tpu.memory_space<vmem>>, vector<32x64xf32>
    %cst_183 = arith.constant dense<0.000000e+00> : vector<8x64xf32>
    %372 = tpu.matmul %366, %371, %cst_183 {dimension_numbers = #tpu.dot_dimension_numbers<[1], [0], [0], [1], [0, 0, 1, 1], [], []>} : vector<8x32xf32>, vector<32x64xf32>, vector<8x64xf32> -> vector<8x64xf32>
    %373 = arith.index_cast %c6_i32 : i32 to index
    %c0_184 = arith.constant 0 : index
    %374 = vector.load %arg5[%373, %c0_184] : memref<8x64xf32, #tpu.memory_space<vmem>>, vector<1x64xf32>
    %375 = vector.broadcast %374 : vector<1x64xf32> to vector<8x64xf32>
    %376 = arith.addf %372, %375 : vector<8x64xf32>
    %377 = arith.negf %376 : vector<8x64xf32>
    %378 = math.exp %377 : vector<8x64xf32>
    %cst_185 = arith.constant 1.000000e+00 : f32
    %379 = vector.broadcast %cst_185 : f32 to vector<8x64xf32>
    %380 = arith.addf %379, %378 : vector<8x64xf32>
    %381 = arith.divf %379, %380 : vector<8x64xf32>
    %382 = arith.mulf %376, %381 : vector<8x64xf32>
    %c0_186 = arith.constant 0 : index
    %c0_187 = arith.constant 0 : index
    %c0_188 = arith.constant 0 : index
    %383 = vector.load %arg9[%c0_186, %c0_187, %c0_188] : memref<2x64x64xf32, #tpu.memory_space<vmem>>, vector<1x64x64xf32>
    %384 = vector.shape_cast %383 : vector<1x64x64xf32> to vector<64x64xf32>
    %cst_189 = arith.constant dense<0.000000e+00> : vector<8x64xf32>
    %385 = tpu.matmul %382, %384, %cst_189 {dimension_numbers = #tpu.dot_dimension_numbers<[1], [0], [0], [1], [0, 0, 1, 1], [], []>} : vector<8x64xf32>, vector<64x64xf32>, vector<8x64xf32> -> vector<8x64xf32>
    %c0_190 = arith.constant 0 : index
    %c0_191 = arith.constant 0 : index
    %c0_192 = arith.constant 0 : index
    %386 = vector.load %arg10[%c0_190, %c0_191, %c0_192] : memref<2x1x64xf32, #tpu.memory_space<vmem>>, vector<1x1x64xf32>
    %387 = vector.shape_cast %386 : vector<1x1x64xf32> to vector<1x64xf32>
    %388 = vector.broadcast %387 : vector<1x64xf32> to vector<8x64xf32>
    %389 = arith.addf %385, %388 : vector<8x64xf32>
    %390 = arith.negf %389 : vector<8x64xf32>
    %391 = math.exp %390 : vector<8x64xf32>
    %cst_193 = arith.constant 1.000000e+00 : f32
    %392 = vector.broadcast %cst_193 : f32 to vector<8x64xf32>
    %393 = arith.addf %392, %391 : vector<8x64xf32>
    %394 = arith.divf %392, %393 : vector<8x64xf32>
    %395 = arith.mulf %389, %394 : vector<8x64xf32>
    %c1_194 = arith.constant 1 : index
    %c0_195 = arith.constant 0 : index
    %c0_196 = arith.constant 0 : index
    %396 = vector.load %arg9[%c1_194, %c0_195, %c0_196] : memref<2x64x64xf32, #tpu.memory_space<vmem>>, vector<1x64x64xf32>
    %397 = vector.shape_cast %396 : vector<1x64x64xf32> to vector<64x64xf32>
    %cst_197 = arith.constant dense<0.000000e+00> : vector<8x64xf32>
    %398 = tpu.matmul %395, %397, %cst_197 {dimension_numbers = #tpu.dot_dimension_numbers<[1], [0], [0], [1], [0, 0, 1, 1], [], []>} : vector<8x64xf32>, vector<64x64xf32>, vector<8x64xf32> -> vector<8x64xf32>
    %c1_198 = arith.constant 1 : index
    %c0_199 = arith.constant 0 : index
    %c0_200 = arith.constant 0 : index
    %399 = vector.load %arg10[%c1_198, %c0_199, %c0_200] : memref<2x1x64xf32, #tpu.memory_space<vmem>>, vector<1x1x64xf32>
    %400 = vector.shape_cast %399 : vector<1x1x64xf32> to vector<1x64xf32>
    %401 = vector.broadcast %400 : vector<1x64xf32> to vector<8x64xf32>
    %402 = arith.addf %398, %401 : vector<8x64xf32>
    %403 = arith.negf %402 : vector<8x64xf32>
    %404 = math.exp %403 : vector<8x64xf32>
    %cst_201 = arith.constant 1.000000e+00 : f32
    %405 = vector.broadcast %cst_201 : f32 to vector<8x64xf32>
    %406 = arith.addf %405, %404 : vector<8x64xf32>
    %407 = arith.divf %405, %406 : vector<8x64xf32>
    %408 = arith.mulf %402, %407 : vector<8x64xf32>
    %c0_202 = arith.constant 0 : index
    %c0_203 = arith.constant 0 : index
    %409 = vector.load %arg11[%c0_202, %c0_203] : memref<64x256xf32, #tpu.memory_space<vmem>>, vector<64x256xf32>
    %cst_204 = arith.constant dense<0.000000e+00> : vector<8x256xf32>
    %410 = tpu.matmul %408, %409, %cst_204 {dimension_numbers = #tpu.dot_dimension_numbers<[1], [0], [0], [1], [0, 0, 1, 1], [], []>} : vector<8x64xf32>, vector<64x256xf32>, vector<8x256xf32> -> vector<8x256xf32>
    %c0_205 = arith.constant 0 : index
    %c0_206 = arith.constant 0 : index
    %411 = vector.load %arg12[%c0_205, %c0_206] : memref<1x256xf32, #tpu.memory_space<vmem>>, vector<1x256xf32>
    %412 = vector.broadcast %411 : vector<1x256xf32> to vector<8x256xf32>
    %413 = arith.addf %410, %412 : vector<8x256xf32>
    %414 = math.tanh %413 : vector<8x256xf32>
    %415 = vector.extract_strided_slice %414 {offsets = [0, 0], sizes = [8, 32], strides = [1, 1]} : vector<8x256xf32> to vector<8x32xf32>
    %416 = vector.extract_strided_slice %414 {offsets = [0, 128], sizes = [8, 32], strides = [1, 1]} : vector<8x256xf32> to vector<8x32xf32>
    %417 = arith.addi %0, %c6_i32 : i32
    %418 = arith.index_cast %417 : i32 to index
    %419 = memref.load %arg2[%418] : memref<8xf32, #tpu.memory_space<smem>>
    %420 = vector.broadcast %419 : f32 to vector<8x32xf32>
    %421 = arith.mulf %415, %420 : vector<8x32xf32>
    %422 = arith.addf %366, %421 : vector<8x32xf32>
    %423 = arith.index_cast %c6_i32 : i32 to index
    %c0_207 = arith.constant 0 : index
    %c0_208 = arith.constant 0 : index
    %424 = vector.load %arg4[%423, %c0_207, %c0_208] : memref<8x8x32xf32, #tpu.memory_space<vmem>>, vector<1x8x32xf32>
    %425 = vector.shape_cast %424 : vector<1x8x32xf32> to vector<8x32xf32>
    %426 = arith.mulf %416, %425 : vector<8x32xf32>
    %427 = arith.addf %422, %426 : vector<8x32xf32>
    %428 = arith.index_cast %c6_i32 : i32 to index
    %c0_209 = arith.constant 0 : index
    %c0_210 = arith.constant 0 : index
    %429 = vector.load %arg13[%428, %c0_209, %c0_210] : memref<8x8x32xf32, #tpu.memory_space<vmem>>, vector<1x8x32xf32>
    %430 = vector.shape_cast %429 : vector<1x8x32xf32> to vector<8x32xf32>
    %431 = vector.shape_cast %427 : vector<8x32xf32> to vector<1x8x32xf32>
    tpu.vector_store %arg13[%428, %c0_209, %c0_210], %431 {strides = array<i32>} : memref<8x8x32xf32, #tpu.memory_space<vmem>>, vector<1x8x32xf32>,
    %c7_i32 = arith.constant 7 : i32
    %c0_211 = arith.constant 0 : index
    %c0_212 = arith.constant 0 : index
    %432 = vector.load %arg8[%c0_211, %c0_212] : memref<32x64xf32, #tpu.memory_space<vmem>>, vector<32x64xf32>
    %cst_213 = arith.constant dense<0.000000e+00> : vector<8x64xf32>
    %433 = tpu.matmul %427, %432, %cst_213 {dimension_numbers = #tpu.dot_dimension_numbers<[1], [0], [0], [1], [0, 0, 1, 1], [], []>} : vector<8x32xf32>, vector<32x64xf32>, vector<8x64xf32> -> vector<8x64xf32>
    %434 = arith.index_cast %c7_i32 : i32 to index
    %c0_214 = arith.constant 0 : index
    %435 = vector.load %arg5[%434, %c0_214] : memref<8x64xf32, #tpu.memory_space<vmem>>, vector<1x64xf32>
    %436 = vector.broadcast %435 : vector<1x64xf32> to vector<8x64xf32>
    %437 = arith.addf %433, %436 : vector<8x64xf32>
    %438 = arith.negf %437 : vector<8x64xf32>
    %439 = math.exp %438 : vector<8x64xf32>
    %cst_215 = arith.constant 1.000000e+00 : f32
    %440 = vector.broadcast %cst_215 : f32 to vector<8x64xf32>
    %441 = arith.addf %440, %439 : vector<8x64xf32>
    %442 = arith.divf %440, %441 : vector<8x64xf32>
    %443 = arith.mulf %437, %442 : vector<8x64xf32>
    %c0_216 = arith.constant 0 : index
    %c0_217 = arith.constant 0 : index
    %c0_218 = arith.constant 0 : index
    %444 = vector.load %arg9[%c0_216, %c0_217, %c0_218] : memref<2x64x64xf32, #tpu.memory_space<vmem>>, vector<1x64x64xf32>
    %445 = vector.shape_cast %444 : vector<1x64x64xf32> to vector<64x64xf32>
    %cst_219 = arith.constant dense<0.000000e+00> : vector<8x64xf32>
    %446 = tpu.matmul %443, %445, %cst_219 {dimension_numbers = #tpu.dot_dimension_numbers<[1], [0], [0], [1], [0, 0, 1, 1], [], []>} : vector<8x64xf32>, vector<64x64xf32>, vector<8x64xf32> -> vector<8x64xf32>
    %c0_220 = arith.constant 0 : index
    %c0_221 = arith.constant 0 : index
    %c0_222 = arith.constant 0 : index
    %447 = vector.load %arg10[%c0_220, %c0_221, %c0_222] : memref<2x1x64xf32, #tpu.memory_space<vmem>>, vector<1x1x64xf32>
    %448 = vector.shape_cast %447 : vector<1x1x64xf32> to vector<1x64xf32>
    %449 = vector.broadcast %448 : vector<1x64xf32> to vector<8x64xf32>
    %450 = arith.addf %446, %449 : vector<8x64xf32>
    %451 = arith.negf %450 : vector<8x64xf32>
    %452 = math.exp %451 : vector<8x64xf32>
    %cst_223 = arith.constant 1.000000e+00 : f32
    %453 = vector.broadcast %cst_223 : f32 to vector<8x64xf32>
    %454 = arith.addf %453, %452 : vector<8x64xf32>
    %455 = arith.divf %453, %454 : vector<8x64xf32>
    %456 = arith.mulf %450, %455 : vector<8x64xf32>
    %c1_224 = arith.constant 1 : index
    %c0_225 = arith.constant 0 : index
    %c0_226 = arith.constant 0 : index
    %457 = vector.load %arg9[%c1_224, %c0_225, %c0_226] : memref<2x64x64xf32, #tpu.memory_space<vmem>>, vector<1x64x64xf32>
    %458 = vector.shape_cast %457 : vector<1x64x64xf32> to vector<64x64xf32>
    %cst_227 = arith.constant dense<0.000000e+00> : vector<8x64xf32>
    %459 = tpu.matmul %456, %458, %cst_227 {dimension_numbers = #tpu.dot_dimension_numbers<[1], [0], [0], [1], [0, 0, 1, 1], [], []>} : vector<8x64xf32>, vector<64x64xf32>, vector<8x64xf32> -> vector<8x64xf32>
    %c1_228 = arith.constant 1 : index
    %c0_229 = arith.constant 0 : index
    %c0_230 = arith.constant 0 : index
    %460 = vector.load %arg10[%c1_228, %c0_229, %c0_230] : memref<2x1x64xf32, #tpu.memory_space<vmem>>, vector<1x1x64xf32>
    %461 = vector.shape_cast %460 : vector<1x1x64xf32> to vector<1x64xf32>
    %462 = vector.broadcast %461 : vector<1x64xf32> to vector<8x64xf32>
    %463 = arith.addf %459, %462 : vector<8x64xf32>
    %464 = arith.negf %463 : vector<8x64xf32>
    %465 = math.exp %464 : vector<8x64xf32>
    %cst_231 = arith.constant 1.000000e+00 : f32
    %466 = vector.broadcast %cst_231 : f32 to vector<8x64xf32>
    %467 = arith.addf %466, %465 : vector<8x64xf32>
    %468 = arith.divf %466, %467 : vector<8x64xf32>
    %469 = arith.mulf %463, %468 : vector<8x64xf32>
    %c0_232 = arith.constant 0 : index
    %c0_233 = arith.constant 0 : index
    %470 = vector.load %arg11[%c0_232, %c0_233] : memref<64x256xf32, #tpu.memory_space<vmem>>, vector<64x256xf32>
    %cst_234 = arith.constant dense<0.000000e+00> : vector<8x256xf32>
    %471 = tpu.matmul %469, %470, %cst_234 {dimension_numbers = #tpu.dot_dimension_numbers<[1], [0], [0], [1], [0, 0, 1, 1], [], []>} : vector<8x64xf32>, vector<64x256xf32>, vector<8x256xf32> -> vector<8x256xf32>
    %c0_235 = arith.constant 0 : index
    %c0_236 = arith.constant 0 : index
    %472 = vector.load %arg12[%c0_235, %c0_236] : memref<1x256xf32, #tpu.memory_space<vmem>>, vector<1x256xf32>
    %473 = vector.broadcast %472 : vector<1x256xf32> to vector<8x256xf32>
    %474 = arith.addf %471, %473 : vector<8x256xf32>
    %475 = math.tanh %474 : vector<8x256xf32>
    %476 = vector.extract_strided_slice %475 {offsets = [0, 0], sizes = [8, 32], strides = [1, 1]} : vector<8x256xf32> to vector<8x32xf32>
    %477 = vector.extract_strided_slice %475 {offsets = [0, 128], sizes = [8, 32], strides = [1, 1]} : vector<8x256xf32> to vector<8x32xf32>
    %478 = arith.addi %0, %c7_i32 : i32
    %479 = arith.index_cast %478 : i32 to index
    %480 = memref.load %arg2[%479] : memref<8xf32, #tpu.memory_space<smem>>
    %481 = vector.broadcast %480 : f32 to vector<8x32xf32>
    %482 = arith.mulf %476, %481 : vector<8x32xf32>
    %483 = arith.addf %427, %482 : vector<8x32xf32>
    %484 = arith.index_cast %c7_i32 : i32 to index
    %c0_237 = arith.constant 0 : index
    %c0_238 = arith.constant 0 : index
    %485 = vector.load %arg4[%484, %c0_237, %c0_238] : memref<8x8x32xf32, #tpu.memory_space<vmem>>, vector<1x8x32xf32>
    %486 = vector.shape_cast %485 : vector<1x8x32xf32> to vector<8x32xf32>
    %487 = arith.mulf %477, %486 : vector<8x32xf32>
    %488 = arith.addf %483, %487 : vector<8x32xf32>
    %489 = arith.index_cast %c7_i32 : i32 to index
    %c0_239 = arith.constant 0 : index
    %c0_240 = arith.constant 0 : index
    %490 = vector.load %arg13[%489, %c0_239, %c0_240] : memref<8x8x32xf32, #tpu.memory_space<vmem>>, vector<1x8x32xf32>
    %491 = vector.shape_cast %490 : vector<1x8x32xf32> to vector<8x32xf32>
    %492 = vector.shape_cast %488 : vector<8x32xf32> to vector<1x8x32xf32>
    tpu.vector_store %arg13[%489, %c0_239, %c0_240], %492 {strides = array<i32>} : memref<8x8x32xf32, #tpu.memory_space<vmem>>, vector<1x8x32xf32>,
    %c8_i32_241 = arith.constant 8 : i32
    %c0_242 = arith.constant 0 : index
    %c0_243 = arith.constant 0 : index
    %493 = vector.load %arg14[%c0_242, %c0_243] : memref<8x32xf32, #tpu.memory_space<vmem>>, vector<8x32xf32>
    tpu.vector_store %arg14[%c0_242, %c0_243], %488 {strides = array<i32>} : memref<8x32xf32, #tpu.memory_space<vmem>>, vector<8x32xf32>,
    return
  }
  func.func @transform_0(%arg0: i32, %arg1: i32, %arg2: memref<8xf32, #tpu.memory_space<smem>>) -> (i32, i32) {
    %c0_i32 = arith.constant 0 : i32
    %c0_i32_0 = arith.constant 0 : i32
    return %arg0, %c0_i32 : i32, i32
  }
  func.func @transform_1(%arg0: i32, %arg1: i32, %arg2: memref<8xf32, #tpu.memory_space<smem>>) -> (i32, i32, i32) {
    %c0_i32 = arith.constant 0 : i32
    %c0_i32_0 = arith.constant 0 : i32
    return %arg1, %arg0, %c0_i32 : i32, i32, i32
  }
  func.func @transform_2(%arg0: i32, %arg1: i32, %arg2: memref<8xf32, #tpu.memory_space<smem>>) -> (i32, i32) {
    %c0_i32 = arith.constant 0 : i32
    %c0_i32_0 = arith.constant 0 : i32
    return %arg1, %c0_i32 : i32, i32
  }
  func.func @transform_3(%arg0: i32, %arg1: i32, %arg2: memref<8xf32, #tpu.memory_space<smem>>) -> (i32, i32) {
    %c0_i32 = arith.constant 0 : i32
    %c0_i32_0 = arith.constant 0 : i32
    %c0_i32_1 = arith.constant 0 : i32
    return %c0_i32, %c0_i32_0 : i32, i32
  }
  func.func @transform_4(%arg0: i32, %arg1: i32, %arg2: memref<8xf32, #tpu.memory_space<smem>>) -> (i32, i32) {
    %c0_i32 = arith.constant 0 : i32
    %c0_i32_0 = arith.constant 0 : i32
    %c0_i32_1 = arith.constant 0 : i32
    return %c0_i32, %c0_i32_0 : i32, i32
  }
  func.func @transform_5(%arg0: i32, %arg1: i32, %arg2: memref<8xf32, #tpu.memory_space<smem>>) -> (i32, i32) {
    %c0_i32 = arith.constant 0 : i32
    %c0_i32_0 = arith.constant 0 : i32
    %c0_i32_1 = arith.constant 0 : i32
    return %c0_i32, %c0_i32_0 : i32, i32
  }
  func.func @transform_6(%arg0: i32, %arg1: i32, %arg2: memref<8xf32, #tpu.memory_space<smem>>) -> (i32, i32, i32) {
    %c0_i32 = arith.constant 0 : i32
    %c0_i32_0 = arith.constant 0 : i32
    %c0_i32_1 = arith.constant 0 : i32
    %c0_i32_2 = arith.constant 0 : i32
    return %c0_i32, %c0_i32_0, %c0_i32_1 : i32, i32, i32
  }
  func.func @transform_7(%arg0: i32, %arg1: i32, %arg2: memref<8xf32, #tpu.memory_space<smem>>) -> (i32, i32, i32) {
    %c0_i32 = arith.constant 0 : i32
    %c0_i32_0 = arith.constant 0 : i32
    %c0_i32_1 = arith.constant 0 : i32
    %c0_i32_2 = arith.constant 0 : i32
    return %c0_i32, %c0_i32_0, %c0_i32_1 : i32, i32, i32
  }
  func.func @transform_8(%arg0: i32, %arg1: i32, %arg2: memref<8xf32, #tpu.memory_space<smem>>) -> (i32, i32) {
    %c0_i32 = arith.constant 0 : i32
    %c0_i32_0 = arith.constant 0 : i32
    %c0_i32_1 = arith.constant 0 : i32
    return %c0_i32, %c0_i32_0 : i32, i32
  }
  func.func @transform_9(%arg0: i32, %arg1: i32, %arg2: memref<8xf32, #tpu.memory_space<smem>>) -> (i32, i32) {
    %c0_i32 = arith.constant 0 : i32
    %c0_i32_0 = arith.constant 0 : i32
    %c0_i32_1 = arith.constant 0 : i32
    return %c0_i32, %c0_i32_0 : i32, i32
  }
  func.func @transform_10(%arg0: i32, %arg1: i32, %arg2: memref<8xf32, #tpu.memory_space<smem>>) -> (i32, i32, i32) {
    %c0_i32 = arith.constant 0 : i32
    %c0_i32_0 = arith.constant 0 : i32
    return %arg1, %arg0, %c0_i32 : i32, i32, i32
  }
}

</mosaic_0001>

<llo_original>
// kernel: tpu_custom_call.1
$region0: #{tpu_custom_call.1}
  #allocation0 [shape = 'u32[]', space=smem, size = 0x4, offset = 0x4, fixed_abs, tag = 'smem constant byte address 0x4 - core index']
  #allocation1 [shape = 'u32[72,128]{1,0:T(1,128)}', space=vmem, size = 0x9000, scoped, tag = 'internal scratch']
  #allocation2 [shape = 'f32[8,32]{1,0:T(8,128)}', space=vmem, size = 0x1000, scoped, tag = 'scratch operand']
  #allocation3 [shape = 's32[1]{0}', space=sflag, size = 0x4, scoped, tag = 'scoped memory for tpu_custom_call.1']
  #allocation4 [shape = 'u8[512]{0}', space=smem, size = 0x200, scoped, tag = 'prefetched SMEM operand 0']
  %s0 = inlined_call_operand.hbm [shape: f32[8], index: 0, kind: input, shape index: {}]
  %s1 = inlined_call_operand.vmem [shape: f32[8,4], index: 1, kind: input, shape index: {}]
  %s2 = inlined_call_operand.hbm [shape: f32[8,8,32], index: 2, kind: input, shape index: {}]
  %s3 = inlined_call_operand.vmem [shape: f32[8,64], index: 3, kind: input, shape index: {}]
  %s4 = inlined_call_operand.vmem [shape: f32[4,32], index: 4, kind: input, shape index: {}]
  %s5 = inlined_call_operand.hbm [shape: f32[1,32], index: 5, kind: input, shape index: {}]
  %s6 = inlined_call_operand.hbm [shape: f32[32,64], index: 6, kind: input, shape index: {}]
  %s7 = inlined_call_operand.hbm [shape: f32[2,64,64], index: 7, kind: input, shape index: {}]
  %s8 = inlined_call_operand.vmem [shape: f32[2,1,64], index: 8, kind: input, shape index: {}]
  %s9 = inlined_call_operand.hbm [shape: f32[64,256], index: 9, kind: input, shape index: {}]
  %s10 = inlined_call_operand.vmem [shape: f32[1,256], index: 10, kind: input, shape index: {}]
  %s11 = inlined_call_operand.hbm [shape: f32[8,8,32], index: 11, kind: output, shape index: {}]
  %s12 = sld [smem:[#allocation0]]
  $region74: #{tpu_custom_call.1} parent=0
    _
  %s14 = ssub.s32 1, %s12
  %s15 = scalar_select 0, %s14, %s12
  %s17 = sshll.u32 %s0, 4
  %s18 = int_to_ptr.hbm [resolvable:$true] %s17
  %20 = dma.hbm_to_smem %s18, 16, [#allocation4], [#allocation3]
  %22 = dma.done [#allocation3], 16
  %23 = sfence
  $region1: #{tpu_custom_call.1} parent=0
    #allocation5 [shape = 'u8[32768]{0}', space=vmem, size = 0x8000, scoped, tag = 'input window, operand 2, single buffered']
    #allocation6 [shape = 's32[1]{0}', space=sflag, size = 0x4, scoped, tag = 'scoped memory for tpu_custom_call.1']
    #allocation7 [shape = 's32[1]{0}', space=sflag, size = 0x4, scoped, tag = 'scoped memory for tpu_custom_call.1']
    #allocation8 [shape = 'u8[512]{0}', space=vmem, size = 0x400, scoped, tag = 'input window, operand 5, single buffered']
    #allocation9 [shape = 's32[1]{0}', space=sflag, size = 0x4, scoped, tag = 'scoped memory for tpu_custom_call.1']
    #allocation10 [shape = 'u8[16384]{0}', space=vmem, size = 0x4000, scoped, tag = 'input window, operand 6, single buffered']
    #allocation11 [shape = 'u8[65536]{0}', space=vmem, size = 0x10000, scoped, tag = 'input window, operand 7, single buffered']
    #allocation12 [shape = 's32[1]{0}', space=sflag, size = 0x4, scoped, tag = 'scoped memory for tpu_custom_call.1']
    #allocation13 [shape = 'u8[65536]{0}', space=vmem, size = 0x10000, scoped, tag = 'input window, operand 9, single buffered']
    #allocation14 [shape = 'u8[32768]{0}', space=vmem, size = 0x8000, scoped, tag = 'output window, operand 0, single buffered']
    %24 = vsyncpa [#allocation6], 0
    %25 = vsyncpa [#allocation9], 0
    %26 = vsyncpa [#allocation12], 0
    %27 = vsyncpa [#allocation7], 0
    // Predicated region
    $region2: #{tpu_custom_call.1} parent=1 // pred_check
      _
    $region3: #{tpu_custom_call.1} parent=1 // pred_check_branch
      %29 = sbr.rel (0) target = $region5
    $region4: #{tpu_custom_call.1} parent=1 // pred_region
      _
    $region5: #{tpu_custom_call.1} parent=1 // pred_fallthru
      _
    // Predicated region
    $region6: #{tpu_custom_call.1} parent=1 // pred_check
      _
    $region7: #{tpu_custom_call.1} parent=1 // pred_check_branch
      %31 = sbr.rel (0) target = $region9
    $region8: #{tpu_custom_call.1} parent=1 // pred_region
      %33 = vsyncadd [#allocation6], 0
      %s34 = sshll.u32 %s2, 4
      %s35 = int_to_ptr.hbm [resolvable:$true] %s34
      %s36 = sshll.u32 [#allocation5], 4
      %s37 = int_to_ptr.vmem [resolvable:$true] %s36
      %42 = dma.hbm_to_vmem [thread:$0]  %s35, 1024, %s37, [#allocation6], 128, 128, 8
    $region9: #{tpu_custom_call.1} parent=1 // pred_fallthru
      _
    // Predicated region
    $region10: #{tpu_custom_call.1} parent=1 // pred_check
      _
    $region11: #{tpu_custom_call.1} parent=1 // pred_check_branch
      %44 = sbr.rel (0) target = $region13
    $region12: #{tpu_custom_call.1} parent=1 // pred_region
      _
    $region13: #{tpu_custom_call.1} parent=1 // pred_fallthru
      _
    // Predicated region
    $region14: #{tpu_custom_call.1} parent=1 // pred_check
      _
    $region15: #{tpu_custom_call.1} parent=1 // pred_check_branch
      %46 = sbr.rel (0) target = $region17
    $region16: #{tpu_custom_call.1} parent=1 // pred_region
      _
    $region17: #{tpu_custom_call.1} parent=1 // pred_fallthru
      _
    // Predicated region
    $region18: #{tpu_custom_call.1} parent=1 // pred_check
      _
    $region19: #{tpu_custom_call.1} parent=1 // pred_check_branch
      %48 = sbr.rel (0) target = $region21
    $region20: #{tpu_custom_call.1} parent=1 // pred_region
      %50 = vsyncadd [#allocation9], 0
      %s52 = sshll.u32 %s5, 4
      %s53 = int_to_ptr.hbm [resolvable:$true] %s52
      %s54 = sshll.u32 [#allocation8], 4
      %s55 = int_to_ptr.vmem [resolvable:$true] %s54
      %57 = dma.hbm_to_vmem [thread:$0]  %s53, 16, %s55, [#allocation9]
    $region21: #{tpu_custom_call.1} parent=1 // pred_fallthru
      _
    // Predicated region
    $region22: #{tpu_custom_call.1} parent=1 // pred_check
      _
    $region23: #{tpu_custom_call.1} parent=1 // pred_check_branch
      %59 = sbr.rel (0) target = $region25
    $region24: #{tpu_custom_call.1} parent=1 // pred_region
      %61 = vsyncadd [#allocation9], 0
      %s62 = sshll.u32 %s6, 4
      %s63 = int_to_ptr.hbm [resolvable:$true] %s62
      %s64 = sshll.u32 [#allocation10], 4
      %s65 = int_to_ptr.vmem [resolvable:$true] %s64
      %70 = dma.hbm_to_vmem [thread:$0]  %s63, 512, %s65, [#allocation9], 128, 128, 8
    $region25: #{tpu_custom_call.1} parent=1 // pred_fallthru
      _
    // Predicated region
    $region26: #{tpu_custom_call.1} parent=1 // pred_check
      _
    $region27: #{tpu_custom_call.1} parent=1 // pred_check_branch
      %72 = sbr.rel (0) target = $region29
    $region28: #{tpu_custom_call.1} parent=1 // pred_region
      %74 = vsyncadd [#allocation12], 0
      %s75 = sshll.u32 %s7, 4
      %s76 = int_to_ptr.hbm [resolvable:$true] %s75
      %s77 = sshll.u32 [#allocation11], 4
      %s78 = int_to_ptr.vmem [resolvable:$true] %s77
      %83 = dma.hbm_to_vmem [thread:$0]  %s76, 2048, %s78, [#allocation12], 128, 128, 8
    $region29: #{tpu_custom_call.1} parent=1 // pred_fallthru
      _
    // Predicated region
    $region30: #{tpu_custom_call.1} parent=1 // pred_check
      _
    $region31: #{tpu_custom_call.1} parent=1 // pred_check_branch
      %85 = sbr.rel (0) target = $region33
    $region32: #{tpu_custom_call.1} parent=1 // pred_region
      _
    $region33: #{tpu_custom_call.1} parent=1 // pred_fallthru
      _
    // Predicated region
    $region34: #{tpu_custom_call.1} parent=1 // pred_check
      _
    $region35: #{tpu_custom_call.1} parent=1 // pred_check_branch
      %87 = sbr.rel (0) target = $region37
    $region36: #{tpu_custom_call.1} parent=1 // pred_region
      %89 = vsyncadd [#allocation12], 0
      %s90 = sshll.u32 %s9, 4
      %s91 = int_to_ptr.hbm [resolvable:$true] %s90
      %s92 = sshll.u32 [#allocation13], 4
      %s93 = int_to_ptr.vmem [resolvable:$true] %s92
      %98 = dma.hbm_to_vmem [thread:$0]  %s91, 2048, %s93, [#allocation12], 256, 256, 16
    $region37: #{tpu_custom_call.1} parent=1 // pred_fallthru
      _
    // Predicated region
    $region38: #{tpu_custom_call.1} parent=1 // pred_check
      _
    $region39: #{tpu_custom_call.1} parent=1 // pred_check_branch
      %100 = sbr.rel (0) target = $region41
    $region40: #{tpu_custom_call.1} parent=1 // pred_region
      _
    $region41: #{tpu_custom_call.1} parent=1 // pred_fallthru
      _
    // Predicated region
    $region42: #{tpu_custom_call.1} parent=1 // pred_check
      _
    $region43: #{tpu_custom_call.1} parent=1 // pred_check_branch
      %102 = sbr.rel (0) target = $region45
    $region44: #{tpu_custom_call.1} parent=1 // pred_region
      %104 = dma.done [#allocation6], 1024
    $region45: #{tpu_custom_call.1} parent=1 // pred_fallthru
      _
    // Predicated region
    $region46: #{tpu_custom_call.1} parent=1 // pred_check
      _
    $region47: #{tpu_custom_call.1} parent=1 // pred_check_branch
      %106 = sbr.rel (0) target = $region49
    $region48: #{tpu_custom_call.1} parent=1 // pred_region
      %108 = dma.done [#allocation9], 16
    $region49: #{tpu_custom_call.1} parent=1 // pred_fallthru
      _
    // Predicated region
    $region50: #{tpu_custom_call.1} parent=1 // pred_check
      _
    $region51: #{tpu_custom_call.1} parent=1 // pred_check_branch
      %110 = sbr.rel (0) target = $region53
    $region52: #{tpu_custom_call.1} parent=1 // pred_region
      %112 = dma.done [#allocation9], 512
    $region53: #{tpu_custom_call.1} parent=1 // pred_fallthru
      _
    // Predicated region
    $region54: #{tpu_custom_call.1} parent=1 // pred_check
      _
    $region55: #{tpu_custom_call.1} parent=1 // pred_check_branch
      %114 = sbr.rel (0) target = $region57
    $region56: #{tpu_custom_call.1} parent=1 // pred_region
      %116 = dma.done [#allocation12], 2048
    $region57: #{tpu_custom_call.1} parent=1 // pred_fallthru
      _
    // Predicated region
    $region58: #{tpu_custom_call.1} parent=1 // pred_check
      _
    $region59: #{tpu_custom_call.1} parent=1 // pred_check_branch
      %118 = sbr.rel (0) target = $region61
    $region60: #{tpu_custom_call.1} parent=1 // pred_region
      %120 = dma.done [#allocation12], 2048
    $region61: #{tpu_custom_call.1} parent=1 // pred_fallthru
      _
    %s121 = smul.u32 0, 8
    %p122 = scmp.eq.s32.totalorder 0, 0
    // Predicated region
    $region62: #{tpu_custom_call.1} parent=1 // pred_check
      %p123 = pneg %p122
    $region63: #{tpu_custom_call.1} parent=1 // pred_check_branch
      %125 = sbr.rel (%p123) target = $region65
    $region64: #{tpu_custom_call.1} parent=1 // pred_region
      %v126 = vld [vmem:[%s1] sm:$0xff]
      %v127 = vld [vmem:[%s4] sm:$0xf]
      %v128 = vld [vmem:[#allocation8] sm:$0x1]
      %v130 = vperm.slane %v128, 0
      %vm132 = vcmask 31744
      %v134 = vsel %vm132, %v126, 0
      %vm136 = vcmask 1043456
      %v138 = vsel %vm136, %v127, 0
      %140 = vmatpush.msra.mxu0 0.0
      %141 = vmatpush.msra.mxu0 0.0
      %142 = vmatpush.msra.mxu0 0.0
      %143 = vmatpush.msra.mxu0 0.0
      %144 = vmatpush.msra.mxu0 0.0
      %145 = vmatpush.msra.mxu0 0.0
      %146 = vmatpush.msra.mxu0 0.0
      %147 = vmatpush.msra.mxu0 0.0
      %148 = vmatpush.msra.mxu0 0.0
      %149 = vmatpush.msra.mxu0 0.0
      %150 = vmatpush.msra.mxu0 0.0
      %151 = vmatpush.msra.mxu0 0.0
      %152 = vmatpush.msra.mxu0 0.0
      %153 = vmatpush.msra.mxu0 0.0
      %154 = vmatpush.msra.mxu0 0.0
      %155 = vmatpush.msra.mxu0 %v138
      %156 = vmatmul.f32.gmra.mxu0 %v134
      %v157 = vpop.f32.mrf.mxu0
      %v158 = vadd.f32 %v130, %v157
      %159 = vdwg.mxu0
      %vm160 = vcmask 261120
      %161 = vst.msk [vmem:[#allocation2] sm:$0xff] %vm160, %v158
    $region65: #{tpu_custom_call.1} parent=1 // pred_fallthru
      _
    %v162 = vld [vmem:[#allocation2] sm:$0xff]
    %v163 = vld [vmem:[#allocation10] sm:$0xff]
    %v164 = vld [vmem:[#allocation10 + $0x8] sm:$0xff]
    %v165 = vld [vmem:[#allocation10 + $0x10] sm:$0xff]
    %v166 = vld [vmem:[#allocation10 + $0x18] sm:$0xff]
    %v167 = vld [vmem:[%s3] sm:$0x1]
    %v168 = vperm.slane %v167, 0
    %vm169 = vcmask 261120
    %v171 = vsel %vm169, %v162, 0
    %173 = vmatpush.msra.mxu0 0.0
    %174 = vmatpush.msra.mxu0 0.0
    %175 = vmatpush.msra.mxu0 0.0
    %176 = vmatpush.msra.mxu0 0.0
    %177 = vmatpush.msra.mxu0 0.0
    %178 = vmatpush.msra.mxu0 0.0
    %179 = vmatpush.msra.mxu0 0.0
    %180 = vmatpush.msra.mxu0 0.0
    %181 = vmatpush.msra.mxu0 0.0
    %182 = vmatpush.msra.mxu0 0.0
    %183 = vmatpush.msra.mxu0 0.0
    %184 = vmatpush.msra.mxu0 0.0
    %185 = vmatpush.msra.mxu0 %v166
    %186 = vmatpush.msra.mxu0 %v165
    %187 = vmatpush.msra.mxu0 %v164
    %188 = vmatpush.msra.mxu0 %v163
    %189 = vmatmul.f32.gmra.mxu0 %v171
    %v190 = vpop.f32.mrf.mxu0
    %v191 = vadd.f32 %v168, %v190
    %192 = vdwg.mxu0
    %v193 = vxor.u32 %v191, 2147483648
    %v194 = vmul.f32 %v193, 1.442695
    %v195 = vpow.pop %v194
    %v196 = vadd.f32 %v195, 1.0
    %v197 = vrcp.pop %v196
    %v198 = vmul.f32 %v196, %v197
    %v199 = vsub.f32 1.0, %v198
    %v200 = vmul.f32 %v197, %v199
    %v201 = vadd.f32 %v197, %v200
    %vm202 = vweird.f32 %v196
    %vm203 = vweird.f32 %v197
    %vm204 = vmor %vm202, %vm203
    %v205 = vsel %vm204, %v197, %v201
    %v206 = vand.u32 2147483647, %v196
    %vm207 = vcmp.eq.f32.partialorder %v206, 8.507059e+37
    %v208 = vand.u32 %v196, 2147483648
    %v209 = vor.u32 1.1754944e-38, %v208
    %v210 = vsel %vm207, %v209, %v205
    %v211 = vmul.f32 1.0, %v210
    %v212 = vmul.f32 %v191, %v211
    %v213 = vld [vmem:[#allocation11] sm:$0xff]
    %v214 = vld [vmem:[#allocation11 + $0x8] sm:$0xff]
    %v215 = vld [vmem:[#allocation11 + $0x10] sm:$0xff]
    %v216 = vld [vmem:[#allocation11 + $0x18] sm:$0xff]
    %v217 = vld [vmem:[#allocation11 + $0x20] sm:$0xff]
    %v218 = vld [vmem:[#allocation11 + $0x28] sm:$0xff]
    %v219 = vld [vmem:[#allocation11 + $0x30] sm:$0xff]
    %v220 = vld [vmem:[#allocation11 + $0x38] sm:$0xff]
    %v221 = vld [vmem:[%s8] sm:$0x1]
    %v223 = vperm.slane %v221, 0
    %vm225 = vcmask 523264
    %v227 = vsel %vm225, %v212, 0
    %229 = vmatpush.msra.mxu0 0.0
    %230 = vmatpush.msra.mxu0 0.0
    %231 = vmatpush.msra.mxu0 0.0
    %232 = vmatpush.msra.mxu0 0.0
    %233 = vmatpush.msra.mxu0 0.0
    %234 = vmatpush.msra.mxu0 0.0
    %235 = vmatpush.msra.mxu0 0.0
    %236 = vmatpush.msra.mxu0 0.0
    %237 = vmatpush.msra.mxu0 %v220
    %238 = vmatpush.msra.mxu0 %v219
    %239 = vmatpush.msra.mxu0 %v218
    %240 = vmatpush.msra.mxu0 %v217
    %241 = vmatpush.msra.mxu0 %v216
    %242 = vmatpush.msra.mxu0 %v215
    %243 = vmatpush.msra.mxu0 %v214
    %244 = vmatpush.msra.mxu0 %v213
    %245 = vmatmul.f32.gmra.mxu0 %v227
    %v246 = vpop.f32.mrf.mxu0
    %v247 = vadd.f32 %v223, %v246
    %248 = vdwg.mxu0
    %v249 = vxor.u32 %v247, 2147483648
    %v250 = vmul.f32 %v249, 1.442695
    %v251 = vpow.pop %v250
    %v252 = vadd.f32 %v251, 1.0
    %v253 = vrcp.pop %v252
    %v254 = vmul.f32 %v252, %v253
    %v255 = vsub.f32 1.0, %v254
    %v256 = vmul.f32 %v253, %v255
    %v257 = vadd.f32 %v253, %v256
    %vm258 = vweird.f32 %v252
    %vm259 = vweird.f32 %v253
    %vm260 = vmor %vm258, %vm259
    %v261 = vsel %vm260, %v253, %v257
    %v262 = vand.u32 2147483647, %v252
    %vm263 = vcmp.eq.f32.partialorder %v262, 8.507059e+37
    %v264 = vand.u32 %v252, 2147483648
    %v265 = vor.u32 1.1754944e-38, %v264
    %v266 = vsel %vm263, %v265, %v261
    %v267 = vmul.f32 1.0, %v266
    %v268 = vmul.f32 %v247, %v267
    %s269 = scalar_lea.vmem [#allocation11], 64
    %v270 = vld [vmem:[%s269] sm:$0xff]
    %v271 = vld [vmem:[%s269 + $0x8] sm:$0xff]
    %v272 = vld [vmem:[%s269 + $0x10] sm:$0xff]
    %v273 = vld [vmem:[%s269 + $0x18] sm:$0xff]
    %v274 = vld [vmem:[%s269 + $0x20] sm:$0xff]
    %v275 = vld [vmem:[%s269 + $0x28] sm:$0xff]
    %v276 = vld [vmem:[%s269 + $0x30] sm:$0xff]
    %v277 = vld [vmem:[%s269 + $0x38] sm:$0xff]
    %s278 = scalar_lea.vmem %s8, 1
    %v279 = vld [vmem:[%s278] sm:$0x1]
    %v281 = vperm.slane %v279, 0
    %v284 = vsel %vm225, %v268, 0
    %286 = vmatpush.msra.mxu0 0.0
    %287 = vmatpush.msra.mxu0 0.0
    %288 = vmatpush.msra.mxu0 0.0
    %289 = vmatpush.msra.mxu0 0.0
    %290 = vmatpush.msra.mxu0 0.0
    %291 = vmatpush.msra.mxu0 0.0
    %292 = vmatpush.msra.mxu0 0.0
    %293 = vmatpush.msra.mxu0 0.0
    %294 = vmatpush.msra.mxu0 %v277
    %295 = vmatpush.msra.mxu0 %v276
    %296 = vmatpush.msra.mxu0 %v275
    %297 = vmatpush.msra.mxu0 %v274
    %298 = vmatpush.msra.mxu0 %v273
    %299 = vmatpush.msra.mxu0 %v272
    %300 = vmatpush.msra.mxu0 %v271
    %301 = vmatpush.msra.mxu0 %v270
    %302 = vmatmul.f32.gmra.mxu0 %v284
    %v303 = vpop.f32.mrf.mxu0
    %v304 = vadd.f32 %v281, %v303
    %305 = vdwg.mxu0
    %v306 = vxor.u32 %v304, 2147483648
    %v307 = vmul.f32 %v306, 1.442695
    %v308 = vpow.pop %v307
    %v309 = vadd.f32 %v308, 1.0
    %v310 = vrcp.pop %v309
    %v311 = vmul.f32 %v309, %v310
    %v312 = vsub.f32 1.0, %v311
    %v313 = vmul.f32 %v310, %v312
    %v314 = vadd.f32 %v310, %v313
    %vm315 = vweird.f32 %v309
    %vm316 = vweird.f32 %v310
    %vm317 = vmor %vm315, %vm316
    %v318 = vsel %vm317, %v310, %v314
    %v319 = vand.u32 2147483647, %v309
    %vm320 = vcmp.eq.f32.partialorder %v319, 8.507059e+37
    %v321 = vand.u32 %v309, 2147483648
    %v322 = vor.u32 1.1754944e-38, %v321
    %v323 = vsel %vm320, %v322, %v318
    %v324 = vmul.f32 1.0, %v323
    %v325 = vmul.f32 %v304, %v324
    %v326 = vld [vmem:[#allocation13] sm:$0xff]
    %v327 = vld [vmem:[#allocation13 + $0x8] sm:$0xff]
    %v328 = vld [vmem:[#allocation13 + $0x10] sm:$0xff]
    %v329 = vld [vmem:[#allocation13 + $0x18] sm:$0xff]
    %v330 = vld [vmem:[#allocation13 + $0x20] sm:$0xff]
    %v331 = vld [vmem:[#allocation13 + $0x28] sm:$0xff]
    %v332 = vld [vmem:[#allocation13 + $0x30] sm:$0xff]
    %v333 = vld [vmem:[#allocation13 + $0x38] sm:$0xff]
    %v334 = vld [vmem:[#allocation13 + $0x40] sm:$0xff]
    %v335 = vld [vmem:[#allocation13 + $0x48] sm:$0xff]
    %v336 = vld [vmem:[#allocation13 + $0x50] sm:$0xff]
    %v337 = vld [vmem:[#allocation13 + $0x58] sm:$0xff]
    %v338 = vld [vmem:[#allocation13 + $0x60] sm:$0xff]
    %v339 = vld [vmem:[#allocation13 + $0x68] sm:$0xff]
    %v340 = vld [vmem:[#allocation13 + $0x70] sm:$0xff]
    %v341 = vld [vmem:[#allocation13 + $0x78] sm:$0xff]
    %v342 = vld [vmem:[%s10] sm:$0x3]
    %v344 = vperm.slane %v342, 0
    %v345 = vperm.slane %v342, 1
    %v349 = vsel %vm225, %v325, 0
    %351 = vmatpush.msra.mxu0 0.0
    %352 = vmatpush.msra.mxu0 0.0
    %353 = vmatpush.msra.mxu0 0.0
    %354 = vmatpush.msra.mxu0 0.0
    %355 = vmatpush.msra.mxu0 0.0
    %356 = vmatpush.msra.mxu0 0.0
    %357 = vmatpush.msra.mxu0 0.0
    %358 = vmatpush.msra.mxu0 0.0
    %359 = vmatpush.msra.mxu0 %v340
    %360 = vmatpush.msra.mxu0 %v338
    %361 = vmatpush.msra.mxu0 %v336
    %362 = vmatpush.msra.mxu0 %v334
    %363 = vmatpush.msra.mxu0 %v332
    %364 = vmatpush.msra.mxu0 %v330
    %365 = vmatpush.msra.mxu0 %v328
    %366 = vmatpush.msra.mxu0 %v326
    %367 = vmatmul.f32.gmra.mxu0 %v349
    %v368 = vpop.f32.mrf.mxu0
    %v369 = vadd.f32 %v344, %v368
    %370 = vdwg.mxu0
    %371 = vmatpush.msra.mxu0 0.0
    %372 = vmatpush.msra.mxu0 0.0
    %373 = vmatpush.msra.mxu0 0.0
    %374 = vmatpush.msra.mxu0 0.0
    %375 = vmatpush.msra.mxu0 0.0
    %376 = vmatpush.msra.mxu0 0.0
    %377 = vmatpush.msra.mxu0 0.0
    %378 = vmatpush.msra.mxu0 0.0
    %379 = vmatpush.msra.mxu0 %v341
    %380 = vmatpush.msra.mxu0 %v339
    %381 = vmatpush.msra.mxu0 %v337
    %382 = vmatpush.msra.mxu0 %v335
    %383 = vmatpush.msra.mxu0 %v333
    %384 = vmatpush.msra.mxu0 %v331
    %385 = vmatpush.msra.mxu0 %v329
    %386 = vmatpush.msra.mxu0 %v327
    %387 = vmatmul.f32.gmra.mxu0 %v349
    %v388 = vpop.f32.mrf.mxu0
    %v389 = vadd.f32 %v345, %v388
    %390 = vdwg.mxu0
    %v391 = vtanh.pop %v369
    %v392 = vtanh.pop %v389
    %s393 = sld [smem:[#allocation4 + %s121]]
    %v394 = vstv %s393
    %v395 = vmul.f32 %v391, %v394
    %v396 = vadd.f32 %v162, %v395
    %v397 = vld [vmem:[#allocation5] sm:$0xff]
    %v398 = vmul.f32 %v392, %v397
    %v399 = vadd.f32 %v396, %v398
    %400 = vst.msk [vmem:[#allocation14] sm:$0xff] %vm169, %v399
    %v401 = vld [vmem:[#allocation10] sm:$0xff]
    %v402 = vld [vmem:[#allocation10 + $0x8] sm:$0xff]
    %v403 = vld [vmem:[#allocation10 + $0x10] sm:$0xff]
    %v404 = vld [vmem:[#allocation10 + $0x18] sm:$0xff]
    %v405 = vld [vmem:[%s3 + $0x1] sm:$0x1]
    %v406 = vperm.slane %v405, 0
    %v408 = vsel %vm169, %v399, 0
    %410 = vmatpush.msra.mxu0 0.0
    %411 = vmatpush.msra.mxu0 0.0
    %412 = vmatpush.msra.mxu0 0.0
    %413 = vmatpush.msra.mxu0 0.0
    %414 = vmatpush.msra.mxu0 0.0
    %415 = vmatpush.msra.mxu0 0.0
    %416 = vmatpush.msra.mxu0 0.0
    %417 = vmatpush.msra.mxu0 0.0
    %418 = vmatpush.msra.mxu0 0.0
    %419 = vmatpush.msra.mxu0 0.0
    %420 = vmatpush.msra.mxu0 0.0
    %421 = vmatpush.msra.mxu0 0.0
    %422 = vmatpush.msra.mxu0 %v404
    %423 = vmatpush.msra.mxu0 %v403
    %424 = vmatpush.msra.mxu0 %v402
    %425 = vmatpush.msra.mxu0 %v401
    %426 = vmatmul.f32.gmra.mxu0 %v408
    %v427 = vpop.f32.mrf.mxu0
    %v428 = vadd.f32 %v406, %v427
    %429 = vdwg.mxu0
    %v430 = vxor.u32 %v428, 2147483648
    %v431 = vmul.f32 %v430, 1.442695
    %v432 = vpow.pop %v431
    %v433 = vadd.f32 %v432, 1.0
    %v434 = vrcp.pop %v433
    %v435 = vmul.f32 %v433, %v434
    %v436 = vsub.f32 1.0, %v435
    %v437 = vmul.f32 %v434, %v436
    %v438 = vadd.f32 %v434, %v437
    %vm439 = vweird.f32 %v433
    %vm440 = vweird.f32 %v434
    %vm441 = vmor %vm439, %vm440
    %v442 = vsel %vm441, %v434, %v438
    %v443 = vand.u32 2147483647, %v433
    %vm444 = vcmp.eq.f32.partialorder %v443, 8.507059e+37
    %v445 = vand.u32 %v433, 2147483648
    %v446 = vor.u32 1.1754944e-38, %v445
    %v447 = vsel %vm444, %v446, %v442
    %v448 = vmul.f32 1.0, %v447
    %v449 = vmul.f32 %v428, %v448
    %v450 = vld [vmem:[#allocation11] sm:$0xff]
    %v451 = vld [vmem:[#allocation11 + $0x8] sm:$0xff]
    %v452 = vld [vmem:[#allocation11 + $0x10] sm:$0xff]
    %v453 = vld [vmem:[#allocation11 + $0x18] sm:$0xff]
    %v454 = vld [vmem:[#allocation11 + $0x20] sm:$0xff]
    %v455 = vld [vmem:[#allocation11 + $0x28] sm:$0xff]
    %v456 = vld [vmem:[#allocation11 + $0x30] sm:$0xff]
    %v457 = vld [vmem:[#allocation11 + $0x38] sm:$0xff]
    %v458 = vld [vmem:[%s8] sm:$0x1]
    %v460 = vperm.slane %v458, 0
    %v463 = vsel %vm225, %v449, 0
    %465 = vmatpush.msra.mxu0 0.0
    %466 = vmatpush.msra.mxu0 0.0
    %467 = vmatpush.msra.mxu0 0.0
    %468 = vmatpush.msra.mxu0 0.0
    %469 = vmatpush.msra.mxu0 0.0
    %470 = vmatpush.msra.mxu0 0.0
    %471 = vmatpush.msra.mxu0 0.0
    %472 = vmatpush.msra.mxu0 0.0
    %473 = vmatpush.msra.mxu0 %v457
    %474 = vmatpush.msra.mxu0 %v456
    %475 = vmatpush.msra.mxu0 %v455
    %476 = vmatpush.msra.mxu0 %v454
    %477 = vmatpush.msra.mxu0 %v453
    %478 = vmatpush.msra.mxu0 %v452
    %479 = vmatpush.msra.mxu0 %v451
    %480 = vmatpush.msra.mxu0 %v450
    %481 = vmatmul.f32.gmra.mxu0 %v463
    %v482 = vpop.f32.mrf.mxu0
    %v483 = vadd.f32 %v460, %v482
    %484 = vdwg.mxu0
    %v485 = vxor.u32 %v483, 2147483648
    %v486 = vmul.f32 %v485, 1.442695
    %v487 = vpow.pop %v486
    %v488 = vadd.f32 %v487, 1.0
    %v489 = vrcp.pop %v488
    %v490 = vmul.f32 %v488, %v489
    %v491 = vsub.f32 1.0, %v490
    %v492 = vmul.f32 %v489, %v491
    %v493 = vadd.f32 %v489, %v492
    %vm494 = vweird.f32 %v488
    %vm495 = vweird.f32 %v489
    %vm496 = vmor %vm494, %vm495
    %v497 = vsel %vm496, %v489, %v493
    %v498 = vand.u32 2147483647, %v488
    %vm499 = vcmp.eq.f32.partialorder %v498, 8.507059e+37
    %v500 = vand.u32 %v488, 2147483648
    %v501 = vor.u32 1.1754944e-38, %v500
    %v502 = vsel %vm499, %v501, %v497
    %v503 = vmul.f32 1.0, %v502
    %v504 = vmul.f32 %v483, %v503
    %v505 = vld [vmem:[%s269] sm:$0xff]
    %v506 = vld [vmem:[%s269 + $0x8] sm:$0xff]
    %v507 = vld [vmem:[%s269 + $0x10] sm:$0xff]
    %v508 = vld [vmem:[%s269 + $0x18] sm:$0xff]
    %v509 = vld [vmem:[%s269 + $0x20] sm:$0xff]
    %v510 = vld [vmem:[%s269 + $0x28] sm:$0xff]
    %v511 = vld [vmem:[%s269 + $0x30] sm:$0xff]
    %v512 = vld [vmem:[%s269 + $0x38] sm:$0xff]
    %v513 = vld [vmem:[%s278] sm:$0x1]
    %v515 = vperm.slane %v513, 0
    %v518 = vsel %vm225, %v504, 0
    %520 = vmatpush.msra.mxu0 0.0
    %521 = vmatpush.msra.mxu0 0.0
    %522 = vmatpush.msra.mxu0 0.0
    %523 = vmatpush.msra.mxu0 0.0
    %524 = vmatpush.msra.mxu0 0.0
    %525 = vmatpush.msra.mxu0 0.0
    %526 = vmatpush.msra.mxu0 0.0
    %527 = vmatpush.msra.mxu0 0.0
    %528 = vmatpush.msra.mxu0 %v512
    %529 = vmatpush.msra.mxu0 %v511
    %530 = vmatpush.msra.mxu0 %v510
    %531 = vmatpush.msra.mxu0 %v509
    %532 = vmatpush.msra.mxu0 %v508
    %533 = vmatpush.msra.mxu0 %v507
    %534 = vmatpush.msra.mxu0 %v506
    %535 = vmatpush.msra.mxu0 %v505
    %536 = vmatmul.f32.gmra.mxu0 %v518
    %v537 = vpop.f32.mrf.mxu0
    %v538 = vadd.f32 %v515, %v537
    %539 = vdwg.mxu0
    %v540 = vxor.u32 %v538, 2147483648
    %v541 = vmul.f32 %v540, 1.442695
    %v542 = vpow.pop %v541
    %v543 = vadd.f32 %v542, 1.0
    %v544 = vrcp.pop %v543
    %v545 = vmul.f32 %v543, %v544
    %v546 = vsub.f32 1.0, %v545
    %v547 = vmul.f32 %v544, %v546
    %v548 = vadd.f32 %v544, %v547
    %vm549 = vweird.f32 %v543
    %vm550 = vweird.f32 %v544
    %vm551 = vmor %vm549, %vm550
    %v552 = vsel %vm551, %v544, %v548
    %v553 = vand.u32 2147483647, %v543
    %vm554 = vcmp.eq.f32.partialorder %v553, 8.507059e+37
    %v555 = vand.u32 %v543, 2147483648
    %v556 = vor.u32 1.1754944e-38, %v555
    %v557 = vsel %vm554, %v556, %v552
    %v558 = vmul.f32 1.0, %v557
    %v559 = vmul.f32 %v538, %v558
    %v560 = vld [vmem:[#allocation13] sm:$0xff]
    %v561 = vld [vmem:[#allocation13 + $0x8] sm:$0xff]
    %v562 = vld [vmem:[#allocation13 + $0x10] sm:$0xff]
    %v563 = vld [vmem:[#allocation13 + $0x18] sm:$0xff]
    %v564 = vld [vmem:[#allocation13 + $0x20] sm:$0xff]
    %v565 = vld [vmem:[#allocation13 + $0x28] sm:$0xff]
    %v566 = vld [vmem:[#allocation13 + $0x30] sm:$0xff]
    %v567 = vld [vmem:[#allocation13 + $0x38] sm:$0xff]
    %v568 = vld [vmem:[#allocation13 + $0x40] sm:$0xff]
    %v569 = vld [vmem:[#allocation13 + $0x48] sm:$0xff]
    %v570 = vld [vmem:[#allocation13 + $0x50] sm:$0xff]
    %v571 = vld [vmem:[#allocation13 + $0x58] sm:$0xff]
    %v572 = vld [vmem:[#allocation13 + $0x60] sm:$0xff]
    %v573 = vld [vmem:[#allocation13 + $0x68] sm:$0xff]
    %v574 = vld [vmem:[#allocation13 + $0x70] sm:$0xff]
    %v575 = vld [vmem:[#allocation13 + $0x78] sm:$0xff]
    %v576 = vld [vmem:[%s10] sm:$0x3]
    %v578 = vperm.slane %v576, 0
    %v579 = vperm.slane %v576, 1
    %v583 = vsel %vm225, %v559, 0
    %585 = vmatpush.msra.mxu0 0.0
    %586 = vmatpush.msra.mxu0 0.0
    %587 = vmatpush.msra.mxu0 0.0
    %588 = vmatpush.msra.mxu0 0.0
    %589 = vmatpush.msra.mxu0 0.0
    %590 = vmatpush.msra.mxu0 0.0
    %591 = vmatpush.msra.mxu0 0.0
    %592 = vmatpush.msra.mxu0 0.0
    %593 = vmatpush.msra.mxu0 %v574
    %594 = vmatpush.msra.mxu0 %v572
    %595 = vmatpush.msra.mxu0 %v570
    %596 = vmatpush.msra.mxu0 %v568
    %597 = vmatpush.msra.mxu0 %v566
    %598 = vmatpush.msra.mxu0 %v564
    %599 = vmatpush.msra.mxu0 %v562
    %600 = vmatpush.msra.mxu0 %v560
    %601 = vmatmul.f32.gmra.mxu0 %v583
    %v602 = vpop.f32.mrf.mxu0
    %v603 = vadd.f32 %v578, %v602
    %604 = vdwg.mxu0
    %605 = vmatpush.msra.mxu0 0.0
    %606 = vmatpush.msra.mxu0 0.0
    %607 = vmatpush.msra.mxu0 0.0
    %608 = vmatpush.msra.mxu0 0.0
    %609 = vmatpush.msra.mxu0 0.0
    %610 = vmatpush.msra.mxu0 0.0
    %611 = vmatpush.msra.mxu0 0.0
    %612 = vmatpush.msra.mxu0 0.0
    %613 = vmatpush.msra.mxu0 %v575
    %614 = vmatpush.msra.mxu0 %v573
    %615 = vmatpush.msra.mxu0 %v571
    %616 = vmatpush.msra.mxu0 %v569
    %617 = vmatpush.msra.mxu0 %v567
    %618 = vmatpush.msra.mxu0 %v565
    %619 = vmatpush.msra.mxu0 %v563
    %620 = vmatpush.msra.mxu0 %v561
    %621 = vmatmul.f32.gmra.mxu0 %v583
    %v622 = vpop.f32.mrf.mxu0
    %v623 = vadd.f32 %v579, %v622
    %624 = vdwg.mxu0
    %v625 = vtanh.pop %v603
    %v626 = vtanh.pop %v623
    %s627 = sadd.s32 %s121, 1
    %s628 = sld [smem:[#allocation4 + %s627]]
    %v629 = vstv %s628
    %v630 = vmul.f32 %v625, %v629
    %v631 = vadd.f32 %v399, %v630
    %s632 = scalar_lea.vmem [#allocation5], 8
    %v633 = vld [vmem:[%s632] sm:$0xff]
    %v634 = vmul.f32 %v626, %v633
    %v635 = vadd.f32 %v631, %v634
    %s636 = scalar_lea.vmem [#allocation14], 8
    %637 = vst.msk [vmem:[%s636] sm:$0xff] %vm169, %v635
    %v638 = vld [vmem:[#allocation10] sm:$0xff]
    %v639 = vld [vmem:[#allocation10 + $0x8] sm:$0xff]
    %v640 = vld [vmem:[#allocation10 + $0x10] sm:$0xff]
    %v641 = vld [vmem:[#allocation10 + $0x18] sm:$0xff]
    %v642 = vld [vmem:[%s3 + $0x2] sm:$0x1]
    %v643 = vperm.slane %v642, 0
    %v645 = vsel %vm169, %v635, 0
    %647 = vmatpush.msra.mxu0 0.0
    %648 = vmatpush.msra.mxu0 0.0
    %649 = vmatpush.msra.mxu0 0.0
    %650 = vmatpush.msra.mxu0 0.0
    %651 = vmatpush.msra.mxu0 0.0
    %652 = vmatpush.msra.mxu0 0.0
    %653 = vmatpush.msra.mxu0 0.0
    %654 = vmatpush.msra.mxu0 0.0
    %655 = vmatpush.msra.mxu0 0.0
    %656 = vmatpush.msra.mxu0 0.0
    %657 = vmatpush.msra.mxu0 0.0
    %658 = vmatpush.msra.mxu0 0.0
    %659 = vmatpush.msra.mxu0 %v641
    %660 = vmatpush.msra.mxu0 %v640
    %661 = vmatpush.msra.mxu0 %v639
    %662 = vmatpush.msra.mxu0 %v638
    %663 = vmatmul.f32.gmra.mxu0 %v645
    %v664 = vpop.f32.mrf.mxu0
    %v665 = vadd.f32 %v643, %v664
    %666 = vdwg.mxu0
    %v667 = vxor.u32 %v665, 2147483648
    %v668 = vmul.f32 %v667, 1.442695
    %v669 = vpow.pop %v668
    %v670 = vadd.f32 %v669, 1.0
    %v671 = vrcp.pop %v670
    %v672 = vmul.f32 %v670, %v671
    %v673 = vsub.f32 1.0, %v672
    %v674 = vmul.f32 %v671, %v673
    %v675 = vadd.f32 %v671, %v674
    %vm676 = vweird.f32 %v670
    %vm677 = vweird.f32 %v671
    %vm678 = vmor %vm676, %vm677
    %v679 = vsel %vm678, %v671, %v675
    %v680 = vand.u32 2147483647, %v670
    %vm681 = vcmp.eq.f32.partialorder %v680, 8.507059e+37
    %v682 = vand.u32 %v670, 2147483648
    %v683 = vor.u32 1.1754944e-38, %v682
    %v684 = vsel %vm681, %v683, %v679
    %v685 = vmul.f32 1.0, %v684
    %v686 = vmul.f32 %v665, %v685
    %v687 = vld [vmem:[#allocation11] sm:$0xff]
    %v688 = vld [vmem:[#allocation11 + $0x8] sm:$0xff]
    %v689 = vld [vmem:[#allocation11 + $0x10] sm:$0xff]
    %v690 = vld [vmem:[#allocation11 + $0x18] sm:$0xff]
    %v691 = vld [vmem:[#allocation11 + $0x20] sm:$0xff]
    %v692 = vld [vmem:[#allocation11 + $0x28] sm:$0xff]
    %v693 = vld [vmem:[#allocation11 + $0x30] sm:$0xff]
    %v694 = vld [vmem:[#allocation11 + $0x38] sm:$0xff]
    %v695 = vld [vmem:[%s8] sm:$0x1]
    %v697 = vperm.slane %v695, 0
    %v700 = vsel %vm225, %v686, 0
    %702 = vmatpush.msra.mxu0 0.0
    %703 = vmatpush.msra.mxu0 0.0
    %704 = vmatpush.msra.mxu0 0.0
    %705 = vmatpush.msra.mxu0 0.0
    %706 = vmatpush.msra.mxu0 0.0
    %707 = vmatpush.msra.mxu0 0.0
    %708 = vmatpush.msra.mxu0 0.0
    %709 = vmatpush.msra.mxu0 0.0
    %710 = vmatpush.msra.mxu0 %v694
    %711 = vmatpush.msra.mxu0 %v693
    %712 = vmatpush.msra.mxu0 %v692
    %713 = vmatpush.msra.mxu0 %v691
    %714 = vmatpush.msra.mxu0 %v690
    %715 = vmatpush.msra.mxu0 %v689
    %716 = vmatpush.msra.mxu0 %v688
    %717 = vmatpush.msra.mxu0 %v687
    %718 = vmatmul.f32.gmra.mxu0 %v700
    %v719 = vpop.f32.mrf.mxu0
    %v720 = vadd.f32 %v697, %v719
    %721 = vdwg.mxu0
    %v722 = vxor.u32 %v720, 2147483648
    %v723 = vmul.f32 %v722, 1.442695
    %v724 = vpow.pop %v723
    %v725 = vadd.f32 %v724, 1.0
    %v726 = vrcp.pop %v725
    %v727 = vmul.f32 %v725, %v726
    %v728 = vsub.f32 1.0, %v727
    %v729 = vmul.f32 %v726, %v728
    %v730 = vadd.f32 %v726, %v729
    %vm731 = vweird.f32 %v725
    %vm732 = vweird.f32 %v726
    %vm733 = vmor %vm731, %vm732
    %v734 = vsel %vm733, %v726, %v730
    %v735 = vand.u32 2147483647, %v725
    %vm736 = vcmp.eq.f32.partialorder %v735, 8.507059e+37
    %v737 = vand.u32 %v725, 2147483648
    %v738 = vor.u32 1.1754944e-38, %v737
    %v739 = vsel %vm736, %v738, %v734
    %v740 = vmul.f32 1.0, %v739
    %v741 = vmul.f32 %v720, %v740
    %v742 = vld [vmem:[%s269] sm:$0xff]
    %v743 = vld [vmem:[%s269 + $0x8] sm:$0xff]
    %v744 = vld [vmem:[%s269 + $0x10] sm:$0xff]
    %v745 = vld [vmem:[%s269 + $0x18] sm:$0xff]
    %v746 = vld [vmem:[%s269 + $0x20] sm:$0xff]
    %v747 = vld [vmem:[%s269 + $0x28] sm:$0xff]
    %v748 = vld [vmem:[%s269 + $0x30] sm:$0xff]
    %v749 = vld [vmem:[%s269 + $0x38] sm:$0xff]
    %v750 = vld [vmem:[%s278] sm:$0x1]
    %v752 = vperm.slane %v750, 0
    %v755 = vsel %vm225, %v741, 0
    %757 = vmatpush.msra.mxu0 0.0
    %758 = vmatpush.msra.mxu0 0.0
    %759 = vmatpush.msra.mxu0 0.0
    %760 = vmatpush.msra.mxu0 0.0
    %761 = vmatpush.msra.mxu0 0.0
    %762 = vmatpush.msra.mxu0 0.0
    %763 = vmatpush.msra.mxu0 0.0
    %764 = vmatpush.msra.mxu0 0.0
    %765 = vmatpush.msra.mxu0 %v749
    %766 = vmatpush.msra.mxu0 %v748
    %767 = vmatpush.msra.mxu0 %v747
    %768 = vmatpush.msra.mxu0 %v746
    %769 = vmatpush.msra.mxu0 %v745
    %770 = vmatpush.msra.mxu0 %v744
    %771 = vmatpush.msra.mxu0 %v743
    %772 = vmatpush.msra.mxu0 %v742
    %773 = vmatmul.f32.gmra.mxu0 %v755
    %v774 = vpop.f32.mrf.mxu0
    %v775 = vadd.f32 %v752, %v774
    %776 = vdwg.mxu0
    %v777 = vxor.u32 %v775, 2147483648
    %v778 = vmul.f32 %v777, 1.442695
    %v779 = vpow.pop %v778
    %v780 = vadd.f32 %v779, 1.0
    %v781 = vrcp.pop %v780
    %v782 = vmul.f32 %v780, %v781
    %v783 = vsub.f32 1.0, %v782
    %v784 = vmul.f32 %v781, %v783
    %v785 = vadd.f32 %v781, %v784
    %vm786 = vweird.f32 %v780
    %vm787 = vweird.f32 %v781
    %vm788 = vmor %vm786, %vm787
    %v789 = vsel %vm788, %v781, %v785
    %v790 = vand.u32 2147483647, %v780
    %vm791 = vcmp.eq.f32.partialorder %v790, 8.507059e+37
    %v792 = vand.u32 %v780, 2147483648
    %v793 = vor.u32 1.1754944e-38, %v792
    %v794 = vsel %vm791, %v793, %v789
    %v795 = vmul.f32 1.0, %v794
    %v796 = vmul.f32 %v775, %v795
    %v797 = vld [vmem:[#allocation13] sm:$0xff]
    %v798 = vld [vmem:[#allocation13 + $0x8] sm:$0xff]
    %v799 = vld [vmem:[#allocation13 + $0x10] sm:$0xff]
    %v800 = vld [vmem:[#allocation13 + $0x18] sm:$0xff]
    %v801 = vld [vmem:[#allocation13 + $0x20] sm:$0xff]
    %v802 = vld [vmem:[#allocation13 + $0x28] sm:$0xff]
    %v803 = vld [vmem:[#allocation13 + $0x30] sm:$0xff]
    %v804 = vld [vmem:[#allocation13 + $0x38] sm:$0xff]
    %v805 = vld [vmem:[#allocation13 + $0x40] sm:$0xff]
    %v806 = vld [vmem:[#allocation13 + $0x48] sm:$0xff]
    %v807 = vld [vmem:[#allocation13 + $0x50] sm:$0xff]
    %v808 = vld [vmem:[#allocation13 + $0x58] sm:$0xff]
    %v809 = vld [vmem:[#allocation13 + $0x60] sm:$0xff]
    %v810 = vld [vmem:[#allocation13 + $0x68] sm:$0xff]
    %v811 = vld [vmem:[#allocation13 + $0x70] sm:$0xff]
    %v812 = vld [vmem:[#allocation13 + $0x78] sm:$0xff]
    %v813 = vld [vmem:[%s10] sm:$0x3]
    %v815 = vperm.slane %v813, 0
    %v816 = vperm.slane %v813, 1
    %v820 = vsel %vm225, %v796, 0
    %822 = vmatpush.msra.mxu0 0.0
    %823 = vmatpush.msra.mxu0 0.0
    %824 = vmatpush.msra.mxu0 0.0
    %825 = vmatpush.msra.mxu0 0.0
    %826 = vmatpush.msra.mxu0 0.0
    %827 = vmatpush.msra.mxu0 0.0
    %828 = vmatpush.msra.mxu0 0.0
    %829 = vmatpush.msra.mxu0 0.0
    %830 = vmatpush.msra.mxu0 %v811
    %831 = vmatpush.msra.mxu0 %v809
    %832 = vmatpush.msra.mxu0 %v807
    %833 = vmatpush.msra.mxu0 %v805
    %834 = vmatpush.msra.mxu0 %v803
    %835 = vmatpush.msra.mxu0 %v801
    %836 = vmatpush.msra.mxu0 %v799
    %837 = vmatpush.msra.mxu0 %v797
    %838 = vmatmul.f32.gmra.mxu0 %v820
    %v839 = vpop.f32.mrf.mxu0
    %v840 = vadd.f32 %v815, %v839
    %841 = vdwg.mxu0
    %842 = vmatpush.msra.mxu0 0.0
    %843 = vmatpush.msra.mxu0 0.0
    %844 = vmatpush.msra.mxu0 0.0
    %845 = vmatpush.msra.mxu0 0.0
    %846 = vmatpush.msra.mxu0 0.0
    %847 = vmatpush.msra.mxu0 0.0
    %848 = vmatpush.msra.mxu0 0.0
    %849 = vmatpush.msra.mxu0 0.0
    %850 = vmatpush.msra.mxu0 %v812
    %851 = vmatpush.msra.mxu0 %v810
    %852 = vmatpush.msra.mxu0 %v808
    %853 = vmatpush.msra.mxu0 %v806
    %854 = vmatpush.msra.mxu0 %v804
    %855 = vmatpush.msra.mxu0 %v802
    %856 = vmatpush.msra.mxu0 %v800
    %857 = vmatpush.msra.mxu0 %v798
    %858 = vmatmul.f32.gmra.mxu0 %v820
    %v859 = vpop.f32.mrf.mxu0
    %v860 = vadd.f32 %v816, %v859
    %861 = vdwg.mxu0
    %v862 = vtanh.pop %v840
    %v863 = vtanh.pop %v860
    %s864 = sadd.s32 %s121, 2
    %s865 = sld [smem:[#allocation4 + %s864]]
    %v866 = vstv %s865
    %v867 = vmul.f32 %v862, %v866
    %v868 = vadd.f32 %v635, %v867
    %s869 = scalar_lea.vmem [#allocation5], 16
    %v870 = vld [vmem:[%s869] sm:$0xff]
    %v871 = vmul.f32 %v863, %v870
    %v872 = vadd.f32 %v868, %v871
    %s873 = scalar_lea.vmem [#allocation14], 16
    %874 = vst.msk [vmem:[%s873] sm:$0xff] %vm169, %v872
    %v875 = vld [vmem:[#allocation10] sm:$0xff]
    %v876 = vld [vmem:[#allocation10 + $0x8] sm:$0xff]
    %v877 = vld [vmem:[#allocation10 + $0x10] sm:$0xff]
    %v878 = vld [vmem:[#allocation10 + $0x18] sm:$0xff]
    %v879 = vld [vmem:[%s3 + $0x3] sm:$0x1]
    %v880 = vperm.slane %v879, 0
    %v882 = vsel %vm169, %v872, 0
    %884 = vmatpush.msra.mxu0 0.0
    %885 = vmatpush.msra.mxu0 0.0
    %886 = vmatpush.msra.mxu0 0.0
    %887 = vmatpush.msra.mxu0 0.0
    %888 = vmatpush.msra.mxu0 0.0
    %889 = vmatpush.msra.mxu0 0.0
    %890 = vmatpush.msra.mxu0 0.0
    %891 = vmatpush.msra.mxu0 0.0
    %892 = vmatpush.msra.mxu0 0.0
    %893 = vmatpush.msra.mxu0 0.0
    %894 = vmatpush.msra.mxu0 0.0
    %895 = vmatpush.msra.mxu0 0.0
    %896 = vmatpush.msra.mxu0 %v878
    %897 = vmatpush.msra.mxu0 %v877
    %898 = vmatpush.msra.mxu0 %v876
    %899 = vmatpush.msra.mxu0 %v875
    %900 = vmatmul.f32.gmra.mxu0 %v882
    %v901 = vpop.f32.mrf.mxu0
    %v902 = vadd.f32 %v880, %v901
    %903 = vdwg.mxu0
    %v904 = vxor.u32 %v902, 2147483648
    %v905 = vmul.f32 %v904, 1.442695
    %v906 = vpow.pop %v905
    %v907 = vadd.f32 %v906, 1.0
    %v908 = vrcp.pop %v907
    %v909 = vmul.f32 %v907, %v908
    %v910 = vsub.f32 1.0, %v909
    %v911 = vmul.f32 %v908, %v910
    %v912 = vadd.f32 %v908, %v911
    %vm913 = vweird.f32 %v907
    %vm914 = vweird.f32 %v908
    %vm915 = vmor %vm913, %vm914
    %v916 = vsel %vm915, %v908, %v912
    %v917 = vand.u32 2147483647, %v907
    %vm918 = vcmp.eq.f32.partialorder %v917, 8.507059e+37
    %v919 = vand.u32 %v907, 2147483648
    %v920 = vor.u32 1.1754944e-38, %v919
    %v921 = vsel %vm918, %v920, %v916
    %v922 = vmul.f32 1.0, %v921
    %v923 = vmul.f32 %v902, %v922
    %v924 = vld [vmem:[#allocation11] sm:$0xff]
    %v925 = vld [vmem:[#allocation11 + $0x8] sm:$0xff]
    %v926 = vld [vmem:[#allocation11 + $0x10] sm:$0xff]
    %v927 = vld [vmem:[#allocation11 + $0x18] sm:$0xff]
    %v928 = vld [vmem:[#allocation11 + $0x20] sm:$0xff]
    %v929 = vld [vmem:[#allocation11 + $0x28] sm:$0xff]
    %v930 = vld [vmem:[#allocation11 + $0x30] sm:$0xff]
    %v931 = vld [vmem:[#allocation11 + $0x38] sm:$0xff]
    %v932 = vld [vmem:[%s8] sm:$0x1]
    %v934 = vperm.slane %v932, 0
    %v937 = vsel %vm225, %v923, 0
    %939 = vmatpush.msra.mxu0 0.0
    %940 = vmatpush.msra.mxu0 0.0
    %941 = vmatpush.msra.mxu0 0.0
    %942 = vmatpush.msra.mxu0 0.0
    %943 = vmatpush.msra.mxu0 0.0
    %944 = vmatpush.msra.mxu0 0.0
    %945 = vmatpush.msra.mxu0 0.0
    %946 = vmatpush.msra.mxu0 0.0
    %947 = vmatpush.msra.mxu0 %v931
    %948 = vmatpush.msra.mxu0 %v930
    %949 = vmatpush.msra.mxu0 %v929
    %950 = vmatpush.msra.mxu0 %v928
    %951 = vmatpush.msra.mxu0 %v927
    %952 = vmatpush.msra.mxu0 %v926
    %953 = vmatpush.msra.mxu0 %v925
    %954 = vmatpush.msra.mxu0 %v924
    %955 = vmatmul.f32.gmra.mxu0 %v937
    %v956 = vpop.f32.mrf.mxu0
    %v957 = vadd.f32 %v934, %v956
    %958 = vdwg.mxu0
    %v959 = vxor.u32 %v957, 2147483648
    %v960 = vmul.f32 %v959, 1.442695
    %v961 = vpow.pop %v960
    %v962 = vadd.f32 %v961, 1.0
    %v963 = vrcp.pop %v962
    %v964 = vmul.f32 %v962, %v963
    %v965 = vsub.f32 1.0, %v964
    %v966 = vmul.f32 %v963, %v965
    %v967 = vadd.f32 %v963, %v966
    %vm968 = vweird.f32 %v962
    %vm969 = vweird.f32 %v963
    %vm970 = vmor %vm968, %vm969
    %v971 = vsel %vm970, %v963, %v967
    %v972 = vand.u32 2147483647, %v962
    %vm973 = vcmp.eq.f32.partialorder %v972, 8.507059e+37
    %v974 = vand.u32 %v962, 2147483648
    %v975 = vor.u32 1.1754944e-38, %v974
    %v976 = vsel %vm973, %v975, %v971
    %v977 = vmul.f32 1.0, %v976
    %v978 = vmul.f32 %v957, %v977
    %v979 = vld [vmem:[%s269] sm:$0xff]
    %v980 = vld [vmem:[%s269 + $0x8] sm:$0xff]
    %v981 = vld [vmem:[%s269 + $0x10] sm:$0xff]
    %v982 = vld [vmem:[%s269 + $0x18] sm:$0xff]
    %v983 = vld [vmem:[%s269 + $0x20] sm:$0xff]
    %v984 = vld [vmem:[%s269 + $0x28] sm:$0xff]
    %v985 = vld [vmem:[%s269 + $0x30] sm:$0xff]
    %v986 = vld [vmem:[%s269 + $0x38] sm:$0xff]
    %v987 = vld [vmem:[%s278] sm:$0x1]
    %v989 = vperm.slane %v987, 0
    %v992 = vsel %vm225, %v978, 0
    %994 = vmatpush.msra.mxu0 0.0
    %995 = vmatpush.msra.mxu0 0.0
    %996 = vmatpush.msra.mxu0 0.0
    %997 = vmatpush.msra.mxu0 0.0
    %998 = vmatpush.msra.mxu0 0.0
    %999 = vmatpush.msra.mxu0 0.0
    %1000 = vmatpush.msra.mxu0 0.0
    %1001 = vmatpush.msra.mxu0 0.0
    %1002 = vmatpush.msra.mxu0 %v986
    %1003 = vmatpush.msra.mxu0 %v985
    %1004 = vmatpush.msra.mxu0 %v984
    %1005 = vmatpush.msra.mxu0 %v983
    %1006 = vmatpush.msra.mxu0 %v982
    %1007 = vmatpush.msra.mxu0 %v981
    %1008 = vmatpush.msra.mxu0 %v980
    %1009 = vmatpush.msra.mxu0 %v979
    %1010 = vmatmul.f32.gmra.mxu0 %v992
    %v1011 = vpop.f32.mrf.mxu0
    %v1012 = vadd.f32 %v989, %v1011
    %1013 = vdwg.mxu0
    %v1014 = vxor.u32 %v1012, 2147483648
    %v1015 = vmul.f32 %v1014, 1.442695
    %v1016 = vpow.pop %v1015
    %v1017 = vadd.f32 %v1016, 1.0
    %v1018 = vrcp.pop %v1017
    %v1019 = vmul.f32 %v1017, %v1018
    %v1020 = vsub.f32 1.0, %v1019
    %v1021 = vmul.f32 %v1018, %v1020
    %v1022 = vadd.f32 %v1018, %v1021
    %vm1023 = vweird.f32 %v1017
    %vm1024 = vweird.f32 %v1018
    %vm1025 = vmor %vm1023, %vm1024
    %v1026 = vsel %vm1025, %v1018, %v1022
    %v1027 = vand.u32 2147483647, %v1017
    %vm1028 = vcmp.eq.f32.partialorder %v1027, 8.507059e+37
    %v1029 = vand.u32 %v1017, 2147483648
    %v1030 = vor.u32 1.1754944e-38, %v1029
    %v1031 = vsel %vm1028, %v1030, %v1026
    %v1032 = vmul.f32 1.0, %v1031
    %v1033 = vmul.f32 %v1012, %v1032
    %v1034 = vld [vmem:[#allocation13] sm:$0xff]
    %v1035 = vld [vmem:[#allocation13 + $0x8] sm:$0xff]
    %v1036 = vld [vmem:[#allocation13 + $0x10] sm:$0xff]
    %v1037 = vld [vmem:[#allocation13 + $0x18] sm:$0xff]
    %v1038 = vld [vmem:[#allocation13 + $0x20] sm:$0xff]
    %v1039 = vld [vmem:[#allocation13 + $0x28] sm:$0xff]
    %v1040 = vld [vmem:[#allocation13 + $0x30] sm:$0xff]
    %v1041 = vld [vmem:[#allocation13 + $0x38] sm:$0xff]
    %v1042 = vld [vmem:[#allocation13 + $0x40] sm:$0xff]
    %v1043 = vld [vmem:[#allocation13 + $0x48] sm:$0xff]
    %v1044 = vld [vmem:[#allocation13 + $0x50] sm:$0xff]
    %v1045 = vld [vmem:[#allocation13 + $0x58] sm:$0xff]
    %v1046 = vld [vmem:[#allocation13 + $0x60] sm:$0xff]
    %v1047 = vld [vmem:[#allocation13 + $0x68] sm:$0xff]
    %v1048 = vld [vmem:[#allocation13 + $0x70] sm:$0xff]
    %v1049 = vld [vmem:[#allocation13 + $0x78] sm:$0xff]
    %v1050 = vld [vmem:[%s10] sm:$0x3]
    %v1052 = vperm.slane %v1050, 0
    %v1053 = vperm.slane %v1050, 1
    %v1057 = vsel %vm225, %v1033, 0
    %1059 = vmatpush.msra.mxu0 0.0
    %1060 = vmatpush.msra.mxu0 0.0
    %1061 = vmatpush.msra.mxu0 0.0
    %1062 = vmatpush.msra.mxu0 0.0
    %1063 = vmatpush.msra.mxu0 0.0
    %1064 = vmatpush.msra.mxu0 0.0
    %1065 = vmatpush.msra.mxu0 0.0
    %1066 = vmatpush.msra.mxu0 0.0
    %1067 = vmatpush.msra.mxu0 %v1048
    %1068 = vmatpush.msra.mxu0 %v1046
    %1069 = vmatpush.msra.mxu0 %v1044
    %1070 = vmatpush.msra.mxu0 %v1042
    %1071 = vmatpush.msra.mxu0 %v1040
    %1072 = vmatpush.msra.mxu0 %v1038
    %1073 = vmatpush.msra.mxu0 %v1036
    %1074 = vmatpush.msra.mxu0 %v1034
    %1075 = vmatmul.f32.gmra.mxu0 %v1057
    %v1076 = vpop.f32.mrf.mxu0
    %v1077 = vadd.f32 %v1052, %v1076
    %1078 = vdwg.mxu0
    %1079 = vmatpush.msra.mxu0 0.0
    %1080 = vmatpush.msra.mxu0 0.0
    %1081 = vmatpush.msra.mxu0 0.0
    %1082 = vmatpush.msra.mxu0 0.0
    %1083 = vmatpush.msra.mxu0 0.0
    %1084 = vmatpush.msra.mxu0 0.0
    %1085 = vmatpush.msra.mxu0 0.0
    %1086 = vmatpush.msra.mxu0 0.0
    %1087 = vmatpush.msra.mxu0 %v1049
    %1088 = vmatpush.msra.mxu0 %v1047
    %1089 = vmatpush.msra.mxu0 %v1045
    %1090 = vmatpush.msra.mxu0 %v1043
    %1091 = vmatpush.msra.mxu0 %v1041
    %1092 = vmatpush.msra.mxu0 %v1039
    %1093 = vmatpush.msra.mxu0 %v1037
    %1094 = vmatpush.msra.mxu0 %v1035
    %1095 = vmatmul.f32.gmra.mxu0 %v1057
    %v1096 = vpop.f32.mrf.mxu0
    %v1097 = vadd.f32 %v1053, %v1096
    %1098 = vdwg.mxu0
    %v1099 = vtanh.pop %v1077
    %v1100 = vtanh.pop %v1097
    %s1101 = sadd.s32 %s121, 3
    %s1102 = sld [smem:[#allocation4 + %s1101]]
    %v1103 = vstv %s1102
    %v1104 = vmul.f32 %v1099, %v1103
    %v1105 = vadd.f32 %v872, %v1104
    %s1106 = scalar_lea.vmem [#allocation5], 24
    %v1107 = vld [vmem:[%s1106] sm:$0xff]
    %v1108 = vmul.f32 %v1100, %v1107
    %v1109 = vadd.f32 %v1105, %v1108
    %s1110 = scalar_lea.vmem [#allocation14], 24
    %1111 = vst.msk [vmem:[%s1110] sm:$0xff] %vm169, %v1109
    %v1112 = vld [vmem:[#allocation10] sm:$0xff]
    %v1113 = vld [vmem:[#allocation10 + $0x8] sm:$0xff]
    %v1114 = vld [vmem:[#allocation10 + $0x10] sm:$0xff]
    %v1115 = vld [vmem:[#allocation10 + $0x18] sm:$0xff]
    %v1116 = vld [vmem:[%s3 + $0x4] sm:$0x1]
    %v1117 = vperm.slane %v1116, 0
    %v1119 = vsel %vm169, %v1109, 0
    %1121 = vmatpush.msra.mxu0 0.0
    %1122 = vmatpush.msra.mxu0 0.0
    %1123 = vmatpush.msra.mxu0 0.0
    %1124 = vmatpush.msra.mxu0 0.0
    %1125 = vmatpush.msra.mxu0 0.0
    %1126 = vmatpush.msra.mxu0 0.0
    %1127 = vmatpush.msra.mxu0 0.0
    %1128 = vmatpush.msra.mxu0 0.0
    %1129 = vmatpush.msra.mxu0 0.0
    %1130 = vmatpush.msra.mxu0 0.0
    %1131 = vmatpush.msra.mxu0 0.0
    %1132 = vmatpush.msra.mxu0 0.0
    %1133 = vmatpush.msra.mxu0 %v1115
    %1134 = vmatpush.msra.mxu0 %v1114
    %1135 = vmatpush.msra.mxu0 %v1113
    %1136 = vmatpush.msra.mxu0 %v1112
    %1137 = vmatmul.f32.gmra.mxu0 %v1119
    %v1138 = vpop.f32.mrf.mxu0
    %v1139 = vadd.f32 %v1117, %v1138
    %1140 = vdwg.mxu0
    %v1141 = vxor.u32 %v1139, 2147483648
    %v1142 = vmul.f32 %v1141, 1.442695
    %v1143 = vpow.pop %v1142
    %v1144 = vadd.f32 %v1143, 1.0
    %v1145 = vrcp.pop %v1144
    %v1146 = vmul.f32 %v1144, %v1145
    %v1147 = vsub.f32 1.0, %v1146
    %v1148 = vmul.f32 %v1145, %v1147
    %v1149 = vadd.f32 %v1145, %v1148
    %vm1150 = vweird.f32 %v1144
    %vm1151 = vweird.f32 %v1145
    %vm1152 = vmor %vm1150, %vm1151
    %v1153 = vsel %vm1152, %v1145, %v1149
    %v1154 = vand.u32 2147483647, %v1144
    %vm1155 = vcmp.eq.f32.partialorder %v1154, 8.507059e+37
    %v1156 = vand.u32 %v1144, 2147483648
    %v1157 = vor.u32 1.1754944e-38, %v1156
    %v1158 = vsel %vm1155, %v1157, %v1153
    %v1159 = vmul.f32 1.0, %v1158
    %v1160 = vmul.f32 %v1139, %v1159
    %v1161 = vld [vmem:[#allocation11] sm:$0xff]
    %v1162 = vld [vmem:[#allocation11 + $0x8] sm:$0xff]
    %v1163 = vld [vmem:[#allocation11 + $0x10] sm:$0xff]
    %v1164 = vld [vmem:[#allocation11 + $0x18] sm:$0xff]
    %v1165 = vld [vmem:[#allocation11 + $0x20] sm:$0xff]
    %v1166 = vld [vmem:[#allocation11 + $0x28] sm:$0xff]
    %v1167 = vld [vmem:[#allocation11 + $0x30] sm:$0xff]
    %v1168 = vld [vmem:[#allocation11 + $0x38] sm:$0xff]
    %v1169 = vld [vmem:[%s8] sm:$0x1]
    %v1171 = vperm.slane %v1169, 0
    %v1174 = vsel %vm225, %v1160, 0
    %1176 = vmatpush.msra.mxu0 0.0
    %1177 = vmatpush.msra.mxu0 0.0
    %1178 = vmatpush.msra.mxu0 0.0
    %1179 = vmatpush.msra.mxu0 0.0
    %1180 = vmatpush.msra.mxu0 0.0
    %1181 = vmatpush.msra.mxu0 0.0
    %1182 = vmatpush.msra.mxu0 0.0
    %1183 = vmatpush.msra.mxu0 0.0
    %1184 = vmatpush.msra.mxu0 %v1168
    %1185 = vmatpush.msra.mxu0 %v1167
    %1186 = vmatpush.msra.mxu0 %v1166
    %1187 = vmatpush.msra.mxu0 %v1165
    %1188 = vmatpush.msra.mxu0 %v1164
    %1189 = vmatpush.msra.mxu0 %v1163
    %1190 = vmatpush.msra.mxu0 %v1162
    %1191 = vmatpush.msra.mxu0 %v1161
    %1192 = vmatmul.f32.gmra.mxu0 %v1174
    %v1193 = vpop.f32.mrf.mxu0
    %v1194 = vadd.f32 %v1171, %v1193
    %1195 = vdwg.mxu0
    %v1196 = vxor.u32 %v1194, 2147483648
    %v1197 = vmul.f32 %v1196, 1.442695
    %v1198 = vpow.pop %v1197
    %v1199 = vadd.f32 %v1198, 1.0
    %v1200 = vrcp.pop %v1199
    %v1201 = vmul.f32 %v1199, %v1200
    %v1202 = vsub.f32 1.0, %v1201
    %v1203 = vmul.f32 %v1200, %v1202
    %v1204 = vadd.f32 %v1200, %v1203
    %vm1205 = vweird.f32 %v1199
    %vm1206 = vweird.f32 %v1200
    %vm1207 = vmor %vm1205, %vm1206
    %v1208 = vsel %vm1207, %v1200, %v1204
    %v1209 = vand.u32 2147483647, %v1199
    %vm1210 = vcmp.eq.f32.partialorder %v1209, 8.507059e+37
    %v1211 = vand.u32 %v1199, 2147483648
    %v1212 = vor.u32 1.1754944e-38, %v1211
    %v1213 = vsel %vm1210, %v1212, %v1208
    %v1214 = vmul.f32 1.0, %v1213
    %v1215 = vmul.f32 %v1194, %v1214
    %v1216 = vld [vmem:[%s269] sm:$0xff]
    %v1217 = vld [vmem:[%s269 + $0x8] sm:$0xff]
    %v1218 = vld [vmem:[%s269 + $0x10] sm:$0xff]
    %v1219 = vld [vmem:[%s269 + $0x18] sm:$0xff]
    %v1220 = vld [vmem:[%s269 + $0x20] sm:$0xff]
    %v1221 = vld [vmem:[%s269 + $0x28] sm:$0xff]
    %v1222 = vld [vmem:[%s269 + $0x30] sm:$0xff]
    %v1223 = vld [vmem:[%s269 + $0x38] sm:$0xff]
    %v1224 = vld [vmem:[%s278] sm:$0x1]
    %v1226 = vperm.slane %v1224, 0
    %v1229 = vsel %vm225, %v1215, 0
    %1231 = vmatpush.msra.mxu0 0.0
    %1232 = vmatpush.msra.mxu0 0.0
    %1233 = vmatpush.msra.mxu0 0.0
    %1234 = vmatpush.msra.mxu0 0.0
    %1235 = vmatpush.msra.mxu0 0.0
    %1236 = vmatpush.msra.mxu0 0.0
    %1237 = vmatpush.msra.mxu0 0.0
    %1238 = vmatpush.msra.mxu0 0.0
    %1239 = vmatpush.msra.mxu0 %v1223
    %1240 = vmatpush.msra.mxu0 %v1222
    %1241 = vmatpush.msra.mxu0 %v1221
    %1242 = vmatpush.msra.mxu0 %v1220
    %1243 = vmatpush.msra.mxu0 %v1219
    %1244 = vmatpush.msra.mxu0 %v1218
    %1245 = vmatpush.msra.mxu0 %v1217
    %1246 = vmatpush.msra.mxu0 %v1216
    %1247 = vmatmul.f32.gmra.mxu0 %v1229
    %v1248 = vpop.f32.mrf.mxu0
    %v1249 = vadd.f32 %v1226, %v1248
    %1250 = vdwg.mxu0
    %v1251 = vxor.u32 %v1249, 2147483648
    %v1252 = vmul.f32 %v1251, 1.442695
    %v1253 = vpow.pop %v1252
    %v1254 = vadd.f32 %v1253, 1.0
    %v1255 = vrcp.pop %v1254
    %v1256 = vmul.f32 %v1254, %v1255
    %v1257 = vsub.f32 1.0, %v1256
    %v1258 = vmul.f32 %v1255, %v1257
    %v1259 = vadd.f32 %v1255, %v1258
    %vm1260 = vweird.f32 %v1254
    %vm1261 = vweird.f32 %v1255
    %vm1262 = vmor %vm1260, %vm1261
    %v1263 = vsel %vm1262, %v1255, %v1259
    %v1264 = vand.u32 2147483647, %v1254
    %vm1265 = vcmp.eq.f32.partialorder %v1264, 8.507059e+37
    %v1266 = vand.u32 %v1254, 2147483648
    %v1267 = vor.u32 1.1754944e-38, %v1266
    %v1268 = vsel %vm1265, %v1267, %v1263
    %v1269 = vmul.f32 1.0, %v1268
    %v1270 = vmul.f32 %v1249, %v1269
    %v1271 = vld [vmem:[#allocation13] sm:$0xff]
    %v1272 = vld [vmem:[#allocation13 + $0x8] sm:$0xff]
    %v1273 = vld [vmem:[#allocation13 + $0x10] sm:$0xff]
    %v1274 = vld [vmem:[#allocation13 + $0x18] sm:$0xff]
    %v1275 = vld [vmem:[#allocation13 + $0x20] sm:$0xff]
    %v1276 = vld [vmem:[#allocation13 + $0x28] sm:$0xff]
    %v1277 = vld [vmem:[#allocation13 + $0x30] sm:$0xff]
    %v1278 = vld [vmem:[#allocation13 + $0x38] sm:$0xff]
    %v1279 = vld [vmem:[#allocation13 + $0x40] sm:$0xff]
    %v1280 = vld [vmem:[#allocation13 + $0x48] sm:$0xff]
    %v1281 = vld [vmem:[#allocation13 + $0x50] sm:$0xff]
    %v1282 = vld [vmem:[#allocation13 + $0x58] sm:$0xff]
    %v1283 = vld [vmem:[#allocation13 + $0x60] sm:$0xff]
    %v1284 = vld [vmem:[#allocation13 + $0x68] sm:$0xff]
    %v1285 = vld [vmem:[#allocation13 + $0x70] sm:$0xff]
    %v1286 = vld [vmem:[#allocation13 + $0x78] sm:$0xff]
    %v1287 = vld [vmem:[%s10] sm:$0x3]
    %v1289 = vperm.slane %v1287, 0
    %v1290 = vperm.slane %v1287, 1
    %v1294 = vsel %vm225, %v1270, 0
    %1296 = vmatpush.msra.mxu0 0.0
    %1297 = vmatpush.msra.mxu0 0.0
    %1298 = vmatpush.msra.mxu0 0.0
    %1299 = vmatpush.msra.mxu0 0.0
    %1300 = vmatpush.msra.mxu0 0.0
    %1301 = vmatpush.msra.mxu0 0.0
    %1302 = vmatpush.msra.mxu0 0.0
    %1303 = vmatpush.msra.mxu0 0.0
    %1304 = vmatpush.msra.mxu0 %v1285
    %1305 = vmatpush.msra.mxu0 %v1283
    %1306 = vmatpush.msra.mxu0 %v1281
    %1307 = vmatpush.msra.mxu0 %v1279
    %1308 = vmatpush.msra.mxu0 %v1277
    %1309 = vmatpush.msra.mxu0 %v1275
    %1310 = vmatpush.msra.mxu0 %v1273
    %1311 = vmatpush.msra.mxu0 %v1271
    %1312 = vmatmul.f32.gmra.mxu0 %v1294
    %v1313 = vpop.f32.mrf.mxu0
    %v1314 = vadd.f32 %v1289, %v1313
    %1315 = vdwg.mxu0
    %1316 = vmatpush.msra.mxu0 0.0
    %1317 = vmatpush.msra.mxu0 0.0
    %1318 = vmatpush.msra.mxu0 0.0
    %1319 = vmatpush.msra.mxu0 0.0
    %1320 = vmatpush.msra.mxu0 0.0
    %1321 = vmatpush.msra.mxu0 0.0
    %1322 = vmatpush.msra.mxu0 0.0
    %1323 = vmatpush.msra.mxu0 0.0
    %1324 = vmatpush.msra.mxu0 %v1286
    %1325 = vmatpush.msra.mxu0 %v1284
    %1326 = vmatpush.msra.mxu0 %v1282
    %1327 = vmatpush.msra.mxu0 %v1280
    %1328 = vmatpush.msra.mxu0 %v1278
    %1329 = vmatpush.msra.mxu0 %v1276
    %1330 = vmatpush.msra.mxu0 %v1274
    %1331 = vmatpush.msra.mxu0 %v1272
    %1332 = vmatmul.f32.gmra.mxu0 %v1294
    %v1333 = vpop.f32.mrf.mxu0
    %v1334 = vadd.f32 %v1290, %v1333
    %1335 = vdwg.mxu0
    %v1336 = vtanh.pop %v1314
    %v1337 = vtanh.pop %v1334
    %s1338 = sadd.s32 %s121, 4
    %s1339 = sld [smem:[#allocation4 + %s1338]]
    %v1340 = vstv %s1339
    %v1341 = vmul.f32 %v1336, %v1340
    %v1342 = vadd.f32 %v1109, %v1341
    %s1343 = scalar_lea.vmem [#allocation5], 32
    %v1344 = vld [vmem:[%s1343] sm:$0xff]
    %v1345 = vmul.f32 %v1337, %v1344
    %v1346 = vadd.f32 %v1342, %v1345
    %s1347 = scalar_lea.vmem [#allocation14], 32
    %1348 = vst.msk [vmem:[%s1347] sm:$0xff] %vm169, %v1346
    %v1349 = vld [vmem:[#allocation10] sm:$0xff]
    %v1350 = vld [vmem:[#allocation10 + $0x8] sm:$0xff]
    %v1351 = vld [vmem:[#allocation10 + $0x10] sm:$0xff]
    %v1352 = vld [vmem:[#allocation10 + $0x18] sm:$0xff]
    %v1353 = vld [vmem:[%s3 + $0x5] sm:$0x1]
    %v1354 = vperm.slane %v1353, 0
    %v1356 = vsel %vm169, %v1346, 0
    %1358 = vmatpush.msra.mxu0 0.0
    %1359 = vmatpush.msra.mxu0 0.0
    %1360 = vmatpush.msra.mxu0 0.0
    %1361 = vmatpush.msra.mxu0 0.0
    %1362 = vmatpush.msra.mxu0 0.0
    %1363 = vmatpush.msra.mxu0 0.0
    %1364 = vmatpush.msra.mxu0 0.0
    %1365 = vmatpush.msra.mxu0 0.0
    %1366 = vmatpush.msra.mxu0 0.0
    %1367 = vmatpush.msra.mxu0 0.0
    %1368 = vmatpush.msra.mxu0 0.0
    %1369 = vmatpush.msra.mxu0 0.0
    %1370 = vmatpush.msra.mxu0 %v1352
    %1371 = vmatpush.msra.mxu0 %v1351
    %1372 = vmatpush.msra.mxu0 %v1350
    %1373 = vmatpush.msra.mxu0 %v1349
    %1374 = vmatmul.f32.gmra.mxu0 %v1356
    %v1375 = vpop.f32.mrf.mxu0
    %v1376 = vadd.f32 %v1354, %v1375
    %1377 = vdwg.mxu0
    %v1378 = vxor.u32 %v1376, 2147483648
    %v1379 = vmul.f32 %v1378, 1.442695
    %v1380 = vpow.pop %v1379
    %v1381 = vadd.f32 %v1380, 1.0
    %v1382 = vrcp.pop %v1381
    %v1383 = vmul.f32 %v1381, %v1382
    %v1384 = vsub.f32 1.0, %v1383
    %v1385 = vmul.f32 %v1382, %v1384
    %v1386 = vadd.f32 %v1382, %v1385
    %vm1387 = vweird.f32 %v1381
    %vm1388 = vweird.f32 %v1382
    %vm1389 = vmor %vm1387, %vm1388
    %v1390 = vsel %vm1389, %v1382, %v1386
    %v1391 = vand.u32 2147483647, %v1381
    %vm1392 = vcmp.eq.f32.partialorder %v1391, 8.507059e+37
    %v1393 = vand.u32 %v1381, 2147483648
    %v1394 = vor.u32 1.1754944e-38, %v1393
    %v1395 = vsel %vm1392, %v1394, %v1390
    %v1396 = vmul.f32 1.0, %v1395
    %v1397 = vmul.f32 %v1376, %v1396
    %v1398 = vld [vmem:[#allocation11] sm:$0xff]
    %v1399 = vld [vmem:[#allocation11 + $0x8] sm:$0xff]
    %v1400 = vld [vmem:[#allocation11 + $0x10] sm:$0xff]
    %v1401 = vld [vmem:[#allocation11 + $0x18] sm:$0xff]
    %v1402 = vld [vmem:[#allocation11 + $0x20] sm:$0xff]
    %v1403 = vld [vmem:[#allocation11 + $0x28] sm:$0xff]
    %v1404 = vld [vmem:[#allocation11 + $0x30] sm:$0xff]
    %v1405 = vld [vmem:[#allocation11 + $0x38] sm:$0xff]
    %v1406 = vld [vmem:[%s8] sm:$0x1]
    %v1408 = vperm.slane %v1406, 0
    %v1411 = vsel %vm225, %v1397, 0
    %1413 = vmatpush.msra.mxu0 0.0
    %1414 = vmatpush.msra.mxu0 0.0
    %1415 = vmatpush.msra.mxu0 0.0
    %1416 = vmatpush.msra.mxu0 0.0
    %1417 = vmatpush.msra.mxu0 0.0
    %1418 = vmatpush.msra.mxu0 0.0
    %1419 = vmatpush.msra.mxu0 0.0
    %1420 = vmatpush.msra.mxu0 0.0
    %1421 = vmatpush.msra.mxu0 %v1405
    %1422 = vmatpush.msra.mxu0 %v1404
    %1423 = vmatpush.msra.mxu0 %v1403
    %1424 = vmatpush.msra.mxu0 %v1402
    %1425 = vmatpush.msra.mxu0 %v1401
    %1426 = vmatpush.msra.mxu0 %v1400
    %1427 = vmatpush.msra.mxu0 %v1399
    %1428 = vmatpush.msra.mxu0 %v1398
    %1429 = vmatmul.f32.gmra.mxu0 %v1411
    %v1430 = vpop.f32.mrf.mxu0
    %v1431 = vadd.f32 %v1408, %v1430
    %1432 = vdwg.mxu0
    %v1433 = vxor.u32 %v1431, 2147483648
    %v1434 = vmul.f32 %v1433, 1.442695
    %v1435 = vpow.pop %v1434
    %v1436 = vadd.f32 %v1435, 1.0
    %v1437 = vrcp.pop %v1436
    %v1438 = vmul.f32 %v1436, %v1437
    %v1439 = vsub.f32 1.0, %v1438
    %v1440 = vmul.f32 %v1437, %v1439
    %v1441 = vadd.f32 %v1437, %v1440
    %vm1442 = vweird.f32 %v1436
    %vm1443 = vweird.f32 %v1437
    %vm1444 = vmor %vm1442, %vm1443
    %v1445 = vsel %vm1444, %v1437, %v1441
    %v1446 = vand.u32 2147483647, %v1436
    %vm1447 = vcmp.eq.f32.partialorder %v1446, 8.507059e+37
    %v1448 = vand.u32 %v1436, 2147483648
    %v1449 = vor.u32 1.1754944e-38, %v1448
    %v1450 = vsel %vm1447, %v1449, %v1445
    %v1451 = vmul.f32 1.0, %v1450
    %v1452 = vmul.f32 %v1431, %v1451
    %v1453 = vld [vmem:[%s269] sm:$0xff]
    %v1454 = vld [vmem:[%s269 + $0x8] sm:$0xff]
    %v1455 = vld [vmem:[%s269 + $0x10] sm:$0xff]
    %v1456 = vld [vmem:[%s269 + $0x18] sm:$0xff]
    %v1457 = vld [vmem:[%s269 + $0x20] sm:$0xff]
    %v1458 = vld [vmem:[%s269 + $0x28] sm:$0xff]
    %v1459 = vld [vmem:[%s269 + $0x30] sm:$0xff]
    %v1460 = vld [vmem:[%s269 + $0x38] sm:$0xff]
    %v1461 = vld [vmem:[%s278] sm:$0x1]
    %v1463 = vperm.slane %v1461, 0
    %v1466 = vsel %vm225, %v1452, 0
    %1468 = vmatpush.msra.mxu0 0.0
    %1469 = vmatpush.msra.mxu0 0.0
    %1470 = vmatpush.msra.mxu0 0.0
    %1471 = vmatpush.msra.mxu0 0.0
    %1472 = vmatpush.msra.mxu0 0.0
    %1473 = vmatpush.msra.mxu0 0.0
    %1474 = vmatpush.msra.mxu0 0.0
    %1475 = vmatpush.msra.mxu0 0.0
    %1476 = vmatpush.msra.mxu0 %v1460
    %1477 = vmatpush.msra.mxu0 %v1459
    %1478 = vmatpush.msra.mxu0 %v1458
    %1479 = vmatpush.msra.mxu0 %v1457
    %1480 = vmatpush.msra.mxu0 %v1456
    %1481 = vmatpush.msra.mxu0 %v1455
    %1482 = vmatpush.msra.mxu0 %v1454
    %1483 = vmatpush.msra.mxu0 %v1453
    %1484 = vmatmul.f32.gmra.mxu0 %v1466
    %v1485 = vpop.f32.mrf.mxu0
    %v1486 = vadd.f32 %v1463, %v1485
    %1487 = vdwg.mxu0
    %v1488 = vxor.u32 %v1486, 2147483648
    %v1489 = vmul.f32 %v1488, 1.442695
    %v1490 = vpow.pop %v1489
    %v1491 = vadd.f32 %v1490, 1.0
    %v1492 = vrcp.pop %v1491
    %v1493 = vmul.f32 %v1491, %v1492
    %v1494 = vsub.f32 1.0, %v1493
    %v1495 = vmul.f32 %v1492, %v1494
    %v1496 = vadd.f32 %v1492, %v1495
    %vm1497 = vweird.f32 %v1491
    %vm1498 = vweird.f32 %v1492
    %vm1499 = vmor %vm1497, %vm1498
    %v1500 = vsel %vm1499, %v1492, %v1496
    %v1501 = vand.u32 2147483647, %v1491
    %vm1502 = vcmp.eq.f32.partialorder %v1501, 8.507059e+37
    %v1503 = vand.u32 %v1491, 2147483648
    %v1504 = vor.u32 1.1754944e-38, %v1503
    %v1505 = vsel %vm1502, %v1504, %v1500
    %v1506 = vmul.f32 1.0, %v1505
    %v1507 = vmul.f32 %v1486, %v1506
    %v1508 = vld [vmem:[#allocation13] sm:$0xff]
    %v1509 = vld [vmem:[#allocation13 + $0x8] sm:$0xff]
    %v1510 = vld [vmem:[#allocation13 + $0x10] sm:$0xff]
    %v1511 = vld [vmem:[#allocation13 + $0x18] sm:$0xff]
    %v1512 = vld [vmem:[#allocation13 + $0x20] sm:$0xff]
    %v1513 = vld [vmem:[#allocation13 + $0x28] sm:$0xff]
    %v1514 = vld [vmem:[#allocation13 + $0x30] sm:$0xff]
    %v1515 = vld [vmem:[#allocation13 + $0x38] sm:$0xff]
    %v1516 = vld [vmem:[#allocation13 + $0x40] sm:$0xff]
    %v1517 = vld [vmem:[#allocation13 + $0x48] sm:$0xff]
    %v1518 = vld [vmem:[#allocation13 + $0x50] sm:$0xff]
    %v1519 = vld [vmem:[#allocation13 + $0x58] sm:$0xff]
    %v1520 = vld [vmem:[#allocation13 + $0x60] sm:$0xff]
    %v1521 = vld [vmem:[#allocation13 + $0x68] sm:$0xff]
    %v1522 = vld [vmem:[#allocation13 + $0x70] sm:$0xff]
    %v1523 = vld [vmem:[#allocation13 + $0x78] sm:$0xff]
    %v1524 = vld [vmem:[%s10] sm:$0x3]
    %v1526 = vperm.slane %v1524, 0
    %v1527 = vperm.slane %v1524, 1
    %v1531 = vsel %vm225, %v1507, 0
    %1533 = vmatpush.msra.mxu0 0.0
    %1534 = vmatpush.msra.mxu0 0.0
    %1535 = vmatpush.msra.mxu0 0.0
    %1536 = vmatpush.msra.mxu0 0.0
    %1537 = vmatpush.msra.mxu0 0.0
    %1538 = vmatpush.msra.mxu0 0.0
    %1539 = vmatpush.msra.mxu0 0.0
    %1540 = vmatpush.msra.mxu0 0.0
    %1541 = vmatpush.msra.mxu0 %v1522
    %1542 = vmatpush.msra.mxu0 %v1520
    %1543 = vmatpush.msra.mxu0 %v1518
    %1544 = vmatpush.msra.mxu0 %v1516
    %1545 = vmatpush.msra.mxu0 %v1514
    %1546 = vmatpush.msra.mxu0 %v1512
    %1547 = vmatpush.msra.mxu0 %v1510
    %1548 = vmatpush.msra.mxu0 %v1508
    %1549 = vmatmul.f32.gmra.mxu0 %v1531
    %v1550 = vpop.f32.mrf.mxu0
    %v1551 = vadd.f32 %v1526, %v1550
    %1552 = vdwg.mxu0
    %1553 = vmatpush.msra.mxu0 0.0
    %1554 = vmatpush.msra.mxu0 0.0
    %1555 = vmatpush.msra.mxu0 0.0
    %1556 = vmatpush.msra.mxu0 0.0
    %1557 = vmatpush.msra.mxu0 0.0
    %1558 = vmatpush.msra.mxu0 0.0
    %1559 = vmatpush.msra.mxu0 0.0
    %1560 = vmatpush.msra.mxu0 0.0
    %1561 = vmatpush.msra.mxu0 %v1523
    %1562 = vmatpush.msra.mxu0 %v1521
    %1563 = vmatpush.msra.mxu0 %v1519
    %1564 = vmatpush.msra.mxu0 %v1517
    %1565 = vmatpush.msra.mxu0 %v1515
    %1566 = vmatpush.msra.mxu0 %v1513
    %1567 = vmatpush.msra.mxu0 %v1511
    %1568 = vmatpush.msra.mxu0 %v1509
    %1569 = vmatmul.f32.gmra.mxu0 %v1531
    %v1570 = vpop.f32.mrf.mxu0
    %v1571 = vadd.f32 %v1527, %v1570
    %1572 = vdwg.mxu0
    %v1573 = vtanh.pop %v1551
    %v1574 = vtanh.pop %v1571
    %s1575 = sadd.s32 %s121, 5
    %s1576 = sld [smem:[#allocation4 + %s1575]]
    %v1577 = vstv %s1576
    %v1578 = vmul.f32 %v1573, %v1577
    %v1579 = vadd.f32 %v1346, %v1578
    %s1580 = scalar_lea.vmem [#allocation5], 40
    %v1581 = vld [vmem:[%s1580] sm:$0xff]
    %v1582 = vmul.f32 %v1574, %v1581
    %v1583 = vadd.f32 %v1579, %v1582
    %s1584 = scalar_lea.vmem [#allocation14], 40
    %1585 = vst.msk [vmem:[%s1584] sm:$0xff] %vm169, %v1583
    %v1586 = vld [vmem:[#allocation10] sm:$0xff]
    %v1587 = vld [vmem:[#allocation10 + $0x8] sm:$0xff]
    %v1588 = vld [vmem:[#allocation10 + $0x10] sm:$0xff]
    %v1589 = vld [vmem:[#allocation10 + $0x18] sm:$0xff]
    %v1590 = vld [vmem:[%s3 + $0x6] sm:$0x1]
    %v1591 = vperm.slane %v1590, 0
    %v1593 = vsel %vm169, %v1583, 0
    %1595 = vmatpush.msra.mxu0 0.0
    %1596 = vmatpush.msra.mxu0 0.0
    %1597 = vmatpush.msra.mxu0 0.0
    %1598 = vmatpush.msra.mxu0 0.0
    %1599 = vmatpush.msra.mxu0 0.0
    %1600 = vmatpush.msra.mxu0 0.0
    %1601 = vmatpush.msra.mxu0 0.0
    %1602 = vmatpush.msra.mxu0 0.0
    %1603 = vmatpush.msra.mxu0 0.0
    %1604 = vmatpush.msra.mxu0 0.0
    %1605 = vmatpush.msra.mxu0 0.0
    %1606 = vmatpush.msra.mxu0 0.0
    %1607 = vmatpush.msra.mxu0 %v1589
    %1608 = vmatpush.msra.mxu0 %v1588
    %1609 = vmatpush.msra.mxu0 %v1587
    %1610 = vmatpush.msra.mxu0 %v1586
    %1611 = vmatmul.f32.gmra.mxu0 %v1593
    %v1612 = vpop.f32.mrf.mxu0
    %v1613 = vadd.f32 %v1591, %v1612
    %1614 = vdwg.mxu0
    %v1615 = vxor.u32 %v1613, 2147483648
    %v1616 = vmul.f32 %v1615, 1.442695
    %v1617 = vpow.pop %v1616
    %v1618 = vadd.f32 %v1617, 1.0
    %v1619 = vrcp.pop %v1618
    %v1620 = vmul.f32 %v1618, %v1619
    %v1621 = vsub.f32 1.0, %v1620
    %v1622 = vmul.f32 %v1619, %v1621
    %v1623 = vadd.f32 %v1619, %v1622
    %vm1624 = vweird.f32 %v1618
    %vm1625 = vweird.f32 %v1619
    %vm1626 = vmor %vm1624, %vm1625
    %v1627 = vsel %vm1626, %v1619, %v1623
    %v1628 = vand.u32 2147483647, %v1618
    %vm1629 = vcmp.eq.f32.partialorder %v1628, 8.507059e+37
    %v1630 = vand.u32 %v1618, 2147483648
    %v1631 = vor.u32 1.1754944e-38, %v1630
    %v1632 = vsel %vm1629, %v1631, %v1627
    %v1633 = vmul.f32 1.0, %v1632
    %v1634 = vmul.f32 %v1613, %v1633
    %v1635 = vld [vmem:[#allocation11] sm:$0xff]
    %v1636 = vld [vmem:[#allocation11 + $0x8] sm:$0xff]
    %v1637 = vld [vmem:[#allocation11 + $0x10] sm:$0xff]
    %v1638 = vld [vmem:[#allocation11 + $0x18] sm:$0xff]
    %v1639 = vld [vmem:[#allocation11 + $0x20] sm:$0xff]
    %v1640 = vld [vmem:[#allocation11 + $0x28] sm:$0xff]
    %v1641 = vld [vmem:[#allocation11 + $0x30] sm:$0xff]
    %v1642 = vld [vmem:[#allocation11 + $0x38] sm:$0xff]
    %v1643 = vld [vmem:[%s8] sm:$0x1]
    %v1645 = vperm.slane %v1643, 0
    %v1648 = vsel %vm225, %v1634, 0
    %1650 = vmatpush.msra.mxu0 0.0
    %1651 = vmatpush.msra.mxu0 0.0
    %1652 = vmatpush.msra.mxu0 0.0
    %1653 = vmatpush.msra.mxu0 0.0
    %1654 = vmatpush.msra.mxu0 0.0
    %1655 = vmatpush.msra.mxu0 0.0
    %1656 = vmatpush.msra.mxu0 0.0
    %1657 = vmatpush.msra.mxu0 0.0
    %1658 = vmatpush.msra.mxu0 %v1642
    %1659 = vmatpush.msra.mxu0 %v1641
    %1660 = vmatpush.msra.mxu0 %v1640
    %1661 = vmatpush.msra.mxu0 %v1639
    %1662 = vmatpush.msra.mxu0 %v1638
    %1663 = vmatpush.msra.mxu0 %v1637
    %1664 = vmatpush.msra.mxu0 %v1636
    %1665 = vmatpush.msra.mxu0 %v1635
    %1666 = vmatmul.f32.gmra.mxu0 %v1648
    %v1667 = vpop.f32.mrf.mxu0
    %v1668 = vadd.f32 %v1645, %v1667
    %1669 = vdwg.mxu0
    %v1670 = vxor.u32 %v1668, 2147483648
    %v1671 = vmul.f32 %v1670, 1.442695
    %v1672 = vpow.pop %v1671
    %v1673 = vadd.f32 %v1672, 1.0
    %v1674 = vrcp.pop %v1673
    %v1675 = vmul.f32 %v1673, %v1674
    %v1676 = vsub.f32 1.0, %v1675
    %v1677 = vmul.f32 %v1674, %v1676
    %v1678 = vadd.f32 %v1674, %v1677
    %vm1679 = vweird.f32 %v1673
    %vm1680 = vweird.f32 %v1674
    %vm1681 = vmor %vm1679, %vm1680
    %v1682 = vsel %vm1681, %v1674, %v1678
    %v1683 = vand.u32 2147483647, %v1673
    %vm1684 = vcmp.eq.f32.partialorder %v1683, 8.507059e+37
    %v1685 = vand.u32 %v1673, 2147483648
    %v1686 = vor.u32 1.1754944e-38, %v1685
    %v1687 = vsel %vm1684, %v1686, %v1682
    %v1688 = vmul.f32 1.0, %v1687
    %v1689 = vmul.f32 %v1668, %v1688
    %v1690 = vld [vmem:[%s269] sm:$0xff]
    %v1691 = vld [vmem:[%s269 + $0x8] sm:$0xff]
    %v1692 = vld [vmem:[%s269 + $0x10] sm:$0xff]
    %v1693 = vld [vmem:[%s269 + $0x18] sm:$0xff]
    %v1694 = vld [vmem:[%s269 + $0x20] sm:$0xff]
    %v1695 = vld [vmem:[%s269 + $0x28] sm:$0xff]
    %v1696 = vld [vmem:[%s269 + $0x30] sm:$0xff]
    %v1697 = vld [vmem:[%s269 + $0x38] sm:$0xff]
    %v1698 = vld [vmem:[%s278] sm:$0x1]
    %v1700 = vperm.slane %v1698, 0
    %v1703 = vsel %vm225, %v1689, 0
    %1705 = vmatpush.msra.mxu0 0.0
    %1706 = vmatpush.msra.mxu0 0.0
    %1707 = vmatpush.msra.mxu0 0.0
    %1708 = vmatpush.msra.mxu0 0.0
    %1709 = vmatpush.msra.mxu0 0.0
    %1710 = vmatpush.msra.mxu0 0.0
    %1711 = vmatpush.msra.mxu0 0.0
    %1712 = vmatpush.msra.mxu0 0.0
    %1713 = vmatpush.msra.mxu0 %v1697
    %1714 = vmatpush.msra.mxu0 %v1696
    %1715 = vmatpush.msra.mxu0 %v1695
    %1716 = vmatpush.msra.mxu0 %v1694
    %1717 = vmatpush.msra.mxu0 %v1693
    %1718 = vmatpush.msra.mxu0 %v1692
    %1719 = vmatpush.msra.mxu0 %v1691
    %1720 = vmatpush.msra.mxu0 %v1690
    %1721 = vmatmul.f32.gmra.mxu0 %v1703
    %v1722 = vpop.f32.mrf.mxu0
    %v1723 = vadd.f32 %v1700, %v1722
    %1724 = vdwg.mxu0
    %v1725 = vxor.u32 %v1723, 2147483648
    %v1726 = vmul.f32 %v1725, 1.442695
    %v1727 = vpow.pop %v1726
    %v1728 = vadd.f32 %v1727, 1.0
    %v1729 = vrcp.pop %v1728
    %v1730 = vmul.f32 %v1728, %v1729
    %v1731 = vsub.f32 1.0, %v1730
    %v1732 = vmul.f32 %v1729, %v1731
    %v1733 = vadd.f32 %v1729, %v1732
    %vm1734 = vweird.f32 %v1728
    %vm1735 = vweird.f32 %v1729
    %vm1736 = vmor %vm1734, %vm1735
    %v1737 = vsel %vm1736, %v1729, %v1733
    %v1738 = vand.u32 2147483647, %v1728
    %vm1739 = vcmp.eq.f32.partialorder %v1738, 8.507059e+37
    %v1740 = vand.u32 %v1728, 2147483648
    %v1741 = vor.u32 1.1754944e-38, %v1740
    %v1742 = vsel %vm1739, %v1741, %v1737
    %v1743 = vmul.f32 1.0, %v1742
    %v1744 = vmul.f32 %v1723, %v1743
    %v1745 = vld [vmem:[#allocation13] sm:$0xff]
    %v1746 = vld [vmem:[#allocation13 + $0x8] sm:$0xff]
    %v1747 = vld [vmem:[#allocation13 + $0x10] sm:$0xff]
    %v1748 = vld [vmem:[#allocation13 + $0x18] sm:$0xff]
    %v1749 = vld [vmem:[#allocation13 + $0x20] sm:$0xff]
    %v1750 = vld [vmem:[#allocation13 + $0x28] sm:$0xff]
    %v1751 = vld [vmem:[#allocation13 + $0x30] sm:$0xff]
    %v1752 = vld [vmem:[#allocation13 + $0x38] sm:$0xff]
    %v1753 = vld [vmem:[#allocation13 + $0x40] sm:$0xff]
    %v1754 = vld [vmem:[#allocation13 + $0x48] sm:$0xff]
    %v1755 = vld [vmem:[#allocation13 + $0x50] sm:$0xff]
    %v1756 = vld [vmem:[#allocation13 + $0x58] sm:$0xff]
    %v1757 = vld [vmem:[#allocation13 + $0x60] sm:$0xff]
    %v1758 = vld [vmem:[#allocation13 + $0x68] sm:$0xff]
    %v1759 = vld [vmem:[#allocation13 + $0x70] sm:$0xff]
    %v1760 = vld [vmem:[#allocation13 + $0x78] sm:$0xff]
    %v1761 = vld [vmem:[%s10] sm:$0x3]
    %v1763 = vperm.slane %v1761, 0
    %v1764 = vperm.slane %v1761, 1
    %v1768 = vsel %vm225, %v1744, 0
    %1770 = vmatpush.msra.mxu0 0.0
    %1771 = vmatpush.msra.mxu0 0.0
    %1772 = vmatpush.msra.mxu0 0.0
    %1773 = vmatpush.msra.mxu0 0.0
    %1774 = vmatpush.msra.mxu0 0.0
    %1775 = vmatpush.msra.mxu0 0.0
    %1776 = vmatpush.msra.mxu0 0.0
    %1777 = vmatpush.msra.mxu0 0.0
    %1778 = vmatpush.msra.mxu0 %v1759
    %1779 = vmatpush.msra.mxu0 %v1757
    %1780 = vmatpush.msra.mxu0 %v1755
    %1781 = vmatpush.msra.mxu0 %v1753
    %1782 = vmatpush.msra.mxu0 %v1751
    %1783 = vmatpush.msra.mxu0 %v1749
    %1784 = vmatpush.msra.mxu0 %v1747
    %1785 = vmatpush.msra.mxu0 %v1745
    %1786 = vmatmul.f32.gmra.mxu0 %v1768
    %v1787 = vpop.f32.mrf.mxu0
    %v1788 = vadd.f32 %v1763, %v1787
    %1789 = vdwg.mxu0
    %1790 = vmatpush.msra.mxu0 0.0
    %1791 = vmatpush.msra.mxu0 0.0
    %1792 = vmatpush.msra.mxu0 0.0
    %1793 = vmatpush.msra.mxu0 0.0
    %1794 = vmatpush.msra.mxu0 0.0
    %1795 = vmatpush.msra.mxu0 0.0
    %1796 = vmatpush.msra.mxu0 0.0
    %1797 = vmatpush.msra.mxu0 0.0
    %1798 = vmatpush.msra.mxu0 %v1760
    %1799 = vmatpush.msra.mxu0 %v1758
    %1800 = vmatpush.msra.mxu0 %v1756
    %1801 = vmatpush.msra.mxu0 %v1754
    %1802 = vmatpush.msra.mxu0 %v1752
    %1803 = vmatpush.msra.mxu0 %v1750
    %1804 = vmatpush.msra.mxu0 %v1748
    %1805 = vmatpush.msra.mxu0 %v1746
    %1806 = vmatmul.f32.gmra.mxu0 %v1768
    %v1807 = vpop.f32.mrf.mxu0
    %v1808 = vadd.f32 %v1764, %v1807
    %1809 = vdwg.mxu0
    %v1810 = vtanh.pop %v1788
    %v1811 = vtanh.pop %v1808
    %s1812 = sadd.s32 %s121, 6
    %s1813 = sld [smem:[#allocation4 + %s1812]]
    %v1814 = vstv %s1813
    %v1815 = vmul.f32 %v1810, %v1814
    %v1816 = vadd.f32 %v1583, %v1815
    %s1817 = scalar_lea.vmem [#allocation5], 48
    %v1818 = vld [vmem:[%s1817] sm:$0xff]
    %v1819 = vmul.f32 %v1811, %v1818
    %v1820 = vadd.f32 %v1816, %v1819
    %s1821 = scalar_lea.vmem [#allocation14], 48
    %1822 = vst.msk [vmem:[%s1821] sm:$0xff] %vm169, %v1820
    %v1823 = vld [vmem:[#allocation10] sm:$0xff]
    %v1824 = vld [vmem:[#allocation10 + $0x8] sm:$0xff]
    %v1825 = vld [vmem:[#allocation10 + $0x10] sm:$0xff]
    %v1826 = vld [vmem:[#allocation10 + $0x18] sm:$0xff]
    %v1827 = vld [vmem:[%s3 + $0x7] sm:$0x1]
    %v1828 = vperm.slane %v1827, 0
    %v1830 = vsel %vm169, %v1820, 0
    %1832 = vmatpush.msra.mxu0 0.0
    %1833 = vmatpush.msra.mxu0 0.0
    %1834 = vmatpush.msra.mxu0 0.0
    %1835 = vmatpush.msra.mxu0 0.0
    %1836 = vmatpush.msra.mxu0 0.0
    %1837 = vmatpush.msra.mxu0 0.0
    %1838 = vmatpush.msra.mxu0 0.0
    %1839 = vmatpush.msra.mxu0 0.0
    %1840 = vmatpush.msra.mxu0 0.0
    %1841 = vmatpush.msra.mxu0 0.0
    %1842 = vmatpush.msra.mxu0 0.0
    %1843 = vmatpush.msra.mxu0 0.0
    %1844 = vmatpush.msra.mxu0 %v1826
    %1845 = vmatpush.msra.mxu0 %v1825
    %1846 = vmatpush.msra.mxu0 %v1824
    %1847 = vmatpush.msra.mxu0 %v1823
    %1848 = vmatmul.f32.gmra.mxu0 %v1830
    %v1849 = vpop.f32.mrf.mxu0
    %v1850 = vadd.f32 %v1828, %v1849
    %1851 = vdwg.mxu0
    %v1852 = vxor.u32 %v1850, 2147483648
    %v1853 = vmul.f32 %v1852, 1.442695
    %v1854 = vpow.pop %v1853
    %v1855 = vadd.f32 %v1854, 1.0
    %v1856 = vrcp.pop %v1855
    %v1857 = vmul.f32 %v1855, %v1856
    %v1858 = vsub.f32 1.0, %v1857
    %v1859 = vmul.f32 %v1856, %v1858
    %v1860 = vadd.f32 %v1856, %v1859
    %vm1861 = vweird.f32 %v1855
    %vm1862 = vweird.f32 %v1856
    %vm1863 = vmor %vm1861, %vm1862
    %v1864 = vsel %vm1863, %v1856, %v1860
    %v1865 = vand.u32 2147483647, %v1855
    %vm1866 = vcmp.eq.f32.partialorder %v1865, 8.507059e+37
    %v1867 = vand.u32 %v1855, 2147483648
    %v1868 = vor.u32 1.1754944e-38, %v1867
    %v1869 = vsel %vm1866, %v1868, %v1864
    %v1870 = vmul.f32 1.0, %v1869
    %v1871 = vmul.f32 %v1850, %v1870
    %v1872 = vld [vmem:[#allocation11] sm:$0xff]
    %v1873 = vld [vmem:[#allocation11 + $0x8] sm:$0xff]
    %v1874 = vld [vmem:[#allocation11 + $0x10] sm:$0xff]
    %v1875 = vld [vmem:[#allocation11 + $0x18] sm:$0xff]
    %v1876 = vld [vmem:[#allocation11 + $0x20] sm:$0xff]
    %v1877 = vld [vmem:[#allocation11 + $0x28] sm:$0xff]
    %v1878 = vld [vmem:[#allocation11 + $0x30] sm:$0xff]
    %v1879 = vld [vmem:[#allocation11 + $0x38] sm:$0xff]
    %v1880 = vld [vmem:[%s8] sm:$0x1]
    %v1882 = vperm.slane %v1880, 0
    %v1885 = vsel %vm225, %v1871, 0
    %1887 = vmatpush.msra.mxu0 0.0
    %1888 = vmatpush.msra.mxu0 0.0
    %1889 = vmatpush.msra.mxu0 0.0
    %1890 = vmatpush.msra.mxu0 0.0
    %1891 = vmatpush.msra.mxu0 0.0
    %1892 = vmatpush.msra.mxu0 0.0
    %1893 = vmatpush.msra.mxu0 0.0
    %1894 = vmatpush.msra.mxu0 0.0
    %1895 = vmatpush.msra.mxu0 %v1879
    %1896 = vmatpush.msra.mxu0 %v1878
    %1897 = vmatpush.msra.mxu0 %v1877
    %1898 = vmatpush.msra.mxu0 %v1876
    %1899 = vmatpush.msra.mxu0 %v1875
    %1900 = vmatpush.msra.mxu0 %v1874
    %1901 = vmatpush.msra.mxu0 %v1873
    %1902 = vmatpush.msra.mxu0 %v1872
    %1903 = vmatmul.f32.gmra.mxu0 %v1885
    %v1904 = vpop.f32.mrf.mxu0
    %v1905 = vadd.f32 %v1882, %v1904
    %1906 = vdwg.mxu0
    %v1907 = vxor.u32 %v1905, 2147483648
    %v1908 = vmul.f32 %v1907, 1.442695
    %v1909 = vpow.pop %v1908
    %v1910 = vadd.f32 %v1909, 1.0
    %v1911 = vrcp.pop %v1910
    %v1912 = vmul.f32 %v1910, %v1911
    %v1913 = vsub.f32 1.0, %v1912
    %v1914 = vmul.f32 %v1911, %v1913
    %v1915 = vadd.f32 %v1911, %v1914
    %vm1916 = vweird.f32 %v1910
    %vm1917 = vweird.f32 %v1911
    %vm1918 = vmor %vm1916, %vm1917
    %v1919 = vsel %vm1918, %v1911, %v1915
    %v1920 = vand.u32 2147483647, %v1910
    %vm1921 = vcmp.eq.f32.partialorder %v1920, 8.507059e+37
    %v1922 = vand.u32 %v1910, 2147483648
    %v1923 = vor.u32 1.1754944e-38, %v1922
    %v1924 = vsel %vm1921, %v1923, %v1919
    %v1925 = vmul.f32 1.0, %v1924
    %v1926 = vmul.f32 %v1905, %v1925
    %v1927 = vld [vmem:[%s269] sm:$0xff]
    %v1928 = vld [vmem:[%s269 + $0x8] sm:$0xff]
    %v1929 = vld [vmem:[%s269 + $0x10] sm:$0xff]
    %v1930 = vld [vmem:[%s269 + $0x18] sm:$0xff]
    %v1931 = vld [vmem:[%s269 + $0x20] sm:$0xff]
    %v1932 = vld [vmem:[%s269 + $0x28] sm:$0xff]
    %v1933 = vld [vmem:[%s269 + $0x30] sm:$0xff]
    %v1934 = vld [vmem:[%s269 + $0x38] sm:$0xff]
    %v1935 = vld [vmem:[%s278] sm:$0x1]
    %v1937 = vperm.slane %v1935, 0
    %v1940 = vsel %vm225, %v1926, 0
    %1942 = vmatpush.msra.mxu0 0.0
    %1943 = vmatpush.msra.mxu0 0.0
    %1944 = vmatpush.msra.mxu0 0.0
    %1945 = vmatpush.msra.mxu0 0.0
    %1946 = vmatpush.msra.mxu0 0.0
    %1947 = vmatpush.msra.mxu0 0.0
    %1948 = vmatpush.msra.mxu0 0.0
    %1949 = vmatpush.msra.mxu0 0.0
    %1950 = vmatpush.msra.mxu0 %v1934
    %1951 = vmatpush.msra.mxu0 %v1933
    %1952 = vmatpush.msra.mxu0 %v1932
    %1953 = vmatpush.msra.mxu0 %v1931
    %1954 = vmatpush.msra.mxu0 %v1930
    %1955 = vmatpush.msra.mxu0 %v1929
    %1956 = vmatpush.msra.mxu0 %v1928
    %1957 = vmatpush.msra.mxu0 %v1927
    %1958 = vmatmul.f32.gmra.mxu0 %v1940
    %v1959 = vpop.f32.mrf.mxu0
    %v1960 = vadd.f32 %v1937, %v1959
    %1961 = vdwg.mxu0
    %v1962 = vxor.u32 %v1960, 2147483648
    %v1963 = vmul.f32 %v1962, 1.442695
    %v1964 = vpow.pop %v1963
    %v1965 = vadd.f32 %v1964, 1.0
    %v1966 = vrcp.pop %v1965
    %v1967 = vmul.f32 %v1965, %v1966
    %v1968 = vsub.f32 1.0, %v1967
    %v1969 = vmul.f32 %v1966, %v1968
    %v1970 = vadd.f32 %v1966, %v1969
    %vm1971 = vweird.f32 %v1965
    %vm1972 = vweird.f32 %v1966
    %vm1973 = vmor %vm1971, %vm1972
    %v1974 = vsel %vm1973, %v1966, %v1970
    %v1975 = vand.u32 2147483647, %v1965
    %vm1976 = vcmp.eq.f32.partialorder %v1975, 8.507059e+37
    %v1977 = vand.u32 %v1965, 2147483648
    %v1978 = vor.u32 1.1754944e-38, %v1977
    %v1979 = vsel %vm1976, %v1978, %v1974
    %v1980 = vmul.f32 1.0, %v1979
    %v1981 = vmul.f32 %v1960, %v1980
    %v1982 = vld [vmem:[#allocation13] sm:$0xff]
    %v1983 = vld [vmem:[#allocation13 + $0x8] sm:$0xff]
    %v1984 = vld [vmem:[#allocation13 + $0x10] sm:$0xff]
    %v1985 = vld [vmem:[#allocation13 + $0x18] sm:$0xff]
    %v1986 = vld [vmem:[#allocation13 + $0x20] sm:$0xff]
    %v1987 = vld [vmem:[#allocation13 + $0x28] sm:$0xff]
    %v1988 = vld [vmem:[#allocation13 + $0x30] sm:$0xff]
    %v1989 = vld [vmem:[#allocation13 + $0x38] sm:$0xff]
    %v1990 = vld [vmem:[#allocation13 + $0x40] sm:$0xff]
    %v1991 = vld [vmem:[#allocation13 + $0x48] sm:$0xff]
    %v1992 = vld [vmem:[#allocation13 + $0x50] sm:$0xff]
    %v1993 = vld [vmem:[#allocation13 + $0x58] sm:$0xff]
    %v1994 = vld [vmem:[#allocation13 + $0x60] sm:$0xff]
    %v1995 = vld [vmem:[#allocation13 + $0x68] sm:$0xff]
    %v1996 = vld [vmem:[#allocation13 + $0x70] sm:$0xff]
    %v1997 = vld [vmem:[#allocation13 + $0x78] sm:$0xff]
    %v1998 = vld [vmem:[%s10] sm:$0x3]
    %v2000 = vperm.slane %v1998, 0
    %v2001 = vperm.slane %v1998, 1
    %v2005 = vsel %vm225, %v1981, 0
    %2007 = vmatpush.msra.mxu0 0.0
    %2008 = vmatpush.msra.mxu0 0.0
    %2009 = vmatpush.msra.mxu0 0.0
    %2010 = vmatpush.msra.mxu0 0.0
    %2011 = vmatpush.msra.mxu0 0.0
    %2012 = vmatpush.msra.mxu0 0.0
    %2013 = vmatpush.msra.mxu0 0.0
    %2014 = vmatpush.msra.mxu0 0.0
    %2015 = vmatpush.msra.mxu0 %v1996
    %2016 = vmatpush.msra.mxu0 %v1994
    %2017 = vmatpush.msra.mxu0 %v1992
    %2018 = vmatpush.msra.mxu0 %v1990
    %2019 = vmatpush.msra.mxu0 %v1988
    %2020 = vmatpush.msra.mxu0 %v1986
    %2021 = vmatpush.msra.mxu0 %v1984
    %2022 = vmatpush.msra.mxu0 %v1982
    %2023 = vmatmul.f32.gmra.mxu0 %v2005
    %v2024 = vpop.f32.mrf.mxu0
    %v2025 = vadd.f32 %v2000, %v2024
    %2026 = vdwg.mxu0
    %2027 = vmatpush.msra.mxu0 0.0
    %2028 = vmatpush.msra.mxu0 0.0
    %2029 = vmatpush.msra.mxu0 0.0
    %2030 = vmatpush.msra.mxu0 0.0
    %2031 = vmatpush.msra.mxu0 0.0
    %2032 = vmatpush.msra.mxu0 0.0
    %2033 = vmatpush.msra.mxu0 0.0
    %2034 = vmatpush.msra.mxu0 0.0
    %2035 = vmatpush.msra.mxu0 %v1997
    %2036 = vmatpush.msra.mxu0 %v1995
    %2037 = vmatpush.msra.mxu0 %v1993
    %2038 = vmatpush.msra.mxu0 %v1991
    %2039 = vmatpush.msra.mxu0 %v1989
    %2040 = vmatpush.msra.mxu0 %v1987
    %2041 = vmatpush.msra.mxu0 %v1985
    %2042 = vmatpush.msra.mxu0 %v1983
    %2043 = vmatmul.f32.gmra.mxu0 %v2005
    %v2044 = vpop.f32.mrf.mxu0
    %v2045 = vadd.f32 %v2001, %v2044
    %2046 = vdwg.mxu0
    %v2047 = vtanh.pop %v2025
    %v2048 = vtanh.pop %v2045
    %s2049 = sadd.s32 %s121, 7
    %s2050 = sld [smem:[#allocation4 + %s2049]]
    %v2051 = vstv %s2050
    %v2052 = vmul.f32 %v2047, %v2051
    %v2053 = vadd.f32 %v1820, %v2052
    %s2054 = scalar_lea.vmem [#allocation5], 56
    %v2055 = vld [vmem:[%s2054] sm:$0xff]
    %v2056 = vmul.f32 %v2048, %v2055
    %v2057 = vadd.f32 %v2053, %v2056
    %s2058 = scalar_lea.vmem [#allocation14], 56
    %2059 = vst.msk [vmem:[%s2058] sm:$0xff] %vm169, %v2057
    %2060 = vst.msk [vmem:[#allocation2] sm:$0xff] %vm169, %v2057
    // Predicated region
    $region66: #{tpu_custom_call.1} parent=1 // pred_check
      _
    $region67: #{tpu_custom_call.1} parent=1 // pred_check_branch
      %2062 = sbr.rel (0) target = $region69
    $region68: #{tpu_custom_call.1} parent=1 // pred_region
      %2064 = vsyncadd [#allocation7], 0
      %s2065 = sshll.u32 [#allocation14], 4
      %s2066 = int_to_ptr.vmem [resolvable:$true] %s2065
      %s2067 = sshll.u32 %s11, 4
      %s2068 = int_to_ptr.hbm [resolvable:$true] %s2067
      %2073 = dma.vmem_to_hbm [thread:$0]  %s2066, 1024, %s2068, [#allocation7], 128, 128, 8
    $region69: #{tpu_custom_call.1} parent=1 // pred_fallthru
      _
    // Predicated region
    $region70: #{tpu_custom_call.1} parent=1 // pred_check
      _
    $region71: #{tpu_custom_call.1} parent=1 // pred_check_branch
      %2075 = sbr.rel (0) target = $region73
    $region72: #{tpu_custom_call.1} parent=1 // pred_region
      %2077 = dma.done [#allocation7], 1024
    $region73: #{tpu_custom_call.1} parent=1 // pred_fallthru
      _
    %2078 = vsyncpa [#allocation6], 1
    %2079 = vsyncpa [#allocation9], 1
    %2080 = vsyncpa [#allocation12], 1
    %2081 = vsyncpa [#allocation7], 1

</llo_original>
